<compile_context>
chip_gen: v7x
topology: tpu7x:2x2x1
jax: 0.10.0
libtpu: 0.0.40
codegen_flags: <defaults>
</compile_context>

<pallas_src>
import functools
import math

import jax
import jax.numpy as jnp
from jax import lax
from jax.experimental import pallas as pl
from jax.experimental.pallas import tpu as pltpu

_NEG_INF = -1e30


# ----------------------------------------------------------------------------
# Fused kernel: projections + per-head global attention + fc + residual (+ LN)
# ----------------------------------------------------------------------------
def _mhfa_kernel(q_ref, k_ref, v_ref, wq_ref, wk_ref, wv_ref, wfc_ref,
                 gamma_ref, beta_ref, o_ref, *, n_head, d_k, d_v, norm, eps,
                 l_valid, l_pad):
    # q_ref/o_ref : (1, C, tq)   k_ref/v_ref : (1, C, Lp)   (channels on sublanes,
    # spatial on lanes; tq and Lp are multiples of 128 -> lane-dense stores)
    # wq_ref/wk_ref : (nH*d_k, C) bf16 (wq pre-scaled by 1/sqrt(d_k))
    # wv_ref        : (nH*d_v, C) bf16
    # wfc_ref       : (C, nH*d_v) bf16
    xq_res = q_ref[0]                                  # (C, tq) input dtype (residual)
    xq = xq_res.astype(jnp.bfloat16)                   # bf16 MXU operands
    xk = k_ref[0].astype(jnp.bfloat16)                 # (C, Lp)
    xv = v_ref[0].astype(jnp.bfloat16)

    # Fused projections across ALL heads: one tall matmul per input.
    qp = jnp.dot(wq_ref[...], xq, preferred_element_type=jnp.float32)   # (nH*d_k, tq)
    kp = jnp.dot(wk_ref[...], xk, preferred_element_type=jnp.float32)   # (nH*d_k, Lp)
    vp = jnp.dot(wv_ref[...], xv,
                 preferred_element_type=jnp.float32).astype(jnp.bfloat16)  # (nH*d_v, Lp)

    # Mask for zero-padded key positions (only when L was padded to Lp).
    key_valid = None
    if l_pad != l_valid:
        key_valid = lax.broadcasted_iota(jnp.int32, (l_pad, 1), 0) < l_valid

    head_outs = []
    for h in range(n_head):                            # static unroll; n_head is small
        qh = qp[h * d_k:(h + 1) * d_k].astype(jnp.bfloat16)   # (d_k, tq)
        kh = kp[h * d_k:(h + 1) * d_k].astype(jnp.bfloat16)   # (d_k, Lp)
        vh = vp[h * d_v:(h + 1) * d_v]                        # (d_v, Lp) bf16

        # s[j, i] = sum_d kh[d, j] * qh[d, i]  -> (Lp, tq); head dim contracted
        # directly (no explicit k^T materialization in source).
        # TODO(synk): if the Mosaic MLIR shows an XLU transpose here, project k
        # directly into (Lp, d_k) layout instead.
        s = lax.dot_general(kh, qh, (((0,), (0,)), ((), ())),
                            preferred_element_type=jnp.float32)
        if key_valid is not None:
            s = jnp.where(key_valid, s, _NEG_INF)

        # Numerically-stable softmax over the key axis (axis 0).
        m = jnp.max(s, axis=0, keepdims=True)          # (1, tq)
        p = jnp.exp(s - m)                             # f32 (portable across v5e/v6e/v7x)
        l = jnp.sum(p, axis=0, keepdims=True)          # (1, tq)

        # PV matmul with bf16 probabilities; normalize after the matmul.
        o = jnp.dot(vh, p.astype(jnp.bfloat16),
                    preferred_element_type=jnp.float32)       # (d_v, tq)
        head_outs.append(o * pl.reciprocal(l, approx=True))

    # Concat-heads + fc as ONE matmul (full nH*d_v contraction depth), then the
    # residual add once.  Mathematically identical to concat followed by fc.
    attn = jnp.concatenate(head_outs, axis=0).astype(jnp.bfloat16)      # (nH*d_v, tq)
    y = jnp.dot(wfc_ref[...], attn, preferred_element_type=jnp.float32)  # (C, tq)
    y = y + xq_res.astype(jnp.float32)

    if norm:
        # LayerNorm2d: normalize over channels (axis 0) per spatial location.
        mean = jnp.mean(y, axis=0, keepdims=True)
        var = jnp.mean((y - mean) ** 2, axis=0, keepdims=True)
        y = (y - mean) * lax.rsqrt(var + eps)
        y = y * gamma_ref[...].astype(jnp.float32) + beta_ref[...].astype(jnp.float32)

    o_ref[0] = y.astype(o_ref.dtype)


# ----------------------------------------------------------------------------
# VMEM bookkeeping (generation-aware)
# ----------------------------------------------------------------------------
def _vmem_capacity_bytes():
    try:
        return int(pltpu.get_tpu_info().vmem_capacity_bytes)
    except Exception:
        return 64 * 1024 * 1024  # conservative (v7x per-TC capacity)


def _vmem_bytes_estimate(C, Lp, tq, n_head, d_k, d_v, itemsize):
    # double-buffered I/O tiles (q/out per q-tile, k/v full spatial)
    io = 2 * itemsize * (2 * C * tq + 2 * C * Lp)
    # weights (bf16) + gamma/beta (f32), double-buffered
    w = 2 * (2 * ((2 * n_head * d_k + n_head * d_v) * C + C * n_head * d_v) + 2 * 4 * C)
    # in-kernel temporaries: projections, scores/probs, head outputs, fc/LN
    tmp = (4 * n_head * d_k * (tq + Lp)            # qp, kp (f32)
           + 2 * n_head * d_v * Lp                 # vp (bf16)
           + (4 + 2) * Lp * tq                     # s (f32) + p (bf16)
           + 4 * (n_head * d_v * tq + 2 * C * tq))  # head outs + y + LN temps
    return io + w + tmp


# ----------------------------------------------------------------------------
# Module-level forward
# ----------------------------------------------------------------------------
def init_params(key, n_head, d_model, d_k, d_v):
    k0, k1, k2, k3 = jax.random.split(key, 4)
    # Stored in PyTorch Conv2d-1x1 matrix layout: (out_channels, in_channels).
    return {
        "w_qs": jax.random.normal(k0, (n_head * d_k, d_model), jnp.float32)
        / jnp.sqrt(jnp.float32(d_model)),
        "w_ks": jax.random.normal(k1, (n_head * d_k, d_model), jnp.float32)
        / jnp.sqrt(jnp.float32(d_model)),
        "w_vs": jax.random.normal(k2, (n_head * d_v, d_model), jnp.float32)
        / jnp.sqrt(jnp.float32(d_model)),
        "w_fc": jax.random.normal(k3, (d_model, n_head * d_v), jnp.float32)
        / jnp.sqrt(jnp.float32(n_head * d_v)),
        "ln_w": jnp.ones((d_model,), jnp.float32),
        "ln_b": jnp.zeros((d_model,), jnp.float32),
    }


def multi_head_focus_attention(
    params, q, k, v, kernel, pad, *, n_head, d_k, d_v, norm=False, eps=1e-6
):
    if kernel != 0:
        # TODO(synk): local (unfold-window) attention path `single_head_local_attention`
        # is not defined in the reference source; only the global (kernel==0) path exists.
        raise NotImplementedError("local attention path (kernel != 0) not implemented")
    # `pad` is unused on the kernel==0 path (matches the PyTorch module).

    B, C, H, W = q.shape
    L = H * W
    Lp = ((L + 127) // 128) * 128          # lane-dense spatial axis (multiple of 128)

    # NCHW -> (B, C, L): pure reshape; zero-pad the spatial axis if needed.
    qs = q.reshape(B, C, L)
    ks = k.reshape(B, C, L)
    vs = v.reshape(B, C, L)
    if Lp != L:
        padw = ((0, 0), (0, 0), (0, Lp - L))
        qs = jnp.pad(qs, padw)
        ks = jnp.pad(ks, padw)
        vs = jnp.pad(vs, padw)

    # One-time weight casts/re-layouts; 1/sqrt(d_k) folded into the q weight.
    scale = 1.0 / math.sqrt(d_k)
    wq = (params["w_qs"] * scale).astype(jnp.bfloat16)    # (nH*d_k, C)
    wk = params["w_ks"].astype(jnp.bfloat16)              # (nH*d_k, C)
    wv = params["w_vs"].astype(jnp.bfloat16)              # (nH*d_v, C)
    wfc = params["w_fc"].astype(jnp.bfloat16)             # (C, nH*d_v)
    gamma = params["ln_w"].reshape(C, 1)
    beta = params["ln_b"].reshape(C, 1)

    # Pick the largest q-tile that divides Lp and fits comfortably in VMEM.
    cap = _vmem_capacity_bytes()
    tq = 128
    for cand in (512, 256, 128):
        if Lp % cand == 0 and _vmem_bytes_estimate(
                C, Lp, cand, n_head, d_k, d_v, q.dtype.itemsize) <= int(0.7 * cap):
            tq = cand
            break
    est = _vmem_bytes_estimate(C, Lp, tq, n_head, d_k, d_v, q.dtype.itemsize)
    # TODO(synk): for very large L the (Lp, tq) score/prob temporaries no longer
    # fit; a key-axis (flash-style online-softmax) tiling would be needed.

    cp_kwargs = {"dimension_semantics": ("parallel", "parallel")}
    if est > 12 * 1024 * 1024:   # v5e default scoped limit is 16 MiB; leave margin
        cp_kwargs["vmem_limit_bytes"] = min(int(est * 1.5), int(0.85 * cap))

    kfun = functools.partial(_mhfa_kernel, n_head=n_head, d_k=d_k, d_v=d_v,
                             norm=norm, eps=eps, l_valid=L, l_pad=Lp)

    out = pl.pallas_call(
        kfun,
        out_shape=jax.ShapeDtypeStruct((B, C, Lp), q.dtype),
        grid=(B, Lp // tq),
        in_specs=[
            pl.BlockSpec((1, C, tq), lambda b, i: (b, 0, i)),   # q tile
            pl.BlockSpec((1, C, Lp), lambda b, i: (b, 0, 0)),   # k (full spatial)
            pl.BlockSpec((1, C, Lp), lambda b, i: (b, 0, 0)),   # v (full spatial)
            pl.BlockSpec((n_head * d_k, C), lambda b, i: (0, 0)),
            pl.BlockSpec((n_head * d_k, C), lambda b, i: (0, 0)),
            pl.BlockSpec((n_head * d_v, C), lambda b, i: (0, 0)),
            pl.BlockSpec((C, n_head * d_v), lambda b, i: (0, 0)),
            pl.BlockSpec((C, 1), lambda b, i: (0, 0)),
            pl.BlockSpec((C, 1), lambda b, i: (0, 0)),
        ],
        out_specs=pl.BlockSpec((1, C, tq), lambda b, i: (b, 0, i)),
        compiler_params=pltpu.CompilerParams(**cp_kwargs),
    )(qs, ks, vs, wq, wk, wv, wfc, gamma, beta)

    if Lp != L:
        out = out[:, :, :L]
    return out.reshape(B, C, H, W)


# ----------------------------------------------------------------------------
# Pure-JAX reference (for correctness check)
# ----------------------------------------------------------------------------
def _reference(params, q, k, v, *, n_head, d_k, d_v, norm, eps=1e-6):
    B, C, H, W = q.shape
    L = H * W
    xq = q.reshape(B, C, L)
    xk = k.reshape(B, C, L)
    xv = v.reshape(B, C, L)
    qp = jnp.einsum("oc,bcl->bol", params["w_qs"], xq)
    kp = jnp.einsum("oc,bcl->bol", params["w_ks"], xk)
    vp = jnp.einsum("oc,bcl->bol", params["w_vs"], xv)
    outs = []
    for h in range(n_head):
        qh = qp[:, h * d_k:(h + 1) * d_k]
        kh = kp[:, h * d_k:(h + 1) * d_k]
        vh = vp[:, h * d_v:(h + 1) * d_v]
        s = jnp.einsum("bdi,bdj->bij", qh, kh) / math.sqrt(d_k)
        a = jax.nn.softmax(s, axis=-1)
        outs.append(jnp.einsum("bij,bdj->bdi", a, vh))
    cat = jnp.concatenate(outs, axis=1)
    y = jnp.einsum("oc,bcl->bol", params["w_fc"], cat) + xq
    if norm:
        mean = jnp.mean(y, axis=1, keepdims=True)
        var = jnp.mean((y - mean) ** 2, axis=1, keepdims=True)
        y = (y - mean) / jnp.sqrt(var + eps)
        y = y * params["ln_w"].reshape(1, C, 1) + params["ln_b"].reshape(1, C, 1)
    return y.reshape(B, C, H, W)


# ----------------------------------------------------------------------------
if __name__ == "__main__":
    key = jax.random.PRNGKey(0)
    B, d_model = 2, 32
    n_head, d_k, d_v = 4, 8, 8

    kp_key, *data_keys = jax.random.split(key, 7)
    params = init_params(kp_key, n_head, d_model, d_k, d_v)

    # (16,16): L=256, lane-dense, single q-tile.
    # (24,24): L=576 -> padded to 640, tq=128 -> 5 q-tiles (exercises padding+tiling).
    cases = ((16, 16), (24, 24))
    for ci, (H, W) in enumerate(cases):
        q = jax.random.normal(data_keys[3 * ci + 0], (B, d_model, H, W), jnp.float32)
        k = jax.random.normal(data_keys[3 * ci + 1], (B, d_model, H, W), jnp.float32)
        v = jax.random.normal(data_keys[3 * ci + 2], (B, d_model, H, W), jnp.float32)
        for use_norm in (False, True):
            out = multi_head_focus_attention(
                params, q, k, v, kernel=0, pad=0,
                n_head=n_head, d_k=d_k, d_v=d_v, norm=use_norm,
            )
            out = jax.block_until_ready(out)
            assert out.shape == (B, d_model, H, W)
            assert out.dtype == jnp.float32
            ref = _reference(params, q, k, v, n_head=n_head, d_k=d_k, d_v=d_v,
                             norm=use_norm)
            err = float(jnp.max(jnp.abs(out - ref)))
            assert err < 6e-2, f"H={H} norm={use_norm}: max abs err {err}"

    print("KERNEL_OK")
</pallas_src>

<mosaic_0001>
module attributes {stable_mosaic.version = 11 : i64} {
  func.func @_mhfa_kernel(%arg0: i32, %arg1: i32, %arg2: memref<1x32x256xf32, #tpu.memory_space<vmem>>, %arg3: memref<1x32x256xf32, #tpu.memory_space<vmem>>, %arg4: memref<1x32x256xf32, #tpu.memory_space<vmem>>, %arg5: memref<32x32xbf16, #tpu.memory_space<vmem>>, %arg6: memref<32x32xbf16, #tpu.memory_space<vmem>>, %arg7: memref<32x32xbf16, #tpu.memory_space<vmem>>, %arg8: memref<32x32xbf16, #tpu.memory_space<vmem>>, %arg9: memref<32x1xf32, #tpu.memory_space<vmem>>, %arg10: memref<32x1xf32, #tpu.memory_space<vmem>>, %arg11: memref<1x32x256xf32, #tpu.memory_space<vmem>>) attributes {dimension_semantics = [#tpu.dimension_semantics<parallel>, #tpu.dimension_semantics<parallel>], iteration_bounds = array<i64: 2, 1>, scalar_prefetch = 0 : i64, scratch_operands = 0 : i64, tpu.core_type = #tpu.core_type<tc>, window_params = [{transform_indices = @transform_0, window_bounds = array<i64: 1, 32, 256>}, {transform_indices = @transform_1, window_bounds = array<i64: 1, 32, 256>}, {transform_indices = @transform_2, window_bounds = array<i64: 1, 32, 256>}, {pipeline_mode = #tpu.pipeline_mode<synchronous>, transform_indices = @transform_3, window_bounds = array<i64: 32, 32>}, {pipeline_mode = #tpu.pipeline_mode<synchronous>, transform_indices = @transform_4, window_bounds = array<i64: 32, 32>}, {pipeline_mode = #tpu.pipeline_mode<synchronous>, transform_indices = @transform_5, window_bounds = array<i64: 32, 32>}, {pipeline_mode = #tpu.pipeline_mode<synchronous>, transform_indices = @transform_6, window_bounds = array<i64: 32, 32>}, {pipeline_mode = #tpu.pipeline_mode<synchronous>, transform_indices = @transform_7, window_bounds = array<i64: 32, 1>}, {pipeline_mode = #tpu.pipeline_mode<synchronous>, transform_indices = @transform_8, window_bounds = array<i64: 32, 1>}, {transform_indices = @transform_9, window_bounds = array<i64: 1, 32, 256>}]} {
    %c0 = arith.constant 0 : index
    %c0_0 = arith.constant 0 : index
    %c0_1 = arith.constant 0 : index
    %0 = vector.load %arg2[%c0, %c0_0, %c0_1] : memref<1x32x256xf32, #tpu.memory_space<vmem>>, vector<1x32x256xf32>
    %1 = vector.shape_cast %0 : vector<1x32x256xf32> to vector<32x256xf32>
    %2 = arith.truncf %1 : vector<32x256xf32> to vector<32x256xbf16>
    %c0_2 = arith.constant 0 : index
    %c0_3 = arith.constant 0 : index
    %c0_4 = arith.constant 0 : index
    %3 = vector.load %arg3[%c0_2, %c0_3, %c0_4] : memref<1x32x256xf32, #tpu.memory_space<vmem>>, vector<1x32x256xf32>
    %4 = vector.shape_cast %3 : vector<1x32x256xf32> to vector<32x256xf32>
    %5 = arith.truncf %4 : vector<32x256xf32> to vector<32x256xbf16>
    %c0_5 = arith.constant 0 : index
    %c0_6 = arith.constant 0 : index
    %c0_7 = arith.constant 0 : index
    %6 = vector.load %arg4[%c0_5, %c0_6, %c0_7] : memref<1x32x256xf32, #tpu.memory_space<vmem>>, vector<1x32x256xf32>
    %7 = vector.shape_cast %6 : vector<1x32x256xf32> to vector<32x256xf32>
    %8 = arith.truncf %7 : vector<32x256xf32> to vector<32x256xbf16>
    %c0_8 = arith.constant 0 : index
    %c0_9 = arith.constant 0 : index
    %9 = vector.load %arg5[%c0_8, %c0_9] : memref<32x32xbf16, #tpu.memory_space<vmem>>, vector<32x32xbf16>
    %cst = arith.constant dense<0.000000e+00> : vector<32x256xf32>
    %10 = tpu.matmul %9, %2, %cst {dimension_numbers = #tpu.dot_dimension_numbers<[1], [0], [0], [1], [0, 0, 1, 1], [], []>} : vector<32x32xbf16>, vector<32x256xbf16>, vector<32x256xf32> -> vector<32x256xf32>
    %c0_10 = arith.constant 0 : index
    %c0_11 = arith.constant 0 : index
    %11 = vector.load %arg6[%c0_10, %c0_11] : memref<32x32xbf16, #tpu.memory_space<vmem>>, vector<32x32xbf16>
    %cst_12 = arith.constant dense<0.000000e+00> : vector<32x256xf32>
    %12 = tpu.matmul %11, %5, %cst_12 {dimension_numbers = #tpu.dot_dimension_numbers<[1], [0], [0], [1], [0, 0, 1, 1], [], []>} : vector<32x32xbf16>, vector<32x256xbf16>, vector<32x256xf32> -> vector<32x256xf32>
    %c0_13 = arith.constant 0 : index
    %c0_14 = arith.constant 0 : index
    %13 = vector.load %arg7[%c0_13, %c0_14] : memref<32x32xbf16, #tpu.memory_space<vmem>>, vector<32x32xbf16>
    %cst_15 = arith.constant dense<0.000000e+00> : vector<32x256xf32>
    %14 = tpu.matmul %13, %8, %cst_15 {dimension_numbers = #tpu.dot_dimension_numbers<[1], [0], [0], [1], [0, 0, 1, 1], [], []>} : vector<32x32xbf16>, vector<32x256xbf16>, vector<32x256xf32> -> vector<32x256xf32>
    %15 = arith.truncf %14 : vector<32x256xf32> to vector<32x256xbf16>
    %16 = vector.extract_strided_slice %10 {offsets = [0, 0], sizes = [8, 256], strides = [1, 1]} : vector<32x256xf32> to vector<8x256xf32>
    %17 = arith.truncf %16 : vector<8x256xf32> to vector<8x256xbf16>
    %18 = vector.extract_strided_slice %12 {offsets = [0, 0], sizes = [8, 256], strides = [1, 1]} : vector<32x256xf32> to vector<8x256xf32>
    %19 = arith.truncf %18 : vector<8x256xf32> to vector<8x256xbf16>
    %20 = vector.extract_strided_slice %15 {offsets = [0, 0], sizes = [8, 256], strides = [1, 1]} : vector<32x256xbf16> to vector<8x256xbf16>
    %cst_16 = arith.constant dense<0.000000e+00> : vector<256x256xf32>
    %21 = tpu.matmul %19, %17, %cst_16 {dimension_numbers = #tpu.dot_dimension_numbers<[0], [0], [1], [1], [0, 1, 1, 1], [], []>} : vector<8x256xbf16>, vector<8x256xbf16>, vector<256x256xf32> -> vector<256x256xf32>
    %cst_17 = arith.constant dense<0xFF800000> : vector<256xf32>
    %22 = vector.multi_reduction <maximumf>, %21, %cst_17 [0] : vector<256x256xf32> to vector<256xf32>
    %23 = vector.shape_cast %22 : vector<256xf32> to vector<1x256xf32>
    %24 = vector.broadcast %23 : vector<1x256xf32> to vector<256x256xf32>
    %25 = arith.subf %21, %24 : vector<256x256xf32>
    %26 = math.exp %25 : vector<256x256xf32>
    %cst_18 = arith.constant dense<0.000000e+00> : vector<256xf32>
    %27 = vector.multi_reduction <add>, %26, %cst_18 [0] : vector<256x256xf32> to vector<256xf32>
    %28 = vector.shape_cast %27 : vector<256xf32> to vector<1x256xf32>
    %29 = arith.truncf %26 : vector<256x256xf32> to vector<256x256xbf16>
    %cst_19 = arith.constant dense<0.000000e+00> : vector<8x256xf32>
    %30 = tpu.matmul %20, %29, %cst_19 {dimension_numbers = #tpu.dot_dimension_numbers<[1], [0], [0], [1], [0, 0, 1, 1], [], []>} : vector<8x256xbf16>, vector<256x256xbf16>, vector<8x256xf32> -> vector<8x256xf32>
    %31 = tpu.reciprocal %28 {approx = true} : vector<1x256xf32> -> vector<1x256xf32>
    %32 = vector.broadcast %31 : vector<1x256xf32> to vector<8x256xf32>
    %33 = arith.mulf %30, %32 : vector<8x256xf32>
    %34 = vector.extract_strided_slice %10 {offsets = [8, 0], sizes = [8, 256], strides = [1, 1]} : vector<32x256xf32> to vector<8x256xf32>
    %35 = arith.truncf %34 : vector<8x256xf32> to vector<8x256xbf16>
    %36 = vector.extract_strided_slice %12 {offsets = [8, 0], sizes = [8, 256], strides = [1, 1]} : vector<32x256xf32> to vector<8x256xf32>
    %37 = arith.truncf %36 : vector<8x256xf32> to vector<8x256xbf16>
    %38 = vector.extract_strided_slice %15 {offsets = [8, 0], sizes = [8, 256], strides = [1, 1]} : vector<32x256xbf16> to vector<8x256xbf16>
    %cst_20 = arith.constant dense<0.000000e+00> : vector<256x256xf32>
    %39 = tpu.matmul %37, %35, %cst_20 {dimension_numbers = #tpu.dot_dimension_numbers<[0], [0], [1], [1], [0, 1, 1, 1], [], []>} : vector<8x256xbf16>, vector<8x256xbf16>, vector<256x256xf32> -> vector<256x256xf32>
    %cst_21 = arith.constant dense<0xFF800000> : vector<256xf32>
    %40 = vector.multi_reduction <maximumf>, %39, %cst_21 [0] : vector<256x256xf32> to vector<256xf32>
    %41 = vector.shape_cast %40 : vector<256xf32> to vector<1x256xf32>
    %42 = vector.broadcast %41 : vector<1x256xf32> to vector<256x256xf32>
    %43 = arith.subf %39, %42 : vector<256x256xf32>
    %44 = math.exp %43 : vector<256x256xf32>
    %cst_22 = arith.constant dense<0.000000e+00> : vector<256xf32>
    %45 = vector.multi_reduction <add>, %44, %cst_22 [0] : vector<256x256xf32> to vector<256xf32>
    %46 = vector.shape_cast %45 : vector<256xf32> to vector<1x256xf32>
    %47 = arith.truncf %44 : vector<256x256xf32> to vector<256x256xbf16>
    %cst_23 = arith.constant dense<0.000000e+00> : vector<8x256xf32>
    %48 = tpu.matmul %38, %47, %cst_23 {dimension_numbers = #tpu.dot_dimension_numbers<[1], [0], [0], [1], [0, 0, 1, 1], [], []>} : vector<8x256xbf16>, vector<256x256xbf16>, vector<8x256xf32> -> vector<8x256xf32>
    %49 = tpu.reciprocal %46 {approx = true} : vector<1x256xf32> -> vector<1x256xf32>
    %50 = vector.broadcast %49 : vector<1x256xf32> to vector<8x256xf32>
    %51 = arith.mulf %48, %50 : vector<8x256xf32>
    %52 = vector.extract_strided_slice %10 {offsets = [16, 0], sizes = [8, 256], strides = [1, 1]} : vector<32x256xf32> to vector<8x256xf32>
    %53 = arith.truncf %52 : vector<8x256xf32> to vector<8x256xbf16>
    %54 = vector.extract_strided_slice %12 {offsets = [16, 0], sizes = [8, 256], strides = [1, 1]} : vector<32x256xf32> to vector<8x256xf32>
    %55 = arith.truncf %54 : vector<8x256xf32> to vector<8x256xbf16>
    %56 = vector.extract_strided_slice %15 {offsets = [16, 0], sizes = [8, 256], strides = [1, 1]} : vector<32x256xbf16> to vector<8x256xbf16>
    %cst_24 = arith.constant dense<0.000000e+00> : vector<256x256xf32>
    %57 = tpu.matmul %55, %53, %cst_24 {dimension_numbers = #tpu.dot_dimension_numbers<[0], [0], [1], [1], [0, 1, 1, 1], [], []>} : vector<8x256xbf16>, vector<8x256xbf16>, vector<256x256xf32> -> vector<256x256xf32>
    %cst_25 = arith.constant dense<0xFF800000> : vector<256xf32>
    %58 = vector.multi_reduction <maximumf>, %57, %cst_25 [0] : vector<256x256xf32> to vector<256xf32>
    %59 = vector.shape_cast %58 : vector<256xf32> to vector<1x256xf32>
    %60 = vector.broadcast %59 : vector<1x256xf32> to vector<256x256xf32>
    %61 = arith.subf %57, %60 : vector<256x256xf32>
    %62 = math.exp %61 : vector<256x256xf32>
    %cst_26 = arith.constant dense<0.000000e+00> : vector<256xf32>
    %63 = vector.multi_reduction <add>, %62, %cst_26 [0] : vector<256x256xf32> to vector<256xf32>
    %64 = vector.shape_cast %63 : vector<256xf32> to vector<1x256xf32>
    %65 = arith.truncf %62 : vector<256x256xf32> to vector<256x256xbf16>
    %cst_27 = arith.constant dense<0.000000e+00> : vector<8x256xf32>
    %66 = tpu.matmul %56, %65, %cst_27 {dimension_numbers = #tpu.dot_dimension_numbers<[1], [0], [0], [1], [0, 0, 1, 1], [], []>} : vector<8x256xbf16>, vector<256x256xbf16>, vector<8x256xf32> -> vector<8x256xf32>
    %67 = tpu.reciprocal %64 {approx = true} : vector<1x256xf32> -> vector<1x256xf32>
    %68 = vector.broadcast %67 : vector<1x256xf32> to vector<8x256xf32>
    %69 = arith.mulf %66, %68 : vector<8x256xf32>
    %70 = vector.extract_strided_slice %10 {offsets = [24, 0], sizes = [8, 256], strides = [1, 1]} : vector<32x256xf32> to vector<8x256xf32>
    %71 = arith.truncf %70 : vector<8x256xf32> to vector<8x256xbf16>
    %72 = vector.extract_strided_slice %12 {offsets = [24, 0], sizes = [8, 256], strides = [1, 1]} : vector<32x256xf32> to vector<8x256xf32>
    %73 = arith.truncf %72 : vector<8x256xf32> to vector<8x256xbf16>
    %74 = vector.extract_strided_slice %15 {offsets = [24, 0], sizes = [8, 256], strides = [1, 1]} : vector<32x256xbf16> to vector<8x256xbf16>
    %cst_28 = arith.constant dense<0.000000e+00> : vector<256x256xf32>
    %75 = tpu.matmul %73, %71, %cst_28 {dimension_numbers = #tpu.dot_dimension_numbers<[0], [0], [1], [1], [0, 1, 1, 1], [], []>} : vector<8x256xbf16>, vector<8x256xbf16>, vector<256x256xf32> -> vector<256x256xf32>
    %cst_29 = arith.constant dense<0xFF800000> : vector<256xf32>
    %76 = vector.multi_reduction <maximumf>, %75, %cst_29 [0] : vector<256x256xf32> to vector<256xf32>
    %77 = vector.shape_cast %76 : vector<256xf32> to vector<1x256xf32>
    %78 = vector.broadcast %77 : vector<1x256xf32> to vector<256x256xf32>
    %79 = arith.subf %75, %78 : vector<256x256xf32>
    %80 = math.exp %79 : vector<256x256xf32>
    %cst_30 = arith.constant dense<0.000000e+00> : vector<256xf32>
    %81 = vector.multi_reduction <add>, %80, %cst_30 [0] : vector<256x256xf32> to vector<256xf32>
    %82 = vector.shape_cast %81 : vector<256xf32> to vector<1x256xf32>
    %83 = arith.truncf %80 : vector<256x256xf32> to vector<256x256xbf16>
    %cst_31 = arith.constant dense<0.000000e+00> : vector<8x256xf32>
    %84 = tpu.matmul %74, %83, %cst_31 {dimension_numbers = #tpu.dot_dimension_numbers<[1], [0], [0], [1], [0, 0, 1, 1], [], []>} : vector<8x256xbf16>, vector<256x256xbf16>, vector<8x256xf32> -> vector<8x256xf32>
    %85 = tpu.reciprocal %82 {approx = true} : vector<1x256xf32> -> vector<1x256xf32>
    %86 = vector.broadcast %85 : vector<1x256xf32> to vector<8x256xf32>
    %87 = arith.mulf %84, %86 : vector<8x256xf32>
    %88 = tpu.concatenate %33, %51, %69, %87 in 0 : vector<8x256xf32>, vector<8x256xf32>, vector<8x256xf32>, vector<8x256xf32> -> vector<32x256xf32>
    %89 = arith.truncf %88 : vector<32x256xf32> to vector<32x256xbf16>
    %c0_32 = arith.constant 0 : index
    %c0_33 = arith.constant 0 : index
    %90 = vector.load %arg8[%c0_32, %c0_33] : memref<32x32xbf16, #tpu.memory_space<vmem>>, vector<32x32xbf16>
    %cst_34 = arith.constant dense<0.000000e+00> : vector<32x256xf32>
    %91 = tpu.matmul %90, %89, %cst_34 {dimension_numbers = #tpu.dot_dimension_numbers<[1], [0], [0], [1], [0, 0, 1, 1], [], []>} : vector<32x32xbf16>, vector<32x256xbf16>, vector<32x256xf32> -> vector<32x256xf32>
    %92 = arith.addf %91, %1 : vector<32x256xf32>
    %c0_35 = arith.constant 0 : index
    %c0_36 = arith.constant 0 : index
    %c0_37 = arith.constant 0 : index
    %93 = vector.load %arg11[%c0_35, %c0_36, %c0_37] : memref<1x32x256xf32, #tpu.memory_space<vmem>>, vector<1x32x256xf32>
    %94 = vector.shape_cast %93 : vector<1x32x256xf32> to vector<32x256xf32>
    %95 = vector.shape_cast %92 : vector<32x256xf32> to vector<1x32x256xf32>
    tpu.vector_store %arg11[%c0_35, %c0_36, %c0_37], %95 {strides = array<i32>} : memref<1x32x256xf32, #tpu.memory_space<vmem>>, vector<1x32x256xf32>,
    return
  }
  func.func @transform_0(%arg0: i32, %arg1: i32) -> (i32, i32, i32) {
    %c0_i32 = arith.constant 0 : i32
    %c0_i32_0 = arith.constant 0 : i32
    return %arg0, %c0_i32, %arg1 : i32, i32, i32
  }
  func.func @transform_1(%arg0: i32, %arg1: i32) -> (i32, i32, i32) {
    %c0_i32 = arith.constant 0 : i32
    %c0_i32_0 = arith.constant 0 : i32
    %c0_i32_1 = arith.constant 0 : i32
    return %arg0, %c0_i32, %c0_i32_0 : i32, i32, i32
  }
  func.func @transform_2(%arg0: i32, %arg1: i32) -> (i32, i32, i32) {
    %c0_i32 = arith.constant 0 : i32
    %c0_i32_0 = arith.constant 0 : i32
    %c0_i32_1 = arith.constant 0 : i32
    return %arg0, %c0_i32, %c0_i32_0 : i32, i32, i32
  }
  func.func @transform_3(%arg0: i32, %arg1: i32) -> (i32, i32) {
    %c0_i32 = arith.constant 0 : i32
    %c0_i32_0 = arith.constant 0 : i32
    %c0_i32_1 = arith.constant 0 : i32
    return %c0_i32, %c0_i32_0 : i32, i32
  }
  func.func @transform_4(%arg0: i32, %arg1: i32) -> (i32, i32) {
    %c0_i32 = arith.constant 0 : i32
    %c0_i32_0 = arith.constant 0 : i32
    %c0_i32_1 = arith.constant 0 : i32
    return %c0_i32, %c0_i32_0 : i32, i32
  }
  func.func @transform_5(%arg0: i32, %arg1: i32) -> (i32, i32) {
    %c0_i32 = arith.constant 0 : i32
    %c0_i32_0 = arith.constant 0 : i32
    %c0_i32_1 = arith.constant 0 : i32
    return %c0_i32, %c0_i32_0 : i32, i32
  }
  func.func @transform_6(%arg0: i32, %arg1: i32) -> (i32, i32) {
    %c0_i32 = arith.constant 0 : i32
    %c0_i32_0 = arith.constant 0 : i32
    %c0_i32_1 = arith.constant 0 : i32
    return %c0_i32, %c0_i32_0 : i32, i32
  }
  func.func @transform_7(%arg0: i32, %arg1: i32) -> (i32, i32) {
    %c0_i32 = arith.constant 0 : i32
    %c0_i32_0 = arith.constant 0 : i32
    %c0_i32_1 = arith.constant 0 : i32
    return %c0_i32, %c0_i32_0 : i32, i32
  }
  func.func @transform_8(%arg0: i32, %arg1: i32) -> (i32, i32) {
    %c0_i32 = arith.constant 0 : i32
    %c0_i32_0 = arith.constant 0 : i32
    %c0_i32_1 = arith.constant 0 : i32
    return %c0_i32, %c0_i32_0 : i32, i32
  }
  func.func @transform_9(%arg0: i32, %arg1: i32) -> (i32, i32, i32) {
    %c0_i32 = arith.constant 0 : i32
    %c0_i32_0 = arith.constant 0 : i32
    return %arg0, %c0_i32, %arg1 : i32, i32, i32
  }
}

</mosaic_0001>

<llo_original>
// kernel: tpu_custom_call.1
$region0: #{tpu_custom_call.1}
  #allocation0 [shape = 'u32[]', space=smem, size = 0x4, offset = 0x4, fixed_abs, tag = 'smem constant byte address 0x4 - core index']
  #allocation1 [shape = 'u32[144,128]{1,0:T(1,128)}', space=vmem, size = 0x12000, scoped, tag = 'internal scratch']
  %s0 = inlined_call_operand.hbm [shape: f32[2,32,256], index: 0, kind: input, shape index: {}]
  %s1 = inlined_call_operand.hbm [shape: f32[2,32,256], index: 1, kind: input, shape index: {}]
  %s2 = inlined_call_operand.hbm [shape: f32[2,32,256], index: 2, kind: input, shape index: {}]
  %s3 = inlined_call_operand.vmem [shape: bf16[32,32], index: 3, kind: input, shape index: {}]
  %s4 = inlined_call_operand.vmem [shape: bf16[32,32], index: 4, kind: input, shape index: {}]
  %s5 = inlined_call_operand.vmem [shape: bf16[32,32], index: 5, kind: input, shape index: {}]
  %s6 = inlined_call_operand.vmem [shape: bf16[32,32], index: 6, kind: input, shape index: {}]
  %s7 = inlined_call_operand.vmem [shape: f32[32,1], index: 7, kind: input, shape index: {}]
  %s8 = inlined_call_operand.vmem [shape: f32[32,1], index: 8, kind: input, shape index: {}]
  %s9 = inlined_call_operand.hbm [shape: f32[2,32,256], index: 9, kind: output, shape index: {}]
  %s10 = sld [smem:[#allocation0]]
  $region81: #{tpu_custom_call.1} parent=0
    _
  %s12 = ssub.s32 1, %s10
  %s13 = scalar_select 0, %s12, %s10
  $region1: #{tpu_custom_call.1} parent=0
    #allocation2 [shape = 'u8[65536]{0}', space=vmem, size = 0x10000, scoped, tag = 'input window, operand 0']
    #allocation3 [shape = 's32[2]{0}', space=sflag, size = 0x8, scoped, tag = 'scoped memory for tpu_custom_call.1']
    #allocation4 [shape = 's32[2]{0}', space=sflag, size = 0x8, scoped, tag = 'scoped memory for tpu_custom_call.1']
    #allocation5 [shape = 'u8[65536]{0}', space=vmem, size = 0x10000, scoped, tag = 'input window, operand 1']
    #allocation6 [shape = 's32[2]{0}', space=sflag, size = 0x8, scoped, tag = 'scoped memory for tpu_custom_call.1']
    #allocation7 [shape = 'u8[65536]{0}', space=vmem, size = 0x10000, scoped, tag = 'input window, operand 2']
    #allocation8 [shape = 'u8[65536]{0}', space=vmem, size = 0x10000, scoped, tag = 'output window, operand 0']
    %14 = vsyncpa [#allocation3], 0
    %s15 = scalar_lea.sflag [#allocation3], 1
    %16 = vsyncpa %s15, 0
    %17 = vsyncpa [#allocation6], 0
    %s18 = scalar_lea.sflag [#allocation6], 1
    %19 = vsyncpa %s18, 0
    %20 = vsyncpa [#allocation4], 0
    %s21 = scalar_lea.sflag [#allocation4], 1
    %22 = vsyncpa %s21, 0
    loop: start=0, step=1, limit=4
    $region2: #{tpu_custom_call.1} parent=1 // loop_pre_header
      _
    $region3: #{tpu_custom_call.1} parent=1 // loop_header
      %s24 = sphi 0, %s28
      %p25 = scmp.ge.s32.totalorder %s24, 4
      %s31 = sphi 0, %s43
      %s32 = sphi 0, %s39
      %s33 = sphi 0, %s31
      %s34 = sphi 0, %s32
      %s35 = sphi 0, %s33
      %s36 = sphi 0, %s34
      %s48 = sphi 0, %s50
      %s51 = sphi 0, %s48
      %s52 = sphi 0, %s51
      %s68 = sphi 0, %s52
      %s74 = sphi 0, %s76
      %s77 = sphi 0, %s74
      %s78 = sphi 0, %s77
      %s94 = sphi 0, %s78
      %s100 = sphi 0, %s102
      %s103 = sphi 0, %s100
      %s104 = sphi 0, %s103
      %s120 = sphi 0, %s104
      %s124 = sphi 0, %s124
      %s126 = sphi 0, %s124
      %s127 = sphi 0, %s126
      %s141 = sphi 0, %s127
      %s145 = sphi 0, %s145
      %s147 = sphi 0, %s145
      %s148 = sphi 0, %s147
      %s162 = sphi 0, %s148
      %s166 = sphi 0, %s166
      %s168 = sphi 0, %s166
      %s169 = sphi 0, %s168
      %s183 = sphi 0, %s169
      %s187 = sphi 0, %s187
      %s189 = sphi 0, %s187
      %s190 = sphi 0, %s189
      %s204 = sphi 0, %s190
      %s208 = sphi 0, %s208
      %s210 = sphi 0, %s208
      %s211 = sphi 0, %s210
      %s225 = sphi 0, %s211
      %s229 = sphi 0, %s229
      %s231 = sphi 0, %s229
      %s232 = sphi 0, %s231
      %s246 = sphi 0, %s232
      %s254 = sphi 0, %s256
      %s257 = sphi 0, %s254
      %s258 = sphi 0, %s257
      %s274 = sphi 0, %s258
    $region4: #{tpu_custom_call.1} parent=1 // loop_header_branch
      %27 = sbr.rel (%p25) target = $region8
    $region5: #{tpu_custom_call.1} parent=1 // loop_body
      %s29 = ssub.s32 %s24, 1
      %s30 = ssub.s32 %s24, 2
      %s37 = sadd.s32 1, %s32
      %p38 = scmp.ge.s32.totalorder %s37, 1
      %s39 = scalar_select %p38, 0, %s37
      %s40 = sadd.s32 1, %s31
      %s41 = scalar_select %p38, %s40, %s31
      %p42 = scmp.ge.s32.totalorder %s41, 2
      %s43 = scalar_select %p42, 0, %s41
      %s44 = ssub.s32 %s31, %s43
      %s45 = ssub.s32 %s32, %s39
      %s46 = sor.u32 %s44, %s45
      %p47 = scmp.eq.s32.totalorder %s46, 0
      %s49 = sadd.s32 %s48, 1
      %s50 = scalar_select %p47, %s48, %s49
      %p53 = pneg %p47
      %p54 = scmp.eq.s32.totalorder %s24, 1
      %p55 = por %p53, %p54
      %p56 = scmp.ne.s32.totalorder %s48, %s51
      %p57 = scmp.eq.s32.totalorder %s24, 0
      %p58 = por %p56, %p57
      %p59 = scmp.ne.s32.totalorder %s48, %s51
      %p60 = scmp.eq.s32.totalorder %s29, 1
      %p61 = por %p59, %p60
      %p62 = scmp.ne.s32.totalorder %s51, %s52
      %p63 = scmp.eq.s32.totalorder %s29, 0
      %p64 = por %p62, %p63
      %p65 = scmp.ne.s32.totalorder %s51, %s52
      %p66 = scmp.eq.s32.totalorder %s30, 1
      %p67 = por %p65, %p66
      %p69 = scmp.ne.s32.totalorder %s52, %s68
      %p70 = scmp.eq.s32.totalorder %s30, 0
      %p71 = por %p69, %p70
      %s72 = ssub.s32 %s31, %s43
      %p73 = scmp.eq.s32.totalorder %s72, 0
      %s75 = sadd.s32 %s74, 1
      %s76 = scalar_select %p73, %s74, %s75
      %p79 = pneg %p73
      %p80 = scmp.eq.s32.totalorder %s24, 1
      %p81 = por %p79, %p80
      %p82 = scmp.ne.s32.totalorder %s74, %s77
      %p83 = scmp.eq.s32.totalorder %s24, 0
      %p84 = por %p82, %p83
      %p85 = scmp.ne.s32.totalorder %s74, %s77
      %p86 = scmp.eq.s32.totalorder %s29, 1
      %p87 = por %p85, %p86
      %p88 = scmp.ne.s32.totalorder %s77, %s78
      %p89 = scmp.eq.s32.totalorder %s29, 0
      %p90 = por %p88, %p89
      %p91 = scmp.ne.s32.totalorder %s77, %s78
      %p92 = scmp.eq.s32.totalorder %s30, 1
      %p93 = por %p91, %p92
      %p95 = scmp.ne.s32.totalorder %s78, %s94
      %p96 = scmp.eq.s32.totalorder %s30, 0
      %p97 = por %p95, %p96
      %s98 = ssub.s32 %s31, %s43
      %p99 = scmp.eq.s32.totalorder %s98, 0
      %s101 = sadd.s32 %s100, 1
      %s102 = scalar_select %p99, %s100, %s101
      %p105 = pneg %p99
      %p106 = scmp.eq.s32.totalorder %s24, 1
      %p107 = por %p105, %p106
      %p108 = scmp.ne.s32.totalorder %s100, %s103
      %p109 = scmp.eq.s32.totalorder %s24, 0
      %p110 = por %p108, %p109
      %p111 = scmp.ne.s32.totalorder %s100, %s103
      %p112 = scmp.eq.s32.totalorder %s29, 1
      %p113 = por %p111, %p112
      %p114 = scmp.ne.s32.totalorder %s103, %s104
      %p115 = scmp.eq.s32.totalorder %s29, 0
      %p116 = por %p114, %p115
      %p117 = scmp.ne.s32.totalorder %s103, %s104
      %p118 = scmp.eq.s32.totalorder %s30, 1
      %p119 = por %p117, %p118
      %p121 = scmp.ne.s32.totalorder %s104, %s120
      %p122 = scmp.eq.s32.totalorder %s30, 0
      %p123 = por %p121, %p122
      %s125 = sadd.s32 %s124, 1
      %p128 = scmp.eq.s32.totalorder %s24, 1
      %p129 = scmp.ne.s32.totalorder %s124, %s126
      %p130 = scmp.eq.s32.totalorder %s24, 0
      %p131 = por %p129, %p130
      %p132 = scmp.ne.s32.totalorder %s124, %s126
      %p133 = scmp.eq.s32.totalorder %s29, 1
      %p134 = por %p132, %p133
      %p135 = scmp.ne.s32.totalorder %s126, %s127
      %p136 = scmp.eq.s32.totalorder %s29, 0
      %p137 = por %p135, %p136
      %p138 = scmp.ne.s32.totalorder %s126, %s127
      %p139 = scmp.eq.s32.totalorder %s30, 1
      %p140 = por %p138, %p139
      %p142 = scmp.ne.s32.totalorder %s127, %s141
      %p143 = scmp.eq.s32.totalorder %s30, 0
      %p144 = por %p142, %p143
      %s146 = sadd.s32 %s145, 1
      %p149 = scmp.eq.s32.totalorder %s24, 1
      %p150 = scmp.ne.s32.totalorder %s145, %s147
      %p151 = scmp.eq.s32.totalorder %s24, 0
      %p152 = por %p150, %p151
      %p153 = scmp.ne.s32.totalorder %s145, %s147
      %p154 = scmp.eq.s32.totalorder %s29, 1
      %p155 = por %p153, %p154
      %p156 = scmp.ne.s32.totalorder %s147, %s148
      %p157 = scmp.eq.s32.totalorder %s29, 0
      %p158 = por %p156, %p157
      %p159 = scmp.ne.s32.totalorder %s147, %s148
      %p160 = scmp.eq.s32.totalorder %s30, 1
      %p161 = por %p159, %p160
      %p163 = scmp.ne.s32.totalorder %s148, %s162
      %p164 = scmp.eq.s32.totalorder %s30, 0
      %p165 = por %p163, %p164
      %s167 = sadd.s32 %s166, 1
      %p170 = scmp.eq.s32.totalorder %s24, 1
      %p171 = scmp.ne.s32.totalorder %s166, %s168
      %p172 = scmp.eq.s32.totalorder %s24, 0
      %p173 = por %p171, %p172
      %p174 = scmp.ne.s32.totalorder %s166, %s168
      %p175 = scmp.eq.s32.totalorder %s29, 1
      %p176 = por %p174, %p175
      %p177 = scmp.ne.s32.totalorder %s168, %s169
      %p178 = scmp.eq.s32.totalorder %s29, 0
      %p179 = por %p177, %p178
      %p180 = scmp.ne.s32.totalorder %s168, %s169
      %p181 = scmp.eq.s32.totalorder %s30, 1
      %p182 = por %p180, %p181
      %p184 = scmp.ne.s32.totalorder %s169, %s183
      %p185 = scmp.eq.s32.totalorder %s30, 0
      %p186 = por %p184, %p185
      %s188 = sadd.s32 %s187, 1
      %p191 = scmp.eq.s32.totalorder %s24, 1
      %p192 = scmp.ne.s32.totalorder %s187, %s189
      %p193 = scmp.eq.s32.totalorder %s24, 0
      %p194 = por %p192, %p193
      %p195 = scmp.ne.s32.totalorder %s187, %s189
      %p196 = scmp.eq.s32.totalorder %s29, 1
      %p197 = por %p195, %p196
      %p198 = scmp.ne.s32.totalorder %s189, %s190
      %p199 = scmp.eq.s32.totalorder %s29, 0
      %p200 = por %p198, %p199
      %p201 = scmp.ne.s32.totalorder %s189, %s190
      %p202 = scmp.eq.s32.totalorder %s30, 1
      %p203 = por %p201, %p202
      %p205 = scmp.ne.s32.totalorder %s190, %s204
      %p206 = scmp.eq.s32.totalorder %s30, 0
      %p207 = por %p205, %p206
      %s209 = sadd.s32 %s208, 1
      %p212 = scmp.eq.s32.totalorder %s24, 1
      %p213 = scmp.ne.s32.totalorder %s208, %s210
      %p214 = scmp.eq.s32.totalorder %s24, 0
      %p215 = por %p213, %p214
      %p216 = scmp.ne.s32.totalorder %s208, %s210
      %p217 = scmp.eq.s32.totalorder %s29, 1
      %p218 = por %p216, %p217
      %p219 = scmp.ne.s32.totalorder %s210, %s211
      %p220 = scmp.eq.s32.totalorder %s29, 0
      %p221 = por %p219, %p220
      %p222 = scmp.ne.s32.totalorder %s210, %s211
      %p223 = scmp.eq.s32.totalorder %s30, 1
      %p224 = por %p222, %p223
      %p226 = scmp.ne.s32.totalorder %s211, %s225
      %p227 = scmp.eq.s32.totalorder %s30, 0
      %p228 = por %p226, %p227
      %s230 = sadd.s32 %s229, 1
      %p233 = scmp.eq.s32.totalorder %s24, 1
      %p234 = scmp.ne.s32.totalorder %s229, %s231
      %p235 = scmp.eq.s32.totalorder %s24, 0
      %p236 = por %p234, %p235
      %p237 = scmp.ne.s32.totalorder %s229, %s231
      %p238 = scmp.eq.s32.totalorder %s29, 1
      %p239 = por %p237, %p238
      %p240 = scmp.ne.s32.totalorder %s231, %s232
      %p241 = scmp.eq.s32.totalorder %s29, 0
      %p242 = por %p240, %p241
      %p243 = scmp.ne.s32.totalorder %s231, %s232
      %p244 = scmp.eq.s32.totalorder %s30, 1
      %p245 = por %p243, %p244
      %p247 = scmp.ne.s32.totalorder %s232, %s246
      %p248 = scmp.eq.s32.totalorder %s30, 0
      %p249 = por %p247, %p248
      %s250 = ssub.s32 %s31, %s43
      %s251 = ssub.s32 %s32, %s39
      %s252 = sor.u32 %s250, %s251
      %p253 = scmp.eq.s32.totalorder %s252, 0
      %s255 = sadd.s32 %s254, 1
      %s256 = scalar_select %p253, %s254, %s255
      %p259 = pneg %p253
      %p260 = scmp.eq.s32.totalorder %s24, 1
      %p261 = por %p259, %p260
      %p262 = scmp.ne.s32.totalorder %s254, %s257
      %p263 = scmp.eq.s32.totalorder %s24, 0
      %p264 = por %p262, %p263
      %p265 = scmp.ne.s32.totalorder %s254, %s257
      %p266 = scmp.eq.s32.totalorder %s29, 1
      %p267 = por %p265, %p266
      %p268 = scmp.ne.s32.totalorder %s257, %s258
      %p269 = scmp.eq.s32.totalorder %s29, 0
      %p270 = por %p268, %p269
      %p271 = scmp.ne.s32.totalorder %s257, %s258
      %p272 = scmp.eq.s32.totalorder %s30, 1
      %p273 = por %p271, %p272
      %p275 = scmp.ne.s32.totalorder %s258, %s274
      %p276 = scmp.eq.s32.totalorder %s30, 0
      %p277 = por %p275, %p276
      %p278 = scmp.le.s32.totalorder 1, %s24
      %p279 = scmp.lt.s32.totalorder %s24, 3
      %p280 = pnand %p278, %p279
      %p281 = pneg %p280
      // Predicated region
      $region9: #{tpu_custom_call.1} parent=5 // pred_check
        _
      $region10: #{tpu_custom_call.1} parent=5 // pred_check_branch
        %283 = sbr.rel (%p280) target = $region12
      $region11: #{tpu_custom_call.1} parent=5 // pred_region
        %s284 = ssub.s32 %s24, 1
        // Predicated region
        $region13: #{tpu_custom_call.1} parent=11 // pred_check
          %p285 = pneg %p137
        $region14: #{tpu_custom_call.1} parent=11 // pred_check_branch
          %287 = sbr.rel (%p285) target = $region16
        $region15: #{tpu_custom_call.1} parent=11 // pred_region
          _
        $region16: #{tpu_custom_call.1} parent=11 // pred_fallthru
          _
        // Predicated region
        $region17: #{tpu_custom_call.1} parent=11 // pred_check
          %p288 = pneg %p158
        $region18: #{tpu_custom_call.1} parent=11 // pred_check_branch
          %290 = sbr.rel (%p288) target = $region20
        $region19: #{tpu_custom_call.1} parent=11 // pred_region
          _
        $region20: #{tpu_custom_call.1} parent=11 // pred_fallthru
          _
        // Predicated region
        $region21: #{tpu_custom_call.1} parent=11 // pred_check
          %p291 = pneg %p179
        $region22: #{tpu_custom_call.1} parent=11 // pred_check_branch
          %293 = sbr.rel (%p291) target = $region24
        $region23: #{tpu_custom_call.1} parent=11 // pred_region
          _
        $region24: #{tpu_custom_call.1} parent=11 // pred_fallthru
          _
        // Predicated region
        $region25: #{tpu_custom_call.1} parent=11 // pred_check
          %p294 = pneg %p200
        $region26: #{tpu_custom_call.1} parent=11 // pred_check_branch
          %296 = sbr.rel (%p294) target = $region28
        $region27: #{tpu_custom_call.1} parent=11 // pred_region
          _
        $region28: #{tpu_custom_call.1} parent=11 // pred_fallthru
          _
        // Predicated region
        $region29: #{tpu_custom_call.1} parent=11 // pred_check
          %p297 = pneg %p221
        $region30: #{tpu_custom_call.1} parent=11 // pred_check_branch
          %299 = sbr.rel (%p297) target = $region32
        $region31: #{tpu_custom_call.1} parent=11 // pred_region
          _
        $region32: #{tpu_custom_call.1} parent=11 // pred_fallthru
          _
        // Predicated region
        $region33: #{tpu_custom_call.1} parent=11 // pred_check
          %p300 = pneg %p242
        $region34: #{tpu_custom_call.1} parent=11 // pred_check_branch
          %302 = sbr.rel (%p300) target = $region36
        $region35: #{tpu_custom_call.1} parent=11 // pred_region
          _
        $region36: #{tpu_custom_call.1} parent=11 // pred_fallthru
          _
      $region12: #{tpu_custom_call.1} parent=5 // pred_fallthru
        _
      %p303 = scmp.lt.s32.totalorder %s24, 2
      // Predicated region
      $region37: #{tpu_custom_call.1} parent=5 // pred_check
        %p304 = pneg %p303
      $region38: #{tpu_custom_call.1} parent=5 // pred_check_branch
        %306 = sbr.rel (%p304) target = $region40
      $region39: #{tpu_custom_call.1} parent=5 // pred_region
        // Predicated region
        $region41: #{tpu_custom_call.1} parent=39 // pred_check
          %p307 = pneg %p58
        $region42: #{tpu_custom_call.1} parent=39 // pred_check_branch
          %309 = sbr.rel (%p307) target = $region44
        $region43: #{tpu_custom_call.1} parent=39 // pred_region
          %s310 = sand.u32 %s48, 1
          %s311 = scalar_lea.sflag [#allocation3], %s310
          %s312 = sand.u32 %s48, 1
          %s313 = smul.addr %s312, 64
          %s314 = scalar_lea.vmem [#allocation2], %s313
          %s315 = smul.u32 2, %s32
          %s317 = ssub.s32 1024, 1024
          %318 = vsyncadd %s311, %s317
          %s319 = smul.addr %s31, 8
          %s320 = sadd.s32 %s315, %s319
          %s321 = smul.addr %s320, 128
          %s322 = scalar_lea.hbm %s0, %s321
          %s323 = sshll.u32 %s314, 4
          %s324 = int_to_ptr.vmem [resolvable:$true] %s323
          %329 = dma.hbm_to_vmem [thread:$0]  %s322, 1024, %s324, %s311, 256, 256, 16
        $region44: #{tpu_custom_call.1} parent=39 // pred_fallthru
          _
        // Predicated region
        $region45: #{tpu_custom_call.1} parent=39 // pred_check
          %p330 = pneg %p84
        $region46: #{tpu_custom_call.1} parent=39 // pred_check_branch
          %332 = sbr.rel (%p330) target = $region48
        $region47: #{tpu_custom_call.1} parent=39 // pred_region
          %s333 = sand.u32 %s24, 1
          %s334 = scalar_lea.sflag [#allocation6], %s333
          %s335 = sand.u32 %s74, 1
          %s336 = smul.addr %s335, 64
          %s337 = scalar_lea.vmem [#allocation5], %s336
          %s339 = ssub.s32 1024, 1024
          %340 = vsyncadd %s334, %s339
          %s341 = smul.addr %s31, 8
          %s342 = smul.addr %s341, 128
          %s343 = scalar_lea.hbm %s1, %s342
          %s344 = sshll.u32 %s337, 4
          %s345 = int_to_ptr.vmem [resolvable:$true] %s344
          %350 = dma.hbm_to_vmem [thread:$0]  %s343, 1024, %s345, %s334, 256, 256, 16
        $region48: #{tpu_custom_call.1} parent=39 // pred_fallthru
          _
        // Predicated region
        $region49: #{tpu_custom_call.1} parent=39 // pred_check
          %p351 = pneg %p110
        $region50: #{tpu_custom_call.1} parent=39 // pred_check_branch
          %353 = sbr.rel (%p351) target = $region52
        $region51: #{tpu_custom_call.1} parent=39 // pred_region
          %s354 = sand.u32 %s24, 1
          %s355 = scalar_lea.sflag [#allocation6], %s354
          %s356 = sand.u32 %s100, 1
          %s357 = smul.addr %s356, 64
          %s358 = scalar_lea.vmem [#allocation7], %s357
          %s360 = ssub.s32 1024, 1024
          %361 = vsyncadd %s355, %s360
          %s362 = smul.addr %s31, 8
          %s363 = smul.addr %s362, 128
          %s364 = scalar_lea.hbm %s2, %s363
          %s365 = sshll.u32 %s358, 4
          %s366 = int_to_ptr.vmem [resolvable:$true] %s365
          %371 = dma.hbm_to_vmem [thread:$0]  %s364, 1024, %s366, %s355, 256, 256, 16
        $region52: #{tpu_custom_call.1} parent=39 // pred_fallthru
          _
      $region40: #{tpu_custom_call.1} parent=5 // pred_fallthru
        _
      %p372 = scmp.le.s32.totalorder 1, %s24
      %p373 = scmp.lt.s32.totalorder %s24, 3
      %p374 = pnand %p372, %p373
      %p375 = pneg %p374
      // Predicated region
      $region53: #{tpu_custom_call.1} parent=5 // pred_check
        _
      $region54: #{tpu_custom_call.1} parent=5 // pred_check_branch
        %377 = sbr.rel (%p374) target = $region56
      $region55: #{tpu_custom_call.1} parent=5 // pred_region
        %s378 = ssub.s32 %s24, 1
        %s379 = sand.u32 %s51, 1
        %s380 = scalar_lea.sflag [#allocation3], %s379
        %s381 = sand.u32 %s51, 1
        %s382 = smul.addr %s381, 64
        %s383 = scalar_lea.vmem [#allocation2], %s382
        // Predicated region
        $region57: #{tpu_custom_call.1} parent=55 // pred_check
          %p384 = pneg %p64
        $region58: #{tpu_custom_call.1} parent=55 // pred_check_branch
          %386 = sbr.rel (%p384) target = $region60
        $region59: #{tpu_custom_call.1} parent=55 // pred_region
          %387 = dma.done %s380, 1024
        $region60: #{tpu_custom_call.1} parent=55 // pred_fallthru
          _
        %s388 = sand.u32 %s29, 1
        %s389 = scalar_lea.sflag [#allocation6], %s388
        %s390 = sand.u32 %s77, 1
        %s391 = smul.addr %s390, 64
        %s392 = scalar_lea.vmem [#allocation5], %s391
        // Predicated region
        $region61: #{tpu_custom_call.1} parent=55 // pred_check
          %p393 = pneg %p90
        $region62: #{tpu_custom_call.1} parent=55 // pred_check_branch
          %395 = sbr.rel (%p393) target = $region64
        $region63: #{tpu_custom_call.1} parent=55 // pred_region
          %396 = dma.done %s389, 1024
        $region64: #{tpu_custom_call.1} parent=55 // pred_fallthru
          _
        %s397 = sand.u32 %s29, 1
        %s398 = scalar_lea.sflag [#allocation6], %s397
        %s399 = sand.u32 %s103, 1
        %s400 = smul.addr %s399, 64
        %s401 = scalar_lea.vmem [#allocation7], %s400
        // Predicated region
        $region65: #{tpu_custom_call.1} parent=55 // pred_check
          %p402 = pneg %p116
        $region66: #{tpu_custom_call.1} parent=55 // pred_check_branch
          %404 = sbr.rel (%p402) target = $region68
        $region67: #{tpu_custom_call.1} parent=55 // pred_region
          %405 = dma.done %s398, 1024
        $region68: #{tpu_custom_call.1} parent=55 // pred_fallthru
          _
        %s406 = sand.u32 %s51, 1
        %s407 = scalar_lea.sflag [#allocation3], %s406
        %s408 = sand.u32 %s51, 1
        %s409 = smul.addr %s408, 64
        %s410 = scalar_lea.vmem [#allocation2], %s409
        %p411 = pneg %p64
        %p412 = pneg %p61
        %s413 = sand.u32 %s29, 1
        %s414 = scalar_lea.sflag [#allocation6], %s413
        %s415 = sand.u32 %s77, 1
        %s416 = smul.addr %s415, 64
        %s417 = scalar_lea.vmem [#allocation5], %s416
        %p418 = pneg %p90
        %p419 = pneg %p87
        %s420 = sand.u32 %s29, 1
        %s421 = scalar_lea.sflag [#allocation6], %s420
        %s422 = sand.u32 %s103, 1
        %s423 = smul.addr %s422, 64
        %s424 = scalar_lea.vmem [#allocation7], %s423
        %p425 = pneg %p116
        %p426 = pneg %p113
        %p427 = pneg %p137
        %p428 = pneg %p134
        %p429 = pneg %p158
        %p430 = pneg %p155
        %p431 = pneg %p179
        %p432 = pneg %p176
        %p433 = pneg %p200
        %p434 = pneg %p197
        %p435 = pneg %p221
        %p436 = pneg %p218
        %p437 = pneg %p242
        %p438 = pneg %p239
        %p439 = pneg %p270
        %p440 = pneg %p267
        %s441 = sand.u32 %s257, 1
        %s442 = scalar_lea.sflag [#allocation4], %s441
        %s443 = sand.u32 %s257, 1
        %s444 = smul.addr %s443, 64
        %s445 = scalar_lea.vmem [#allocation8], %s444
        %s446 = smul.u32 2, %s34
        %s447 = smul.u32 2, %s34
        %v449 = vld [vmem:[%s383] sm:$0xff]
        %v450 = vld [vmem:[%s383 + $0x8] sm:$0xff]
        %v451 = vld [vmem:[%s383 + $0x10] sm:$0xff]
        %v452 = vld [vmem:[%s383 + $0x18] sm:$0xff]
        %v453 = vld [vmem:[%s383 + $0x20] sm:$0xff]
        %v454 = vld [vmem:[%s383 + $0x28] sm:$0xff]
        %v455 = vld [vmem:[%s383 + $0x30] sm:$0xff]
        %v456 = vld [vmem:[%s383 + $0x38] sm:$0xff]
        %v457 = vpack.c.bf16 %v451, %v449
        %v458 = vpack.c.bf16 %v452, %v450
        %v459 = vpack.c.bf16 %v455, %v453
        %v460 = vpack.c.bf16 %v456, %v454
        %v461 = vld [vmem:[%s392] sm:$0xff]
        %v462 = vld [vmem:[%s392 + $0x8] sm:$0xff]
        %v463 = vld [vmem:[%s392 + $0x10] sm:$0xff]
        %v464 = vld [vmem:[%s392 + $0x18] sm:$0xff]
        %v465 = vld [vmem:[%s392 + $0x20] sm:$0xff]
        %v466 = vld [vmem:[%s392 + $0x28] sm:$0xff]
        %v467 = vld [vmem:[%s392 + $0x30] sm:$0xff]
        %v468 = vld [vmem:[%s392 + $0x38] sm:$0xff]
        %v469 = vpack.c.bf16 %v463, %v461
        %v470 = vpack.c.bf16 %v464, %v462
        %v471 = vpack.c.bf16 %v467, %v465
        %v472 = vpack.c.bf16 %v468, %v466
        %v473 = vld [vmem:[%s401] sm:$0xff]
        %v474 = vld [vmem:[%s401 + $0x8] sm:$0xff]
        %v475 = vld [vmem:[%s401 + $0x10] sm:$0xff]
        %v476 = vld [vmem:[%s401 + $0x18] sm:$0xff]
        %v477 = vld [vmem:[%s401 + $0x20] sm:$0xff]
        %v478 = vld [vmem:[%s401 + $0x28] sm:$0xff]
        %v479 = vld [vmem:[%s401 + $0x30] sm:$0xff]
        %v480 = vld [vmem:[%s401 + $0x38] sm:$0xff]
        %v481 = vpack.c.bf16 %v475, %v473
        %v482 = vpack.c.bf16 %v476, %v474
        %v483 = vpack.c.bf16 %v479, %v477
        %v484 = vpack.c.bf16 %v480, %v478
        %v485 = vld [vmem:[%s3] sm:$0xf]
        %v486 = vld [vmem:[%s3 + $0x4] sm:$0xf]
        %v487 = vld [vmem:[%s3 + $0x8] sm:$0xf]
        %v488 = vld [vmem:[%s3 + $0xc] sm:$0xf]
        %v493 = vunpack.c.l.b16 %v485
        %v494 = vunpack.c.l.b16 %v486
        %v495 = vunpack.c.l.b16 %v487
        %v496 = vunpack.c.l.b16 %v488
        %v497 = vpack.c.b16 %v494, %v493
        %v498 = vpack.c.b16 %v496, %v495
        %vm499 = vcmask 261120
        %v501 = vsel %vm499, %v497, 0
        %v504 = vsel %vm499, %v498, 0
        %506 = vmatprep.subr.bf16.mxu0 %v458
        %507 = vmatpush1.bf16.msra.mxu0 %v457
        %508 = vmatprep.subr.bf16.mxu0 %v460
        %509 = vmatpush1.bf16.msra.mxu0 %v459
        %510 = vmatprep.subr.bf16.mxu0 0
        %511 = vmatpush1.bf16.msra.mxu0 0
        %512 = vmatprep.subr.bf16.mxu0 0
        %513 = vmatpush1.bf16.msra.mxu0 0
        %514 = vmatprep.subr.bf16.mxu0 0
        %515 = vmatpush1.bf16.msra.mxu0 0
        %516 = vmatprep.subr.bf16.mxu0 0
        %517 = vmatpush1.bf16.msra.mxu0 0
        %518 = vmatprep.subr.bf16.mxu0 0
        %519 = vmatpush1.bf16.msra.mxu0 0
        %520 = vmatprep.subr.bf16.mxu0 0
        %521 = vmatpush1.bf16.msra.mxu0 0
        %522 = vmatprep.subr.bf16.mxu0 0
        %523 = vmatpush1.bf16.msra.mxu0 0
        %524 = vmatprep.subr.bf16.mxu0 0
        %525 = vmatpush1.bf16.msra.mxu0 0
        %526 = vmatprep.subr.bf16.mxu0 0
        %527 = vmatpush1.bf16.msra.mxu0 0
        %528 = vmatprep.subr.bf16.mxu0 0
        %529 = vmatpush1.bf16.msra.mxu0 0
        %530 = vmatprep.subr.bf16.mxu0 0
        %531 = vmatpush1.bf16.msra.mxu0 0
        %532 = vmatprep.subr.bf16.mxu0 0
        %533 = vmatpush1.bf16.msra.mxu0 0
        %534 = vmatprep.subr.bf16.mxu0 0
        %535 = vmatpush1.bf16.msra.mxu0 0
        %536 = vmatprep.subr.bf16.mxu0 0
        %537 = vmatpush1.bf16.msra.mxu0 0
        %538 = vmatprep.mubr.bf16.mxu0 0
        %539 = vmatmul.mubr.bf16.gmra.mrb[0].mxu0 %v501
        %v540 = vpop.f32.mrb[0].mxu0
        %v541 = vadd.f32 0.0, %v540
        %v542 = vpop.f32.mrb[0].mxu0
        %v543 = vadd.f32 0.0, %v542
        %v544 = vpop.f32.mrb[0].mxu0
        %v545 = vadd.f32 0.0, %v544
        %v546 = vpop.f32.mrb[0].mxu0
        %v547 = vadd.f32 0.0, %v546
        %548 = vmatprep.mubr.bf16.mxu0 0
        %549 = vmatmul.mubr.bf16.gmra.mrb[0].mxu0 %v504
        %v550 = vpop.f32.mrb[0].mxu0
        %v551 = vadd.f32 0.0, %v550
        %v552 = vpop.f32.mrb[0].mxu0
        %v553 = vadd.f32 0.0, %v552
        %v554 = vpop.f32.mrb[0].mxu0
        %v555 = vadd.f32 0.0, %v554
        %v556 = vpop.f32.mrb[0].mxu0
        %v557 = vadd.f32 0.0, %v556
        %558 = vdwg.mxu0
        %v559 = vld [vmem:[%s4] sm:$0xf]
        %v560 = vld [vmem:[%s4 + $0x4] sm:$0xf]
        %v561 = vld [vmem:[%s4 + $0x8] sm:$0xf]
        %v562 = vld [vmem:[%s4 + $0xc] sm:$0xf]
        %v567 = vunpack.c.l.b16 %v559
        %v568 = vunpack.c.l.b16 %v560
        %v569 = vunpack.c.l.b16 %v561
        %v570 = vunpack.c.l.b16 %v562
        %v571 = vpack.c.b16 %v568, %v567
        %v572 = vpack.c.b16 %v570, %v569
        %v574 = vsel %vm499, %v571, 0
        %v577 = vsel %vm499, %v572, 0
        %579 = vmatprep.subr.bf16.mxu0 %v470
        %580 = vmatpush1.bf16.msra.mxu0 %v469
        %581 = vmatprep.subr.bf16.mxu0 %v472
        %582 = vmatpush1.bf16.msra.mxu0 %v471
        %583 = vmatprep.subr.bf16.mxu0 0
        %584 = vmatpush1.bf16.msra.mxu0 0
        %585 = vmatprep.subr.bf16.mxu0 0
        %586 = vmatpush1.bf16.msra.mxu0 0
        %587 = vmatprep.subr.bf16.mxu0 0
        %588 = vmatpush1.bf16.msra.mxu0 0
        %589 = vmatprep.subr.bf16.mxu0 0
        %590 = vmatpush1.bf16.msra.mxu0 0
        %591 = vmatprep.subr.bf16.mxu0 0
        %592 = vmatpush1.bf16.msra.mxu0 0
        %593 = vmatprep.subr.bf16.mxu0 0
        %594 = vmatpush1.bf16.msra.mxu0 0
        %595 = vmatprep.subr.bf16.mxu0 0
        %596 = vmatpush1.bf16.msra.mxu0 0
        %597 = vmatprep.subr.bf16.mxu0 0
        %598 = vmatpush1.bf16.msra.mxu0 0
        %599 = vmatprep.subr.bf16.mxu0 0
        %600 = vmatpush1.bf16.msra.mxu0 0
        %601 = vmatprep.subr.bf16.mxu0 0
        %602 = vmatpush1.bf16.msra.mxu0 0
        %603 = vmatprep.subr.bf16.mxu0 0
        %604 = vmatpush1.bf16.msra.mxu0 0
        %605 = vmatprep.subr.bf16.mxu0 0
        %606 = vmatpush1.bf16.msra.mxu0 0
        %607 = vmatprep.subr.bf16.mxu0 0
        %608 = vmatpush1.bf16.msra.mxu0 0
        %609 = vmatprep.subr.bf16.mxu0 0
        %610 = vmatpush1.bf16.msra.mxu0 0
        %611 = vmatprep.mubr.bf16.mxu0 0
        %612 = vmatmul.mubr.bf16.gmra.mrb[0].mxu0 %v574
        %v613 = vpop.f32.mrb[0].mxu0
        %v614 = vadd.f32 0.0, %v613
        %v615 = vpop.f32.mrb[0].mxu0
        %v616 = vadd.f32 0.0, %v615
        %v617 = vpop.f32.mrb[0].mxu0
        %v618 = vadd.f32 0.0, %v617
        %v619 = vpop.f32.mrb[0].mxu0
        %v620 = vadd.f32 0.0, %v619
        %621 = vmatprep.mubr.bf16.mxu0 0
        %622 = vmatmul.mubr.bf16.gmra.mrb[0].mxu0 %v577
        %v623 = vpop.f32.mrb[0].mxu0
        %v624 = vadd.f32 0.0, %v623
        %v625 = vpop.f32.mrb[0].mxu0
        %v626 = vadd.f32 0.0, %v625
        %v627 = vpop.f32.mrb[0].mxu0
        %v628 = vadd.f32 0.0, %v627
        %v629 = vpop.f32.mrb[0].mxu0
        %v630 = vadd.f32 0.0, %v629
        %631 = vdwg.mxu0
        %v632 = vld [vmem:[%s5] sm:$0xf]
        %v633 = vld [vmem:[%s5 + $0x4] sm:$0xf]
        %v634 = vld [vmem:[%s5 + $0x8] sm:$0xf]
        %v635 = vld [vmem:[%s5 + $0xc] sm:$0xf]
        %v640 = vunpack.c.l.b16 %v632
        %v641 = vunpack.c.l.b16 %v633
        %v642 = vunpack.c.l.b16 %v634
        %v643 = vunpack.c.l.b16 %v635
        %v644 = vpack.c.b16 %v641, %v640
        %v645 = vpack.c.b16 %v643, %v642
        %v647 = vsel %vm499, %v644, 0
        %v650 = vsel %vm499, %v645, 0
        %652 = vmatprep.subr.bf16.mxu0 %v482
        %653 = vmatpush1.bf16.msra.mxu0 %v481
        %654 = vmatprep.subr.bf16.mxu0 %v484
        %655 = vmatpush1.bf16.msra.mxu0 %v483
        %656 = vmatprep.subr.bf16.mxu0 0
        %657 = vmatpush1.bf16.msra.mxu0 0
        %658 = vmatprep.subr.bf16.mxu0 0
        %659 = vmatpush1.bf16.msra.mxu0 0
        %660 = vmatprep.subr.bf16.mxu0 0
        %661 = vmatpush1.bf16.msra.mxu0 0
        %662 = vmatprep.subr.bf16.mxu0 0
        %663 = vmatpush1.bf16.msra.mxu0 0
        %664 = vmatprep.subr.bf16.mxu0 0
        %665 = vmatpush1.bf16.msra.mxu0 0
        %666 = vmatprep.subr.bf16.mxu0 0
        %667 = vmatpush1.bf16.msra.mxu0 0
        %668 = vmatprep.subr.bf16.mxu0 0
        %669 = vmatpush1.bf16.msra.mxu0 0
        %670 = vmatprep.subr.bf16.mxu0 0
        %671 = vmatpush1.bf16.msra.mxu0 0
        %672 = vmatprep.subr.bf16.mxu0 0
        %673 = vmatpush1.bf16.msra.mxu0 0
        %674 = vmatprep.subr.bf16.mxu0 0
        %675 = vmatpush1.bf16.msra.mxu0 0
        %676 = vmatprep.subr.bf16.mxu0 0
        %677 = vmatpush1.bf16.msra.mxu0 0
        %678 = vmatprep.subr.bf16.mxu0 0
        %679 = vmatpush1.bf16.msra.mxu0 0
        %680 = vmatprep.subr.bf16.mxu0 0
        %681 = vmatpush1.bf16.msra.mxu0 0
        %682 = vmatprep.subr.bf16.mxu0 0
        %683 = vmatpush1.bf16.msra.mxu0 0
        %684 = vmatprep.mubr.bf16.mxu0 0
        %685 = vmatmul.mubr.bf16.gmra.mrb[0].mxu0 %v647
        %v686 = vpop.f32.mrb[0].mxu0
        %v687 = vadd.f32 0.0, %v686
        %v688 = vpop.f32.mrb[0].mxu0
        %v689 = vadd.f32 0.0, %v688
        %v690 = vpop.f32.mrb[0].mxu0
        %v691 = vadd.f32 0.0, %v690
        %v692 = vpop.f32.mrb[0].mxu0
        %v693 = vadd.f32 0.0, %v692
        %694 = vmatprep.mubr.bf16.mxu0 0
        %695 = vmatmul.mubr.bf16.gmra.mrb[0].mxu0 %v650
        %v696 = vpop.f32.mrb[0].mxu0
        %v697 = vadd.f32 0.0, %v696
        %v698 = vpop.f32.mrb[0].mxu0
        %v699 = vadd.f32 0.0, %v698
        %v700 = vpop.f32.mrb[0].mxu0
        %v701 = vadd.f32 0.0, %v700
        %v702 = vpop.f32.mrb[0].mxu0
        %v703 = vadd.f32 0.0, %v702
        %704 = vdwg.mxu0
        %v705 = vpack.c.bf16 %v691, %v687
        %v706 = vpack.c.bf16 %v693, %v689
        %v707 = vpack.c.bf16 %v701, %v697
        %v708 = vpack.c.bf16 %v703, %v699
        %v709 = vpack.c.bf16 %v541, %v541
        %v710 = vpack.c.bf16 %v543, %v543
        %v711 = vpack.c.bf16 %v614, %v614
        %v712 = vpack.c.bf16 %v616, %v616
        %713 = vxpose.xlu0.c.b16.start [1/8] %v711, 128
        %714 = vxpose.xlu0.c.b16.cont [2/8] 0, 128
        %715 = vxpose.xlu0.c.b16.cont [3/8] 0, 128
        %716 = vxpose.xlu0.c.b16.cont [4/8] 0, 128
        %717 = vxpose.xlu0.c.b16.cont [5/8] 0, 128
        %718 = vxpose.xlu0.c.b16.cont [6/8] 0, 128
        %719 = vxpose.xlu0.c.b16.cont [7/8] 0, 128
        %720 = vxpose.xlu0.c.b16.end [8/8] 0, 128
        %v721 = vpop.trf.xlu0
        %v722 = vpop.trf.xlu0
        %v723 = vpop.trf.xlu0
        %v724 = vpop.trf.xlu0
        %v725 = vpop.trf.xlu0
        %v726 = vpop.trf.xlu0
        %v727 = vpop.trf.xlu0
        %v728 = vpop.trf.xlu0
        %729 = vxpose.xlu0.c.b16.start [1/8] %v712, 128
        %730 = vxpose.xlu0.c.b16.cont [2/8] 0, 128
        %731 = vxpose.xlu0.c.b16.cont [3/8] 0, 128
        %732 = vxpose.xlu0.c.b16.cont [4/8] 0, 128
        %733 = vxpose.xlu0.c.b16.cont [5/8] 0, 128
        %734 = vxpose.xlu0.c.b16.cont [6/8] 0, 128
        %735 = vxpose.xlu0.c.b16.cont [7/8] 0, 128
        %736 = vxpose.xlu0.c.b16.end [8/8] 0, 128
        %v737 = vpop.trf.xlu0
        %v738 = vpop.trf.xlu0
        %v739 = vpop.trf.xlu0
        %v740 = vpop.trf.xlu0
        %v741 = vpop.trf.xlu0
        %v742 = vpop.trf.xlu0
        %v743 = vpop.trf.xlu0
        %v744 = vpop.trf.xlu0
        %vm745 = vcmask 64512
        %v747 = vsel %vm745, %v721, 0
        %v750 = vsel %vm745, %v722, 0
        %v753 = vsel %vm745, %v723, 0
        %v756 = vsel %vm745, %v724, 0
        %v759 = vsel %vm745, %v725, 0
        %v762 = vsel %vm745, %v726, 0
        %v765 = vsel %vm745, %v727, 0
        %v768 = vsel %vm745, %v728, 0
        %v771 = vsel %vm745, %v737, 0
        %v774 = vsel %vm745, %v738, 0
        %v777 = vsel %vm745, %v739, 0
        %v780 = vsel %vm745, %v740, 0
        %v783 = vsel %vm745, %v741, 0
        %v786 = vsel %vm745, %v742, 0
        %v789 = vsel %vm745, %v743, 0
        %v792 = vsel %vm745, %v744, 0
        %vm794 = vcmask 1043456
        %v796 = vsel %vm794, %v709, 0
        %v799 = vsel %vm794, %v710, 0
        %801 = vmatprep.subr.bf16.mxu0 %v799
        %802 = vmatpush1.bf16.msra.mxu0 %v796
        %803 = vmatprep.subr.bf16.mxu0 0
        %804 = vmatpush1.bf16.msra.mxu0 0
        %805 = vmatprep.subr.bf16.mxu0 0
        %806 = vmatpush1.bf16.msra.mxu0 0
        %807 = vmatprep.subr.bf16.mxu0 0
        %808 = vmatpush1.bf16.msra.mxu0 0
        %809 = vmatprep.subr.bf16.mxu0 0
        %810 = vmatpush1.bf16.msra.mxu0 0
        %811 = vmatprep.subr.bf16.mxu0 0
        %812 = vmatpush1.bf16.msra.mxu0 0
        %813 = vmatprep.subr.bf16.mxu0 0
        %814 = vmatpush1.bf16.msra.mxu0 0
        %815 = vmatprep.subr.bf16.mxu0 0
        %816 = vmatpush1.bf16.msra.mxu0 0
        %817 = vmatprep.subr.bf16.mxu0 0
        %818 = vmatpush1.bf16.msra.mxu0 0
        %819 = vmatprep.subr.bf16.mxu0 0
        %820 = vmatpush1.bf16.msra.mxu0 0
        %821 = vmatprep.subr.bf16.mxu0 0
        %822 = vmatpush1.bf16.msra.mxu0 0
        %823 = vmatprep.subr.bf16.mxu0 0
        %824 = vmatpush1.bf16.msra.mxu0 0
        %825 = vmatprep.subr.bf16.mxu0 0
        %826 = vmatpush1.bf16.msra.mxu0 0
        %827 = vmatprep.subr.bf16.mxu0 0
        %828 = vmatpush1.bf16.msra.mxu0 0
        %829 = vmatprep.subr.bf16.mxu0 0
        %830 = vmatpush1.bf16.msra.mxu0 0
        %831 = vmatprep.subr.bf16.mxu0 0
        %832 = vmatpush1.bf16.msra.mxu0 0
        %833 = vmatprep.mubr.bf16.mxu0 0
        %834 = vmatmul.mubr.bf16.gmra.mrb[0].mxu0 %v747
        %v835 = vpop.f32.mrb[0].mxu0
        %v836 = vadd.f32 0.0, %v835
        %v837 = vpop.f32.mrb[0].mxu0
        %v838 = vadd.f32 0.0, %v837
        %v839 = vpop.f32.mrb[0].mxu0
        %v840 = vadd.f32 0.0, %v839
        %v841 = vpop.f32.mrb[0].mxu0
        %v842 = vadd.f32 0.0, %v841
        %843 = vmatprep.mubr.bf16.mxu0 0
        %844 = vmatmul.mubr.bf16.gmra.mrb[0].mxu0 %v750
        %v845 = vpop.f32.mrb[0].mxu0
        %v846 = vadd.f32 0.0, %v845
        %v847 = vpop.f32.mrb[0].mxu0
        %v848 = vadd.f32 0.0, %v847
        %v849 = vpop.f32.mrb[0].mxu0
        %v850 = vadd.f32 0.0, %v849
        %v851 = vpop.f32.mrb[0].mxu0
        %v852 = vadd.f32 0.0, %v851
        %853 = vmatprep.mubr.bf16.mxu0 0
        %854 = vmatmul.mubr.bf16.gmra.mrb[0].mxu0 %v753
        %v855 = vpop.f32.mrb[0].mxu0
        %v856 = vadd.f32 0.0, %v855
        %v857 = vpop.f32.mrb[0].mxu0
        %v858 = vadd.f32 0.0, %v857
        %v859 = vpop.f32.mrb[0].mxu0
        %v860 = vadd.f32 0.0, %v859
        %v861 = vpop.f32.mrb[0].mxu0
        %v862 = vadd.f32 0.0, %v861
        %863 = vmatprep.mubr.bf16.mxu0 0
        %864 = vmatmul.mubr.bf16.gmra.mrb[0].mxu0 %v756
        %v865 = vpop.f32.mrb[0].mxu0
        %v866 = vadd.f32 0.0, %v865
        %v867 = vpop.f32.mrb[0].mxu0
        %v868 = vadd.f32 0.0, %v867
        %v869 = vpop.f32.mrb[0].mxu0
        %v870 = vadd.f32 0.0, %v869
        %v871 = vpop.f32.mrb[0].mxu0
        %v872 = vadd.f32 0.0, %v871
        %873 = vmatprep.mubr.bf16.mxu0 0
        %874 = vmatmul.mubr.bf16.gmra.mrb[0].mxu0 %v759
        %v875 = vpop.f32.mrb[0].mxu0
        %v876 = vadd.f32 0.0, %v875
        %v877 = vpop.f32.mrb[0].mxu0
        %v878 = vadd.f32 0.0, %v877
        %v879 = vpop.f32.mrb[0].mxu0
        %v880 = vadd.f32 0.0, %v879
        %v881 = vpop.f32.mrb[0].mxu0
        %v882 = vadd.f32 0.0, %v881
        %883 = vmatprep.mubr.bf16.mxu0 0
        %884 = vmatmul.mubr.bf16.gmra.mrb[0].mxu0 %v762
        %v885 = vpop.f32.mrb[0].mxu0
        %v886 = vadd.f32 0.0, %v885
        %v887 = vpop.f32.mrb[0].mxu0
        %v888 = vadd.f32 0.0, %v887
        %v889 = vpop.f32.mrb[0].mxu0
        %v890 = vadd.f32 0.0, %v889
        %v891 = vpop.f32.mrb[0].mxu0
        %v892 = vadd.f32 0.0, %v891
        %893 = vmatprep.mubr.bf16.mxu0 0
        %894 = vmatmul.mubr.bf16.gmra.mrb[0].mxu0 %v765
        %v895 = vpop.f32.mrb[0].mxu0
        %v896 = vadd.f32 0.0, %v895
        %v897 = vpop.f32.mrb[0].mxu0
        %v898 = vadd.f32 0.0, %v897
        %v899 = vpop.f32.mrb[0].mxu0
        %v900 = vadd.f32 0.0, %v899
        %v901 = vpop.f32.mrb[0].mxu0
        %v902 = vadd.f32 0.0, %v901
        %903 = vmatprep.mubr.bf16.mxu0 0
        %904 = vmatmul.mubr.bf16.gmra.mrb[0].mxu0 %v768
        %v905 = vpop.f32.mrb[0].mxu0
        %v906 = vadd.f32 0.0, %v905
        %v907 = vpop.f32.mrb[0].mxu0
        %v908 = vadd.f32 0.0, %v907
        %v909 = vpop.f32.mrb[0].mxu0
        %v910 = vadd.f32 0.0, %v909
        %v911 = vpop.f32.mrb[0].mxu0
        %v912 = vadd.f32 0.0, %v911
        %913 = vmatprep.mubr.bf16.mxu0 0
        %914 = vmatmul.mubr.bf16.gmra.mrb[0].mxu0 %v771
        %v915 = vpop.f32.mrb[0].mxu0
        %v916 = vadd.f32 0.0, %v915
        %v917 = vpop.f32.mrb[0].mxu0
        %v918 = vadd.f32 0.0, %v917
        %v919 = vpop.f32.mrb[0].mxu0
        %v920 = vadd.f32 0.0, %v919
        %v921 = vpop.f32.mrb[0].mxu0
        %v922 = vadd.f32 0.0, %v921
        %923 = vmatprep.mubr.bf16.mxu0 0
        %924 = vmatmul.mubr.bf16.gmra.mrb[0].mxu0 %v774
        %v925 = vpop.f32.mrb[0].mxu0
        %v926 = vadd.f32 0.0, %v925
        %v927 = vpop.f32.mrb[0].mxu0
        %v928 = vadd.f32 0.0, %v927
        %v929 = vpop.f32.mrb[0].mxu0
        %v930 = vadd.f32 0.0, %v929
        %v931 = vpop.f32.mrb[0].mxu0
        %v932 = vadd.f32 0.0, %v931
        %933 = vmatprep.mubr.bf16.mxu0 0
        %934 = vmatmul.mubr.bf16.gmra.mrb[0].mxu0 %v777
        %v935 = vpop.f32.mrb[0].mxu0
        %v936 = vadd.f32 0.0, %v935
        %v937 = vpop.f32.mrb[0].mxu0
        %v938 = vadd.f32 0.0, %v937
        %v939 = vpop.f32.mrb[0].mxu0
        %v940 = vadd.f32 0.0, %v939
        %v941 = vpop.f32.mrb[0].mxu0
        %v942 = vadd.f32 0.0, %v941
        %943 = vmatprep.mubr.bf16.mxu0 0
        %944 = vmatmul.mubr.bf16.gmra.mrb[0].mxu0 %v780
        %v945 = vpop.f32.mrb[0].mxu0
        %v946 = vadd.f32 0.0, %v945
        %v947 = vpop.f32.mrb[0].mxu0
        %v948 = vadd.f32 0.0, %v947
        %v949 = vpop.f32.mrb[0].mxu0
        %v950 = vadd.f32 0.0, %v949
        %v951 = vpop.f32.mrb[0].mxu0
        %v952 = vadd.f32 0.0, %v951
        %953 = vmatprep.mubr.bf16.mxu0 0
        %954 = vmatmul.mubr.bf16.gmra.mrb[0].mxu0 %v783
        %v955 = vpop.f32.mrb[0].mxu0
        %v956 = vadd.f32 0.0, %v955
        %v957 = vpop.f32.mrb[0].mxu0
        %v958 = vadd.f32 0.0, %v957
        %v959 = vpop.f32.mrb[0].mxu0
        %v960 = vadd.f32 0.0, %v959
        %v961 = vpop.f32.mrb[0].mxu0
        %v962 = vadd.f32 0.0, %v961
        %963 = vmatprep.mubr.bf16.mxu0 0
        %964 = vmatmul.mubr.bf16.gmra.mrb[0].mxu0 %v786
        %v965 = vpop.f32.mrb[0].mxu0
        %v966 = vadd.f32 0.0, %v965
        %v967 = vpop.f32.mrb[0].mxu0
        %v968 = vadd.f32 0.0, %v967
        %v969 = vpop.f32.mrb[0].mxu0
        %v970 = vadd.f32 0.0, %v969
        %v971 = vpop.f32.mrb[0].mxu0
        %v972 = vadd.f32 0.0, %v971
        %973 = vmatprep.mubr.bf16.mxu0 0
        %974 = vmatmul.mubr.bf16.gmra.mrb[0].mxu0 %v789
        %v975 = vpop.f32.mrb[0].mxu0
        %v976 = vadd.f32 0.0, %v975
        %v977 = vpop.f32.mrb[0].mxu0
        %v978 = vadd.f32 0.0, %v977
        %v979 = vpop.f32.mrb[0].mxu0
        %v980 = vadd.f32 0.0, %v979
        %v981 = vpop.f32.mrb[0].mxu0
        %v982 = vadd.f32 0.0, %v981
        %983 = vmatprep.mubr.bf16.mxu0 0
        %984 = vmatmul.mubr.bf16.gmra.mrb[0].mxu0 %v792
        %v985 = vpop.f32.mrb[0].mxu0
        %v986 = vadd.f32 0.0, %v985
        %v987 = vpop.f32.mrb[0].mxu0
        %v988 = vadd.f32 0.0, %v987
        %v989 = vpop.f32.mrb[0].mxu0
        %v990 = vadd.f32 0.0, %v989
        %v991 = vpop.f32.mrb[0].mxu0
        %v992 = vadd.f32 0.0, %v991
        %993 = vdwg.mxu0
        %v994 = vmax.f32 %v836, %v846
        %v995 = vmax.f32 %v840, %v850
        %v996 = vmax.f32 %v994, %v856
        %v997 = vmax.f32 %v995, %v860
        %v998 = vmax.f32 %v996, %v866
        %v999 = vmax.f32 %v997, %v870
        %v1000 = vmax.f32 %v998, %v876
        %v1001 = vmax.f32 %v999, %v880
        %v1002 = vmax.f32 %v1000, %v886
        %v1003 = vmax.f32 %v1001, %v890
        %v1004 = vmax.f32 %v1002, %v896
        %v1005 = vmax.f32 %v1003, %v900
        %v1006 = vmax.f32 %v1004, %v906
        %v1007 = vmax.f32 %v1005, %v910
        %v1008 = vmax.f32 %v1006, %v916
        %v1009 = vmax.f32 %v1007, %v920
        %v1010 = vmax.f32 %v1008, %v926
        %v1011 = vmax.f32 %v1009, %v930
        %v1012 = vmax.f32 %v1010, %v936
        %v1013 = vmax.f32 %v1011, %v940
        %v1014 = vmax.f32 %v1012, %v946
        %v1015 = vmax.f32 %v1013, %v950
        %v1016 = vmax.f32 %v1014, %v956
        %v1017 = vmax.f32 %v1015, %v960
        %v1018 = vmax.f32 %v1016, %v966
        %v1019 = vmax.f32 %v1017, %v970
        %v1020 = vmax.f32 %v1018, %v976
        %v1021 = vmax.f32 %v1019, %v980
        %v1022 = vmax.f32 %v1020, %v986
        %v1023 = vmax.f32 %v1021, %v990
        %v1024 = vmax.f32 %v1022, %v1023
        %v1025 = vrot.slane %v1024, 4
        %v1026 = vmax.f32 %v1024, %v1025
        %v1027 = vrot.slane %v1026, 2
        %v1028 = vmax.f32 %v1026, %v1027
        %v1029 = vrot.slane %v1028, 1
        %v1030 = vmax.f32 %v1028, %v1029
        %v1031 = vmax.f32 %v838, %v848
        %v1032 = vmax.f32 %v842, %v852
        %v1033 = vmax.f32 %v1031, %v858
        %v1034 = vmax.f32 %v1032, %v862
        %v1035 = vmax.f32 %v1033, %v868
        %v1036 = vmax.f32 %v1034, %v872
        %v1037 = vmax.f32 %v1035, %v878
        %v1038 = vmax.f32 %v1036, %v882
        %v1039 = vmax.f32 %v1037, %v888
        %v1040 = vmax.f32 %v1038, %v892
        %v1041 = vmax.f32 %v1039, %v898
        %v1042 = vmax.f32 %v1040, %v902
        %v1043 = vmax.f32 %v1041, %v908
        %v1044 = vmax.f32 %v1042, %v912
        %v1045 = vmax.f32 %v1043, %v918
        %v1046 = vmax.f32 %v1044, %v922
        %v1047 = vmax.f32 %v1045, %v928
        %v1048 = vmax.f32 %v1046, %v932
        %v1049 = vmax.f32 %v1047, %v938
        %v1050 = vmax.f32 %v1048, %v942
        %v1051 = vmax.f32 %v1049, %v948
        %v1052 = vmax.f32 %v1050, %v952
        %v1053 = vmax.f32 %v1051, %v958
        %v1054 = vmax.f32 %v1052, %v962
        %v1055 = vmax.f32 %v1053, %v968
        %v1056 = vmax.f32 %v1054, %v972
        %v1057 = vmax.f32 %v1055, %v978
        %v1058 = vmax.f32 %v1056, %v982
        %v1059 = vmax.f32 %v1057, %v988
        %v1060 = vmax.f32 %v1058, %v992
        %v1061 = vmax.f32 %v1059, %v1060
        %v1062 = vrot.slane %v1061, 4
        %v1063 = vmax.f32 %v1061, %v1062
        %v1064 = vrot.slane %v1063, 2
        %v1065 = vmax.f32 %v1063, %v1064
        %v1066 = vrot.slane %v1065, 1
        %v1067 = vmax.f32 %v1065, %v1066
        %v1068 = vsub.f32 %v836, %v1030
        %v1069 = vsub.f32 %v838, %v1067
        %v1070 = vsub.f32 %v840, %v1030
        %v1071 = vsub.f32 %v842, %v1067
        %v1072 = vsub.f32 %v846, %v1030
        %v1073 = vsub.f32 %v848, %v1067
        %v1074 = vsub.f32 %v850, %v1030
        %v1075 = vsub.f32 %v852, %v1067
        %v1076 = vsub.f32 %v856, %v1030
        %v1077 = vsub.f32 %v858, %v1067
        %v1078 = vsub.f32 %v860, %v1030
        %v1079 = vsub.f32 %v862, %v1067
        %v1080 = vsub.f32 %v866, %v1030
        %v1081 = vsub.f32 %v868, %v1067
        %v1082 = vsub.f32 %v870, %v1030
        %v1083 = vsub.f32 %v872, %v1067
        %v1084 = vsub.f32 %v876, %v1030
        %v1085 = vsub.f32 %v878, %v1067
        %v1086 = vsub.f32 %v880, %v1030
        %v1087 = vsub.f32 %v882, %v1067
        %v1088 = vsub.f32 %v886, %v1030
        %v1089 = vsub.f32 %v888, %v1067
        %v1090 = vsub.f32 %v890, %v1030
        %v1091 = vsub.f32 %v892, %v1067
        %v1092 = vsub.f32 %v896, %v1030
        %v1093 = vsub.f32 %v898, %v1067
        %v1094 = vsub.f32 %v900, %v1030
        %v1095 = vsub.f32 %v902, %v1067
        %v1096 = vsub.f32 %v906, %v1030
        %v1097 = vsub.f32 %v908, %v1067
        %v1098 = vsub.f32 %v910, %v1030
        %v1099 = vsub.f32 %v912, %v1067
        %v1100 = vsub.f32 %v916, %v1030
        %v1101 = vsub.f32 %v918, %v1067
        %v1102 = vsub.f32 %v920, %v1030
        %v1103 = vsub.f32 %v922, %v1067
        %v1104 = vsub.f32 %v926, %v1030
        %v1105 = vsub.f32 %v928, %v1067
        %v1106 = vsub.f32 %v930, %v1030
        %v1107 = vsub.f32 %v932, %v1067
        %v1108 = vsub.f32 %v936, %v1030
        %v1109 = vsub.f32 %v938, %v1067
        %v1110 = vsub.f32 %v940, %v1030
        %v1111 = vsub.f32 %v942, %v1067
        %v1112 = vsub.f32 %v946, %v1030
        %v1113 = vsub.f32 %v948, %v1067
        %v1114 = vsub.f32 %v950, %v1030
        %v1115 = vsub.f32 %v952, %v1067
        %v1116 = vsub.f32 %v956, %v1030
        %v1117 = vsub.f32 %v958, %v1067
        %v1118 = vsub.f32 %v960, %v1030
        %v1119 = vsub.f32 %v962, %v1067
        %v1120 = vsub.f32 %v966, %v1030
        %v1121 = vsub.f32 %v968, %v1067
        %v1122 = vsub.f32 %v970, %v1030
        %v1123 = vsub.f32 %v972, %v1067
        %v1124 = vsub.f32 %v976, %v1030
        %v1125 = vsub.f32 %v978, %v1067
        %v1126 = vsub.f32 %v980, %v1030
        %v1127 = vsub.f32 %v982, %v1067
        %v1128 = vsub.f32 %v986, %v1030
        %v1129 = vsub.f32 %v988, %v1067
        %v1130 = vsub.f32 %v990, %v1030
        %v1131 = vsub.f32 %v992, %v1067
        %v1132 = vmul.f32 %v1068, 1.442695
        %v1133 = vpow.pop %v1132
        %v1134 = vmul.f32 %v1069, 1.442695
        %v1135 = vpow.pop %v1134
        %v1136 = vmul.f32 %v1070, 1.442695
        %v1137 = vpow.pop %v1136
        %v1138 = vmul.f32 %v1071, 1.442695
        %v1139 = vpow.pop %v1138
        %v1140 = vmul.f32 %v1072, 1.442695
        %v1141 = vpow.pop %v1140
        %v1142 = vmul.f32 %v1073, 1.442695
        %v1143 = vpow.pop %v1142
        %v1144 = vmul.f32 %v1074, 1.442695
        %v1145 = vpow.pop %v1144
        %v1146 = vmul.f32 %v1075, 1.442695
        %v1147 = vpow.pop %v1146
        %v1148 = vmul.f32 %v1076, 1.442695
        %v1149 = vpow.pop %v1148
        %v1150 = vmul.f32 %v1077, 1.442695
        %v1151 = vpow.pop %v1150
        %v1152 = vmul.f32 %v1078, 1.442695
        %v1153 = vpow.pop %v1152
        %v1154 = vmul.f32 %v1079, 1.442695
        %v1155 = vpow.pop %v1154
        %v1156 = vmul.f32 %v1080, 1.442695
        %v1157 = vpow.pop %v1156
        %v1158 = vmul.f32 %v1081, 1.442695
        %v1159 = vpow.pop %v1158
        %v1160 = vmul.f32 %v1082, 1.442695
        %v1161 = vpow.pop %v1160
        %v1162 = vmul.f32 %v1083, 1.442695
        %v1163 = vpow.pop %v1162
        %v1164 = vmul.f32 %v1084, 1.442695
        %v1165 = vpow.pop %v1164
        %v1166 = vmul.f32 %v1085, 1.442695
        %v1167 = vpow.pop %v1166
        %v1168 = vmul.f32 %v1086, 1.442695
        %v1169 = vpow.pop %v1168
        %v1170 = vmul.f32 %v1087, 1.442695
        %v1171 = vpow.pop %v1170
        %v1172 = vmul.f32 %v1088, 1.442695
        %v1173 = vpow.pop %v1172
        %v1174 = vmul.f32 %v1089, 1.442695
        %v1175 = vpow.pop %v1174
        %v1176 = vmul.f32 %v1090, 1.442695
        %v1177 = vpow.pop %v1176
        %v1178 = vmul.f32 %v1091, 1.442695
        %v1179 = vpow.pop %v1178
        %v1180 = vmul.f32 %v1092, 1.442695
        %v1181 = vpow.pop %v1180
        %v1182 = vmul.f32 %v1093, 1.442695
        %v1183 = vpow.pop %v1182
        %v1184 = vmul.f32 %v1094, 1.442695
        %v1185 = vpow.pop %v1184
        %v1186 = vmul.f32 %v1095, 1.442695
        %v1187 = vpow.pop %v1186
        %v1188 = vmul.f32 %v1096, 1.442695
        %v1189 = vpow.pop %v1188
        %v1190 = vmul.f32 %v1097, 1.442695
        %v1191 = vpow.pop %v1190
        %v1192 = vmul.f32 %v1098, 1.442695
        %v1193 = vpow.pop %v1192
        %v1194 = vmul.f32 %v1099, 1.442695
        %v1195 = vpow.pop %v1194
        %v1196 = vmul.f32 %v1100, 1.442695
        %v1197 = vpow.pop %v1196
        %v1198 = vmul.f32 %v1101, 1.442695
        %v1199 = vpow.pop %v1198
        %v1200 = vmul.f32 %v1102, 1.442695
        %v1201 = vpow.pop %v1200
        %v1202 = vmul.f32 %v1103, 1.442695
        %v1203 = vpow.pop %v1202
        %v1204 = vmul.f32 %v1104, 1.442695
        %v1205 = vpow.pop %v1204
        %v1206 = vmul.f32 %v1105, 1.442695
        %v1207 = vpow.pop %v1206
        %v1208 = vmul.f32 %v1106, 1.442695
        %v1209 = vpow.pop %v1208
        %v1210 = vmul.f32 %v1107, 1.442695
        %v1211 = vpow.pop %v1210
        %v1212 = vmul.f32 %v1108, 1.442695
        %v1213 = vpow.pop %v1212
        %v1214 = vmul.f32 %v1109, 1.442695
        %v1215 = vpow.pop %v1214
        %v1216 = vmul.f32 %v1110, 1.442695
        %v1217 = vpow.pop %v1216
        %v1218 = vmul.f32 %v1111, 1.442695
        %v1219 = vpow.pop %v1218
        %v1220 = vmul.f32 %v1112, 1.442695
        %v1221 = vpow.pop %v1220
        %v1222 = vmul.f32 %v1113, 1.442695
        %v1223 = vpow.pop %v1222
        %v1224 = vmul.f32 %v1114, 1.442695
        %v1225 = vpow.pop %v1224
        %v1226 = vmul.f32 %v1115, 1.442695
        %v1227 = vpow.pop %v1226
        %v1228 = vmul.f32 %v1116, 1.442695
        %v1229 = vpow.pop %v1228
        %v1230 = vmul.f32 %v1117, 1.442695
        %v1231 = vpow.pop %v1230
        %v1232 = vmul.f32 %v1118, 1.442695
        %v1233 = vpow.pop %v1232
        %v1234 = vmul.f32 %v1119, 1.442695
        %v1235 = vpow.pop %v1234
        %v1236 = vmul.f32 %v1120, 1.442695
        %v1237 = vpow.pop %v1236
        %v1238 = vmul.f32 %v1121, 1.442695
        %v1239 = vpow.pop %v1238
        %v1240 = vmul.f32 %v1122, 1.442695
        %v1241 = vpow.pop %v1240
        %v1242 = vmul.f32 %v1123, 1.442695
        %v1243 = vpow.pop %v1242
        %v1244 = vmul.f32 %v1124, 1.442695
        %v1245 = vpow.pop %v1244
        %v1246 = vmul.f32 %v1125, 1.442695
        %v1247 = vpow.pop %v1246
        %v1248 = vmul.f32 %v1126, 1.442695
        %v1249 = vpow.pop %v1248
        %v1250 = vmul.f32 %v1127, 1.442695
        %v1251 = vpow.pop %v1250
        %v1252 = vmul.f32 %v1128, 1.442695
        %v1253 = vpow.pop %v1252
        %v1254 = vmul.f32 %v1129, 1.442695
        %v1255 = vpow.pop %v1254
        %v1256 = vmul.f32 %v1130, 1.442695
        %v1257 = vpow.pop %v1256
        %v1258 = vmul.f32 %v1131, 1.442695
        %v1259 = vpow.pop %v1258
        %v1260 = vadd.f32 %v1133, %v1137
        %v1261 = vadd.f32 %v1260, %v1141
        %v1262 = vadd.f32 %v1261, %v1145
        %v1263 = vadd.f32 %v1262, %v1149
        %v1264 = vadd.f32 %v1263, %v1153
        %v1265 = vadd.f32 %v1264, %v1157
        %v1266 = vadd.f32 %v1265, %v1161
        %v1267 = vadd.f32 %v1266, %v1165
        %v1268 = vadd.f32 %v1267, %v1169
        %v1269 = vadd.f32 %v1268, %v1173
        %v1270 = vadd.f32 %v1269, %v1177
        %v1271 = vadd.f32 %v1270, %v1181
        %v1272 = vadd.f32 %v1271, %v1185
        %v1273 = vadd.f32 %v1272, %v1189
        %v1274 = vadd.f32 %v1273, %v1193
        %v1275 = vadd.f32 %v1274, %v1197
        %v1276 = vadd.f32 %v1275, %v1201
        %v1277 = vadd.f32 %v1276, %v1205
        %v1278 = vadd.f32 %v1277, %v1209
        %v1279 = vadd.f32 %v1278, %v1213
        %v1280 = vadd.f32 %v1279, %v1217
        %v1281 = vadd.f32 %v1280, %v1221
        %v1282 = vadd.f32 %v1281, %v1225
        %v1283 = vadd.f32 %v1282, %v1229
        %v1284 = vadd.f32 %v1283, %v1233
        %v1285 = vadd.f32 %v1284, %v1237
        %v1286 = vadd.f32 %v1285, %v1241
        %v1287 = vadd.f32 %v1286, %v1245
        %v1288 = vadd.f32 %v1287, %v1249
        %v1289 = vadd.f32 %v1288, %v1253
        %v1290 = vadd.f32 %v1289, %v1257
        %v1291 = vrot.slane %v1290, 4
        %v1292 = vadd.f32 %v1290, %v1291
        %v1293 = vrot.slane %v1292, 2
        %v1294 = vadd.f32 %v1292, %v1293
        %v1295 = vrot.slane %v1294, 1
        %v1296 = vadd.f32 %v1294, %v1295
        %v1297 = vadd.f32 %v1135, %v1139
        %v1298 = vadd.f32 %v1297, %v1143
        %v1299 = vadd.f32 %v1298, %v1147
        %v1300 = vadd.f32 %v1299, %v1151
        %v1301 = vadd.f32 %v1300, %v1155
        %v1302 = vadd.f32 %v1301, %v1159
        %v1303 = vadd.f32 %v1302, %v1163
        %v1304 = vadd.f32 %v1303, %v1167
        %v1305 = vadd.f32 %v1304, %v1171
        %v1306 = vadd.f32 %v1305, %v1175
        %v1307 = vadd.f32 %v1306, %v1179
        %v1308 = vadd.f32 %v1307, %v1183
        %v1309 = vadd.f32 %v1308, %v1187
        %v1310 = vadd.f32 %v1309, %v1191
        %v1311 = vadd.f32 %v1310, %v1195
        %v1312 = vadd.f32 %v1311, %v1199
        %v1313 = vadd.f32 %v1312, %v1203
        %v1314 = vadd.f32 %v1313, %v1207
        %v1315 = vadd.f32 %v1314, %v1211
        %v1316 = vadd.f32 %v1315, %v1215
        %v1317 = vadd.f32 %v1316, %v1219
        %v1318 = vadd.f32 %v1317, %v1223
        %v1319 = vadd.f32 %v1318, %v1227
        %v1320 = vadd.f32 %v1319, %v1231
        %v1321 = vadd.f32 %v1320, %v1235
        %v1322 = vadd.f32 %v1321, %v1239
        %v1323 = vadd.f32 %v1322, %v1243
        %v1324 = vadd.f32 %v1323, %v1247
        %v1325 = vadd.f32 %v1324, %v1251
        %v1326 = vadd.f32 %v1325, %v1255
        %v1327 = vadd.f32 %v1326, %v1259
        %v1328 = vrot.slane %v1327, 4
        %v1329 = vadd.f32 %v1327, %v1328
        %v1330 = vrot.slane %v1329, 2
        %v1331 = vadd.f32 %v1329, %v1330
        %v1332 = vrot.slane %v1331, 1
        %v1333 = vadd.f32 %v1331, %v1332
        %v1334 = vpack.c.bf16 %v1137, %v1133
        %v1335 = vpack.c.bf16 %v1139, %v1135
        %v1336 = vpack.c.bf16 %v1145, %v1141
        %v1337 = vpack.c.bf16 %v1147, %v1143
        %v1338 = vpack.c.bf16 %v1153, %v1149
        %v1339 = vpack.c.bf16 %v1155, %v1151
        %v1340 = vpack.c.bf16 %v1161, %v1157
        %v1341 = vpack.c.bf16 %v1163, %v1159
        %v1342 = vpack.c.bf16 %v1169, %v1165
        %v1343 = vpack.c.bf16 %v1171, %v1167
        %v1344 = vpack.c.bf16 %v1177, %v1173
        %v1345 = vpack.c.bf16 %v1179, %v1175
        %v1346 = vpack.c.bf16 %v1185, %v1181
        %v1347 = vpack.c.bf16 %v1187, %v1183
        %v1348 = vpack.c.bf16 %v1193, %v1189
        %v1349 = vpack.c.bf16 %v1195, %v1191
        %v1350 = vpack.c.bf16 %v1201, %v1197
        %v1351 = vpack.c.bf16 %v1203, %v1199
        %v1352 = vpack.c.bf16 %v1209, %v1205
        %v1353 = vpack.c.bf16 %v1211, %v1207
        %v1354 = vpack.c.bf16 %v1217, %v1213
        %v1355 = vpack.c.bf16 %v1219, %v1215
        %v1356 = vpack.c.bf16 %v1225, %v1221
        %v1357 = vpack.c.bf16 %v1227, %v1223
        %v1358 = vpack.c.bf16 %v1233, %v1229
        %v1359 = vpack.c.bf16 %v1235, %v1231
        %v1360 = vpack.c.bf16 %v1241, %v1237
        %v1361 = vpack.c.bf16 %v1243, %v1239
        %v1362 = vpack.c.bf16 %v1249, %v1245
        %v1363 = vpack.c.bf16 %v1251, %v1247
        %v1364 = vpack.c.bf16 %v1257, %v1253
        %v1365 = vpack.c.bf16 %v1259, %v1255
        %1366 = vmatprep.subr.bf16.mxu0 %v1335
        %1367 = vmatpush1.bf16.msra.mxu0 %v1334
        %1368 = vmatprep.subr.bf16.mxu0 %v1337
        %1369 = vmatpush1.bf16.msra.mxu0 %v1336
        %1370 = vmatprep.subr.bf16.mxu0 %v1339
        %1371 = vmatpush1.bf16.msra.mxu0 %v1338
        %1372 = vmatprep.subr.bf16.mxu0 %v1341
        %1373 = vmatpush1.bf16.msra.mxu0 %v1340
        %1374 = vmatprep.subr.bf16.mxu0 %v1343
        %1375 = vmatpush1.bf16.msra.mxu0 %v1342
        %1376 = vmatprep.subr.bf16.mxu0 %v1345
        %1377 = vmatpush1.bf16.msra.mxu0 %v1344
        %1378 = vmatprep.subr.bf16.mxu0 %v1347
        %1379 = vmatpush1.bf16.msra.mxu0 %v1346
        %1380 = vmatprep.subr.bf16.mxu0 %v1349
        %1381 = vmatpush1.bf16.msra.mxu0 %v1348
        %1382 = vmatprep.subr.bf16.mxu0 %v1351
        %1383 = vmatpush1.bf16.msra.mxu0 %v1350
        %1384 = vmatprep.subr.bf16.mxu0 %v1353
        %1385 = vmatpush1.bf16.msra.mxu0 %v1352
        %1386 = vmatprep.subr.bf16.mxu0 %v1355
        %1387 = vmatpush1.bf16.msra.mxu0 %v1354
        %1388 = vmatprep.subr.bf16.mxu0 %v1357
        %1389 = vmatpush1.bf16.msra.mxu0 %v1356
        %1390 = vmatprep.subr.bf16.mxu0 %v1359
        %1391 = vmatpush1.bf16.msra.mxu0 %v1358
        %1392 = vmatprep.subr.bf16.mxu0 %v1361
        %1393 = vmatpush1.bf16.msra.mxu0 %v1360
        %1394 = vmatprep.subr.bf16.mxu0 %v1363
        %1395 = vmatpush1.bf16.msra.mxu0 %v1362
        %1396 = vmatprep.subr.bf16.mxu0 %v1365
        %1397 = vmatpush1.bf16.msra.mxu0 %v1364
        %1398 = vmatprep.mubr.bf16.mxu0 %v706
        %1399 = vmatmul.mubr.bf16.gmra.mrb[0].mxu0 %v705
        %v1400 = vpop.f32.mrb[0].mxu0
        %v1401 = vadd.f32 0.0, %v1400
        %v1402 = vpop.f32.mrb[0].mxu0
        %v1403 = vadd.f32 0.0, %v1402
        %v1404 = vpop.f32.mrb[0].mxu0
        %v1405 = vpop.f32.mrb[0].mxu0
        %1406 = vdwg.mxu0
        %v1407 = vrcp.pop %v1296
        %v1408 = vrcp.pop %v1333
        %v1409 = vmul.f32 %v1401, %v1407
        %v1410 = vmul.f32 %v1403, %v1408
        %v1411 = vpack.c.bf16 %v545, %v545
        %v1412 = vpack.c.bf16 %v547, %v547
        %v1413 = vpack.c.bf16 %v618, %v618
        %v1414 = vpack.c.bf16 %v620, %v620
        %1415 = vxpose.xlu0.c.b16.start [1/8] %v1413, 128
        %1416 = vxpose.xlu0.c.b16.cont [2/8] 0, 128
        %1417 = vxpose.xlu0.c.b16.cont [3/8] 0, 128
        %1418 = vxpose.xlu0.c.b16.cont [4/8] 0, 128
        %1419 = vxpose.xlu0.c.b16.cont [5/8] 0, 128
        %1420 = vxpose.xlu0.c.b16.cont [6/8] 0, 128
        %1421 = vxpose.xlu0.c.b16.cont [7/8] 0, 128
        %1422 = vxpose.xlu0.c.b16.end [8/8] 0, 128
        %v1423 = vpop.trf.xlu0
        %v1424 = vpop.trf.xlu0
        %v1425 = vpop.trf.xlu0
        %v1426 = vpop.trf.xlu0
        %v1427 = vpop.trf.xlu0
        %v1428 = vpop.trf.xlu0
        %v1429 = vpop.trf.xlu0
        %v1430 = vpop.trf.xlu0
        %1431 = vxpose.xlu0.c.b16.start [1/8] %v1414, 128
        %1432 = vxpose.xlu0.c.b16.cont [2/8] 0, 128
        %1433 = vxpose.xlu0.c.b16.cont [3/8] 0, 128
        %1434 = vxpose.xlu0.c.b16.cont [4/8] 0, 128
        %1435 = vxpose.xlu0.c.b16.cont [5/8] 0, 128
        %1436 = vxpose.xlu0.c.b16.cont [6/8] 0, 128
        %1437 = vxpose.xlu0.c.b16.cont [7/8] 0, 128
        %1438 = vxpose.xlu0.c.b16.end [8/8] 0, 128
        %v1439 = vpop.trf.xlu0
        %v1440 = vpop.trf.xlu0
        %v1441 = vpop.trf.xlu0
        %v1442 = vpop.trf.xlu0
        %v1443 = vpop.trf.xlu0
        %v1444 = vpop.trf.xlu0
        %v1445 = vpop.trf.xlu0
        %v1446 = vpop.trf.xlu0
        %v1448 = vsel %vm745, %v1423, 0
        %v1451 = vsel %vm745, %v1424, 0
        %v1454 = vsel %vm745, %v1425, 0
        %v1457 = vsel %vm745, %v1426, 0
        %v1460 = vsel %vm745, %v1427, 0
        %v1463 = vsel %vm745, %v1428, 0
        %v1466 = vsel %vm745, %v1429, 0
        %v1469 = vsel %vm745, %v1430, 0
        %v1472 = vsel %vm745, %v1439, 0
        %v1475 = vsel %vm745, %v1440, 0
        %v1478 = vsel %vm745, %v1441, 0
        %v1481 = vsel %vm745, %v1442, 0
        %v1484 = vsel %vm745, %v1443, 0
        %v1487 = vsel %vm745, %v1444, 0
        %v1490 = vsel %vm745, %v1445, 0
        %v1493 = vsel %vm745, %v1446, 0
        %v1496 = vsel %vm794, %v1411, 0
        %v1499 = vsel %vm794, %v1412, 0
        %1501 = vmatprep.subr.bf16.mxu0 %v1499
        %1502 = vmatpush1.bf16.msra.mxu0 %v1496
        %1503 = vmatprep.subr.bf16.mxu0 0
        %1504 = vmatpush1.bf16.msra.mxu0 0
        %1505 = vmatprep.subr.bf16.mxu0 0
        %1506 = vmatpush1.bf16.msra.mxu0 0
        %1507 = vmatprep.subr.bf16.mxu0 0
        %1508 = vmatpush1.bf16.msra.mxu0 0
        %1509 = vmatprep.subr.bf16.mxu0 0
        %1510 = vmatpush1.bf16.msra.mxu0 0
        %1511 = vmatprep.subr.bf16.mxu0 0
        %1512 = vmatpush1.bf16.msra.mxu0 0
        %1513 = vmatprep.subr.bf16.mxu0 0
        %1514 = vmatpush1.bf16.msra.mxu0 0
        %1515 = vmatprep.subr.bf16.mxu0 0
        %1516 = vmatpush1.bf16.msra.mxu0 0
        %1517 = vmatprep.subr.bf16.mxu0 0
        %1518 = vmatpush1.bf16.msra.mxu0 0
        %1519 = vmatprep.subr.bf16.mxu0 0
        %1520 = vmatpush1.bf16.msra.mxu0 0
        %1521 = vmatprep.subr.bf16.mxu0 0
        %1522 = vmatpush1.bf16.msra.mxu0 0
        %1523 = vmatprep.subr.bf16.mxu0 0
        %1524 = vmatpush1.bf16.msra.mxu0 0
        %1525 = vmatprep.subr.bf16.mxu0 0
        %1526 = vmatpush1.bf16.msra.mxu0 0
        %1527 = vmatprep.subr.bf16.mxu0 0
        %1528 = vmatpush1.bf16.msra.mxu0 0
        %1529 = vmatprep.subr.bf16.mxu0 0
        %1530 = vmatpush1.bf16.msra.mxu0 0
        %1531 = vmatprep.subr.bf16.mxu0 0
        %1532 = vmatpush1.bf16.msra.mxu0 0
        %1533 = vmatprep.mubr.bf16.mxu0 0
        %1534 = vmatmul.mubr.bf16.gmra.mrb[0].mxu0 %v1448
        %v1535 = vpop.f32.mrb[0].mxu0
        %v1536 = vadd.f32 0.0, %v1535
        %v1537 = vpop.f32.mrb[0].mxu0
        %v1538 = vadd.f32 0.0, %v1537
        %v1539 = vpop.f32.mrb[0].mxu0
        %v1540 = vadd.f32 0.0, %v1539
        %v1541 = vpop.f32.mrb[0].mxu0
        %v1542 = vadd.f32 0.0, %v1541
        %1543 = vmatprep.mubr.bf16.mxu0 0
        %1544 = vmatmul.mubr.bf16.gmra.mrb[0].mxu0 %v1451
        %v1545 = vpop.f32.mrb[0].mxu0
        %v1546 = vadd.f32 0.0, %v1545
        %v1547 = vpop.f32.mrb[0].mxu0
        %v1548 = vadd.f32 0.0, %v1547
        %v1549 = vpop.f32.mrb[0].mxu0
        %v1550 = vadd.f32 0.0, %v1549
        %v1551 = vpop.f32.mrb[0].mxu0
        %v1552 = vadd.f32 0.0, %v1551
        %1553 = vmatprep.mubr.bf16.mxu0 0
        %1554 = vmatmul.mubr.bf16.gmra.mrb[0].mxu0 %v1454
        %v1555 = vpop.f32.mrb[0].mxu0
        %v1556 = vadd.f32 0.0, %v1555
        %v1557 = vpop.f32.mrb[0].mxu0
        %v1558 = vadd.f32 0.0, %v1557
        %v1559 = vpop.f32.mrb[0].mxu0
        %v1560 = vadd.f32 0.0, %v1559
        %v1561 = vpop.f32.mrb[0].mxu0
        %v1562 = vadd.f32 0.0, %v1561
        %1563 = vmatprep.mubr.bf16.mxu0 0
        %1564 = vmatmul.mubr.bf16.gmra.mrb[0].mxu0 %v1457
        %v1565 = vpop.f32.mrb[0].mxu0
        %v1566 = vadd.f32 0.0, %v1565
        %v1567 = vpop.f32.mrb[0].mxu0
        %v1568 = vadd.f32 0.0, %v1567
        %v1569 = vpop.f32.mrb[0].mxu0
        %v1570 = vadd.f32 0.0, %v1569
        %v1571 = vpop.f32.mrb[0].mxu0
        %v1572 = vadd.f32 0.0, %v1571
        %1573 = vmatprep.mubr.bf16.mxu0 0
        %1574 = vmatmul.mubr.bf16.gmra.mrb[0].mxu0 %v1460
        %v1575 = vpop.f32.mrb[0].mxu0
        %v1576 = vadd.f32 0.0, %v1575
        %v1577 = vpop.f32.mrb[0].mxu0
        %v1578 = vadd.f32 0.0, %v1577
        %v1579 = vpop.f32.mrb[0].mxu0
        %v1580 = vadd.f32 0.0, %v1579
        %v1581 = vpop.f32.mrb[0].mxu0
        %v1582 = vadd.f32 0.0, %v1581
        %1583 = vmatprep.mubr.bf16.mxu0 0
        %1584 = vmatmul.mubr.bf16.gmra.mrb[0].mxu0 %v1463
        %v1585 = vpop.f32.mrb[0].mxu0
        %v1586 = vadd.f32 0.0, %v1585
        %v1587 = vpop.f32.mrb[0].mxu0
        %v1588 = vadd.f32 0.0, %v1587
        %v1589 = vpop.f32.mrb[0].mxu0
        %v1590 = vadd.f32 0.0, %v1589
        %v1591 = vpop.f32.mrb[0].mxu0
        %v1592 = vadd.f32 0.0, %v1591
        %1593 = vmatprep.mubr.bf16.mxu0 0
        %1594 = vmatmul.mubr.bf16.gmra.mrb[0].mxu0 %v1466
        %v1595 = vpop.f32.mrb[0].mxu0
        %v1596 = vadd.f32 0.0, %v1595
        %v1597 = vpop.f32.mrb[0].mxu0
        %v1598 = vadd.f32 0.0, %v1597
        %v1599 = vpop.f32.mrb[0].mxu0
        %v1600 = vadd.f32 0.0, %v1599
        %v1601 = vpop.f32.mrb[0].mxu0
        %v1602 = vadd.f32 0.0, %v1601
        %1603 = vmatprep.mubr.bf16.mxu0 0
        %1604 = vmatmul.mubr.bf16.gmra.mrb[0].mxu0 %v1469
        %v1605 = vpop.f32.mrb[0].mxu0
        %v1606 = vadd.f32 0.0, %v1605
        %v1607 = vpop.f32.mrb[0].mxu0
        %v1608 = vadd.f32 0.0, %v1607
        %v1609 = vpop.f32.mrb[0].mxu0
        %v1610 = vadd.f32 0.0, %v1609
        %v1611 = vpop.f32.mrb[0].mxu0
        %v1612 = vadd.f32 0.0, %v1611
        %1613 = vmatprep.mubr.bf16.mxu0 0
        %1614 = vmatmul.mubr.bf16.gmra.mrb[0].mxu0 %v1472
        %v1615 = vpop.f32.mrb[0].mxu0
        %v1616 = vadd.f32 0.0, %v1615
        %v1617 = vpop.f32.mrb[0].mxu0
        %v1618 = vadd.f32 0.0, %v1617
        %v1619 = vpop.f32.mrb[0].mxu0
        %v1620 = vadd.f32 0.0, %v1619
        %v1621 = vpop.f32.mrb[0].mxu0
        %v1622 = vadd.f32 0.0, %v1621
        %1623 = vmatprep.mubr.bf16.mxu0 0
        %1624 = vmatmul.mubr.bf16.gmra.mrb[0].mxu0 %v1475
        %v1625 = vpop.f32.mrb[0].mxu0
        %v1626 = vadd.f32 0.0, %v1625
        %v1627 = vpop.f32.mrb[0].mxu0
        %v1628 = vadd.f32 0.0, %v1627
        %v1629 = vpop.f32.mrb[0].mxu0
        %v1630 = vadd.f32 0.0, %v1629
        %v1631 = vpop.f32.mrb[0].mxu0
        %v1632 = vadd.f32 0.0, %v1631
        %1633 = vmatprep.mubr.bf16.mxu0 0
        %1634 = vmatmul.mubr.bf16.gmra.mrb[0].mxu0 %v1478
        %v1635 = vpop.f32.mrb[0].mxu0
        %v1636 = vadd.f32 0.0, %v1635
        %v1637 = vpop.f32.mrb[0].mxu0
        %v1638 = vadd.f32 0.0, %v1637
        %v1639 = vpop.f32.mrb[0].mxu0
        %v1640 = vadd.f32 0.0, %v1639
        %v1641 = vpop.f32.mrb[0].mxu0
        %v1642 = vadd.f32 0.0, %v1641
        %1643 = vmatprep.mubr.bf16.mxu0 0
        %1644 = vmatmul.mubr.bf16.gmra.mrb[0].mxu0 %v1481
        %v1645 = vpop.f32.mrb[0].mxu0
        %v1646 = vadd.f32 0.0, %v1645
        %v1647 = vpop.f32.mrb[0].mxu0
        %v1648 = vadd.f32 0.0, %v1647
        %v1649 = vpop.f32.mrb[0].mxu0
        %v1650 = vadd.f32 0.0, %v1649
        %v1651 = vpop.f32.mrb[0].mxu0
        %v1652 = vadd.f32 0.0, %v1651
        %1653 = vmatprep.mubr.bf16.mxu0 0
        %1654 = vmatmul.mubr.bf16.gmra.mrb[0].mxu0 %v1484
        %v1655 = vpop.f32.mrb[0].mxu0
        %v1656 = vadd.f32 0.0, %v1655
        %v1657 = vpop.f32.mrb[0].mxu0
        %v1658 = vadd.f32 0.0, %v1657
        %v1659 = vpop.f32.mrb[0].mxu0
        %v1660 = vadd.f32 0.0, %v1659
        %v1661 = vpop.f32.mrb[0].mxu0
        %v1662 = vadd.f32 0.0, %v1661
        %1663 = vmatprep.mubr.bf16.mxu0 0
        %1664 = vmatmul.mubr.bf16.gmra.mrb[0].mxu0 %v1487
        %v1665 = vpop.f32.mrb[0].mxu0
        %v1666 = vadd.f32 0.0, %v1665
        %v1667 = vpop.f32.mrb[0].mxu0
        %v1668 = vadd.f32 0.0, %v1667
        %v1669 = vpop.f32.mrb[0].mxu0
        %v1670 = vadd.f32 0.0, %v1669
        %v1671 = vpop.f32.mrb[0].mxu0
        %v1672 = vadd.f32 0.0, %v1671
        %1673 = vmatprep.mubr.bf16.mxu0 0
        %1674 = vmatmul.mubr.bf16.gmra.mrb[0].mxu0 %v1490
        %v1675 = vpop.f32.mrb[0].mxu0
        %v1676 = vadd.f32 0.0, %v1675
        %v1677 = vpop.f32.mrb[0].mxu0
        %v1678 = vadd.f32 0.0, %v1677
        %v1679 = vpop.f32.mrb[0].mxu0
        %v1680 = vadd.f32 0.0, %v1679
        %v1681 = vpop.f32.mrb[0].mxu0
        %v1682 = vadd.f32 0.0, %v1681
        %1683 = vmatprep.mubr.bf16.mxu0 0
        %1684 = vmatmul.mubr.bf16.gmra.mrb[0].mxu0 %v1493
        %v1685 = vpop.f32.mrb[0].mxu0
        %v1686 = vadd.f32 0.0, %v1685
        %v1687 = vpop.f32.mrb[0].mxu0
        %v1688 = vadd.f32 0.0, %v1687
        %v1689 = vpop.f32.mrb[0].mxu0
        %v1690 = vadd.f32 0.0, %v1689
        %v1691 = vpop.f32.mrb[0].mxu0
        %v1692 = vadd.f32 0.0, %v1691
        %1693 = vdwg.mxu0
        %v1694 = vmax.f32 %v1536, %v1546
        %v1695 = vmax.f32 %v1540, %v1550
        %v1696 = vmax.f32 %v1694, %v1556
        %v1697 = vmax.f32 %v1695, %v1560
        %v1698 = vmax.f32 %v1696, %v1566
        %v1699 = vmax.f32 %v1697, %v1570
        %v1700 = vmax.f32 %v1698, %v1576
        %v1701 = vmax.f32 %v1699, %v1580
        %v1702 = vmax.f32 %v1700, %v1586
        %v1703 = vmax.f32 %v1701, %v1590
        %v1704 = vmax.f32 %v1702, %v1596
        %v1705 = vmax.f32 %v1703, %v1600
        %v1706 = vmax.f32 %v1704, %v1606
        %v1707 = vmax.f32 %v1705, %v1610
        %v1708 = vmax.f32 %v1706, %v1616
        %v1709 = vmax.f32 %v1707, %v1620
        %v1710 = vmax.f32 %v1708, %v1626
        %v1711 = vmax.f32 %v1709, %v1630
        %v1712 = vmax.f32 %v1710, %v1636
        %v1713 = vmax.f32 %v1711, %v1640
        %v1714 = vmax.f32 %v1712, %v1646
        %v1715 = vmax.f32 %v1713, %v1650
        %v1716 = vmax.f32 %v1714, %v1656
        %v1717 = vmax.f32 %v1715, %v1660
        %v1718 = vmax.f32 %v1716, %v1666
        %v1719 = vmax.f32 %v1717, %v1670
        %v1720 = vmax.f32 %v1718, %v1676
        %v1721 = vmax.f32 %v1719, %v1680
        %v1722 = vmax.f32 %v1720, %v1686
        %v1723 = vmax.f32 %v1721, %v1690
        %v1724 = vmax.f32 %v1722, %v1723
        %v1725 = vrot.slane %v1724, 4
        %v1726 = vmax.f32 %v1724, %v1725
        %v1727 = vrot.slane %v1726, 2
        %v1728 = vmax.f32 %v1726, %v1727
        %v1729 = vrot.slane %v1728, 1
        %v1730 = vmax.f32 %v1728, %v1729
        %v1731 = vmax.f32 %v1538, %v1548
        %v1732 = vmax.f32 %v1542, %v1552
        %v1733 = vmax.f32 %v1731, %v1558
        %v1734 = vmax.f32 %v1732, %v1562
        %v1735 = vmax.f32 %v1733, %v1568
        %v1736 = vmax.f32 %v1734, %v1572
        %v1737 = vmax.f32 %v1735, %v1578
        %v1738 = vmax.f32 %v1736, %v1582
        %v1739 = vmax.f32 %v1737, %v1588
        %v1740 = vmax.f32 %v1738, %v1592
        %v1741 = vmax.f32 %v1739, %v1598
        %v1742 = vmax.f32 %v1740, %v1602
        %v1743 = vmax.f32 %v1741, %v1608
        %v1744 = vmax.f32 %v1742, %v1612
        %v1745 = vmax.f32 %v1743, %v1618
        %v1746 = vmax.f32 %v1744, %v1622
        %v1747 = vmax.f32 %v1745, %v1628
        %v1748 = vmax.f32 %v1746, %v1632
        %v1749 = vmax.f32 %v1747, %v1638
        %v1750 = vmax.f32 %v1748, %v1642
        %v1751 = vmax.f32 %v1749, %v1648
        %v1752 = vmax.f32 %v1750, %v1652
        %v1753 = vmax.f32 %v1751, %v1658
        %v1754 = vmax.f32 %v1752, %v1662
        %v1755 = vmax.f32 %v1753, %v1668
        %v1756 = vmax.f32 %v1754, %v1672
        %v1757 = vmax.f32 %v1755, %v1678
        %v1758 = vmax.f32 %v1756, %v1682
        %v1759 = vmax.f32 %v1757, %v1688
        %v1760 = vmax.f32 %v1758, %v1692
        %v1761 = vmax.f32 %v1759, %v1760
        %v1762 = vrot.slane %v1761, 4
        %v1763 = vmax.f32 %v1761, %v1762
        %v1764 = vrot.slane %v1763, 2
        %v1765 = vmax.f32 %v1763, %v1764
        %v1766 = vrot.slane %v1765, 1
        %v1767 = vmax.f32 %v1765, %v1766
        %v1768 = vsub.f32 %v1536, %v1730
        %v1769 = vsub.f32 %v1538, %v1767
        %v1770 = vsub.f32 %v1540, %v1730
        %v1771 = vsub.f32 %v1542, %v1767
        %v1772 = vsub.f32 %v1546, %v1730
        %v1773 = vsub.f32 %v1548, %v1767
        %v1774 = vsub.f32 %v1550, %v1730
        %v1775 = vsub.f32 %v1552, %v1767
        %v1776 = vsub.f32 %v1556, %v1730
        %v1777 = vsub.f32 %v1558, %v1767
        %v1778 = vsub.f32 %v1560, %v1730
        %v1779 = vsub.f32 %v1562, %v1767
        %v1780 = vsub.f32 %v1566, %v1730
        %v1781 = vsub.f32 %v1568, %v1767
        %v1782 = vsub.f32 %v1570, %v1730
        %v1783 = vsub.f32 %v1572, %v1767
        %v1784 = vsub.f32 %v1576, %v1730
        %v1785 = vsub.f32 %v1578, %v1767
        %v1786 = vsub.f32 %v1580, %v1730
        %v1787 = vsub.f32 %v1582, %v1767
        %v1788 = vsub.f32 %v1586, %v1730
        %v1789 = vsub.f32 %v1588, %v1767
        %v1790 = vsub.f32 %v1590, %v1730
        %v1791 = vsub.f32 %v1592, %v1767
        %v1792 = vsub.f32 %v1596, %v1730
        %v1793 = vsub.f32 %v1598, %v1767
        %v1794 = vsub.f32 %v1600, %v1730
        %v1795 = vsub.f32 %v1602, %v1767
        %v1796 = vsub.f32 %v1606, %v1730
        %v1797 = vsub.f32 %v1608, %v1767
        %v1798 = vsub.f32 %v1610, %v1730
        %v1799 = vsub.f32 %v1612, %v1767
        %v1800 = vsub.f32 %v1616, %v1730
        %v1801 = vsub.f32 %v1618, %v1767
        %v1802 = vsub.f32 %v1620, %v1730
        %v1803 = vsub.f32 %v1622, %v1767
        %v1804 = vsub.f32 %v1626, %v1730
        %v1805 = vsub.f32 %v1628, %v1767
        %v1806 = vsub.f32 %v1630, %v1730
        %v1807 = vsub.f32 %v1632, %v1767
        %v1808 = vsub.f32 %v1636, %v1730
        %v1809 = vsub.f32 %v1638, %v1767
        %v1810 = vsub.f32 %v1640, %v1730
        %v1811 = vsub.f32 %v1642, %v1767
        %v1812 = vsub.f32 %v1646, %v1730
        %v1813 = vsub.f32 %v1648, %v1767
        %v1814 = vsub.f32 %v1650, %v1730
        %v1815 = vsub.f32 %v1652, %v1767
        %v1816 = vsub.f32 %v1656, %v1730
        %v1817 = vsub.f32 %v1658, %v1767
        %v1818 = vsub.f32 %v1660, %v1730
        %v1819 = vsub.f32 %v1662, %v1767
        %v1820 = vsub.f32 %v1666, %v1730
        %v1821 = vsub.f32 %v1668, %v1767
        %v1822 = vsub.f32 %v1670, %v1730
        %v1823 = vsub.f32 %v1672, %v1767
        %v1824 = vsub.f32 %v1676, %v1730
        %v1825 = vsub.f32 %v1678, %v1767
        %v1826 = vsub.f32 %v1680, %v1730
        %v1827 = vsub.f32 %v1682, %v1767
        %v1828 = vsub.f32 %v1686, %v1730
        %v1829 = vsub.f32 %v1688, %v1767
        %v1830 = vsub.f32 %v1690, %v1730
        %v1831 = vsub.f32 %v1692, %v1767
        %v1832 = vmul.f32 %v1768, 1.442695
        %v1833 = vpow.pop %v1832
        %v1834 = vmul.f32 %v1769, 1.442695
        %v1835 = vpow.pop %v1834
        %v1836 = vmul.f32 %v1770, 1.442695
        %v1837 = vpow.pop %v1836
        %v1838 = vmul.f32 %v1771, 1.442695
        %v1839 = vpow.pop %v1838
        %v1840 = vmul.f32 %v1772, 1.442695
        %v1841 = vpow.pop %v1840
        %v1842 = vmul.f32 %v1773, 1.442695
        %v1843 = vpow.pop %v1842
        %v1844 = vmul.f32 %v1774, 1.442695
        %v1845 = vpow.pop %v1844
        %v1846 = vmul.f32 %v1775, 1.442695
        %v1847 = vpow.pop %v1846
        %v1848 = vmul.f32 %v1776, 1.442695
        %v1849 = vpow.pop %v1848
        %v1850 = vmul.f32 %v1777, 1.442695
        %v1851 = vpow.pop %v1850
        %v1852 = vmul.f32 %v1778, 1.442695
        %v1853 = vpow.pop %v1852
        %v1854 = vmul.f32 %v1779, 1.442695
        %v1855 = vpow.pop %v1854
        %v1856 = vmul.f32 %v1780, 1.442695
        %v1857 = vpow.pop %v1856
        %v1858 = vmul.f32 %v1781, 1.442695
        %v1859 = vpow.pop %v1858
        %v1860 = vmul.f32 %v1782, 1.442695
        %v1861 = vpow.pop %v1860
        %v1862 = vmul.f32 %v1783, 1.442695
        %v1863 = vpow.pop %v1862
        %v1864 = vmul.f32 %v1784, 1.442695
        %v1865 = vpow.pop %v1864
        %v1866 = vmul.f32 %v1785, 1.442695
        %v1867 = vpow.pop %v1866
        %v1868 = vmul.f32 %v1786, 1.442695
        %v1869 = vpow.pop %v1868
        %v1870 = vmul.f32 %v1787, 1.442695
        %v1871 = vpow.pop %v1870
        %v1872 = vmul.f32 %v1788, 1.442695
        %v1873 = vpow.pop %v1872
        %v1874 = vmul.f32 %v1789, 1.442695
        %v1875 = vpow.pop %v1874
        %v1876 = vmul.f32 %v1790, 1.442695
        %v1877 = vpow.pop %v1876
        %v1878 = vmul.f32 %v1791, 1.442695
        %v1879 = vpow.pop %v1878
        %v1880 = vmul.f32 %v1792, 1.442695
        %v1881 = vpow.pop %v1880
        %v1882 = vmul.f32 %v1793, 1.442695
        %v1883 = vpow.pop %v1882
        %v1884 = vmul.f32 %v1794, 1.442695
        %v1885 = vpow.pop %v1884
        %v1886 = vmul.f32 %v1795, 1.442695
        %v1887 = vpow.pop %v1886
        %v1888 = vmul.f32 %v1796, 1.442695
        %v1889 = vpow.pop %v1888
        %v1890 = vmul.f32 %v1797, 1.442695
        %v1891 = vpow.pop %v1890
        %v1892 = vmul.f32 %v1798, 1.442695
        %v1893 = vpow.pop %v1892
        %v1894 = vmul.f32 %v1799, 1.442695
        %v1895 = vpow.pop %v1894
        %v1896 = vmul.f32 %v1800, 1.442695
        %v1897 = vpow.pop %v1896
        %v1898 = vmul.f32 %v1801, 1.442695
        %v1899 = vpow.pop %v1898
        %v1900 = vmul.f32 %v1802, 1.442695
        %v1901 = vpow.pop %v1900
        %v1902 = vmul.f32 %v1803, 1.442695
        %v1903 = vpow.pop %v1902
        %v1904 = vmul.f32 %v1804, 1.442695
        %v1905 = vpow.pop %v1904
        %v1906 = vmul.f32 %v1805, 1.442695
        %v1907 = vpow.pop %v1906
        %v1908 = vmul.f32 %v1806, 1.442695
        %v1909 = vpow.pop %v1908
        %v1910 = vmul.f32 %v1807, 1.442695
        %v1911 = vpow.pop %v1910
        %v1912 = vmul.f32 %v1808, 1.442695
        %v1913 = vpow.pop %v1912
        %v1914 = vmul.f32 %v1809, 1.442695
        %v1915 = vpow.pop %v1914
        %v1916 = vmul.f32 %v1810, 1.442695
        %v1917 = vpow.pop %v1916
        %v1918 = vmul.f32 %v1811, 1.442695
        %v1919 = vpow.pop %v1918
        %v1920 = vmul.f32 %v1812, 1.442695
        %v1921 = vpow.pop %v1920
        %v1922 = vmul.f32 %v1813, 1.442695
        %v1923 = vpow.pop %v1922
        %v1924 = vmul.f32 %v1814, 1.442695
        %v1925 = vpow.pop %v1924
        %v1926 = vmul.f32 %v1815, 1.442695
        %v1927 = vpow.pop %v1926
        %v1928 = vmul.f32 %v1816, 1.442695
        %v1929 = vpow.pop %v1928
        %v1930 = vmul.f32 %v1817, 1.442695
        %v1931 = vpow.pop %v1930
        %v1932 = vmul.f32 %v1818, 1.442695
        %v1933 = vpow.pop %v1932
        %v1934 = vmul.f32 %v1819, 1.442695
        %v1935 = vpow.pop %v1934
        %v1936 = vmul.f32 %v1820, 1.442695
        %v1937 = vpow.pop %v1936
        %v1938 = vmul.f32 %v1821, 1.442695
        %v1939 = vpow.pop %v1938
        %v1940 = vmul.f32 %v1822, 1.442695
        %v1941 = vpow.pop %v1940
        %v1942 = vmul.f32 %v1823, 1.442695
        %v1943 = vpow.pop %v1942
        %v1944 = vmul.f32 %v1824, 1.442695
        %v1945 = vpow.pop %v1944
        %v1946 = vmul.f32 %v1825, 1.442695
        %v1947 = vpow.pop %v1946
        %v1948 = vmul.f32 %v1826, 1.442695
        %v1949 = vpow.pop %v1948
        %v1950 = vmul.f32 %v1827, 1.442695
        %v1951 = vpow.pop %v1950
        %v1952 = vmul.f32 %v1828, 1.442695
        %v1953 = vpow.pop %v1952
        %v1954 = vmul.f32 %v1829, 1.442695
        %v1955 = vpow.pop %v1954
        %v1956 = vmul.f32 %v1830, 1.442695
        %v1957 = vpow.pop %v1956
        %v1958 = vmul.f32 %v1831, 1.442695
        %v1959 = vpow.pop %v1958
        %v1960 = vadd.f32 %v1833, %v1837
        %v1961 = vadd.f32 %v1960, %v1841
        %v1962 = vadd.f32 %v1961, %v1845
        %v1963 = vadd.f32 %v1962, %v1849
        %v1964 = vadd.f32 %v1963, %v1853
        %v1965 = vadd.f32 %v1964, %v1857
        %v1966 = vadd.f32 %v1965, %v1861
        %v1967 = vadd.f32 %v1966, %v1865
        %v1968 = vadd.f32 %v1967, %v1869
        %v1969 = vadd.f32 %v1968, %v1873
        %v1970 = vadd.f32 %v1969, %v1877
        %v1971 = vadd.f32 %v1970, %v1881
        %v1972 = vadd.f32 %v1971, %v1885
        %v1973 = vadd.f32 %v1972, %v1889
        %v1974 = vadd.f32 %v1973, %v1893
        %v1975 = vadd.f32 %v1974, %v1897
        %v1976 = vadd.f32 %v1975, %v1901
        %v1977 = vadd.f32 %v1976, %v1905
        %v1978 = vadd.f32 %v1977, %v1909
        %v1979 = vadd.f32 %v1978, %v1913
        %v1980 = vadd.f32 %v1979, %v1917
        %v1981 = vadd.f32 %v1980, %v1921
        %v1982 = vadd.f32 %v1981, %v1925
        %v1983 = vadd.f32 %v1982, %v1929
        %v1984 = vadd.f32 %v1983, %v1933
        %v1985 = vadd.f32 %v1984, %v1937
        %v1986 = vadd.f32 %v1985, %v1941
        %v1987 = vadd.f32 %v1986, %v1945
        %v1988 = vadd.f32 %v1987, %v1949
        %v1989 = vadd.f32 %v1988, %v1953
        %v1990 = vadd.f32 %v1989, %v1957
        %v1991 = vrot.slane %v1990, 4
        %v1992 = vadd.f32 %v1990, %v1991
        %v1993 = vrot.slane %v1992, 2
        %v1994 = vadd.f32 %v1992, %v1993
        %v1995 = vrot.slane %v1994, 1
        %v1996 = vadd.f32 %v1994, %v1995
        %v1997 = vadd.f32 %v1835, %v1839
        %v1998 = vadd.f32 %v1997, %v1843
        %v1999 = vadd.f32 %v1998, %v1847
        %v2000 = vadd.f32 %v1999, %v1851
        %v2001 = vadd.f32 %v2000, %v1855
        %v2002 = vadd.f32 %v2001, %v1859
        %v2003 = vadd.f32 %v2002, %v1863
        %v2004 = vadd.f32 %v2003, %v1867
        %v2005 = vadd.f32 %v2004, %v1871
        %v2006 = vadd.f32 %v2005, %v1875
        %v2007 = vadd.f32 %v2006, %v1879
        %v2008 = vadd.f32 %v2007, %v1883
        %v2009 = vadd.f32 %v2008, %v1887
        %v2010 = vadd.f32 %v2009, %v1891
        %v2011 = vadd.f32 %v2010, %v1895
        %v2012 = vadd.f32 %v2011, %v1899
        %v2013 = vadd.f32 %v2012, %v1903
        %v2014 = vadd.f32 %v2013, %v1907
        %v2015 = vadd.f32 %v2014, %v1911
        %v2016 = vadd.f32 %v2015, %v1915
        %v2017 = vadd.f32 %v2016, %v1919
        %v2018 = vadd.f32 %v2017, %v1923
        %v2019 = vadd.f32 %v2018, %v1927
        %v2020 = vadd.f32 %v2019, %v1931
        %v2021 = vadd.f32 %v2020, %v1935
        %v2022 = vadd.f32 %v2021, %v1939
        %v2023 = vadd.f32 %v2022, %v1943
        %v2024 = vadd.f32 %v2023, %v1947
        %v2025 = vadd.f32 %v2024, %v1951
        %v2026 = vadd.f32 %v2025, %v1955
        %v2027 = vadd.f32 %v2026, %v1959
        %v2028 = vrot.slane %v2027, 4
        %v2029 = vadd.f32 %v2027, %v2028
        %v2030 = vrot.slane %v2029, 2
        %v2031 = vadd.f32 %v2029, %v2030
        %v2032 = vrot.slane %v2031, 1
        %v2033 = vadd.f32 %v2031, %v2032
        %v2034 = vpack.c.bf16 %v1837, %v1833
        %v2035 = vpack.c.bf16 %v1839, %v1835
        %v2036 = vpack.c.bf16 %v1845, %v1841
        %v2037 = vpack.c.bf16 %v1847, %v1843
        %v2038 = vpack.c.bf16 %v1853, %v1849
        %v2039 = vpack.c.bf16 %v1855, %v1851
        %v2040 = vpack.c.bf16 %v1861, %v1857
        %v2041 = vpack.c.bf16 %v1863, %v1859
        %v2042 = vpack.c.bf16 %v1869, %v1865
        %v2043 = vpack.c.bf16 %v1871, %v1867
        %v2044 = vpack.c.bf16 %v1877, %v1873
        %v2045 = vpack.c.bf16 %v1879, %v1875
        %v2046 = vpack.c.bf16 %v1885, %v1881
        %v2047 = vpack.c.bf16 %v1887, %v1883
        %v2048 = vpack.c.bf16 %v1893, %v1889
        %v2049 = vpack.c.bf16 %v1895, %v1891
        %v2050 = vpack.c.bf16 %v1901, %v1897
        %v2051 = vpack.c.bf16 %v1903, %v1899
        %v2052 = vpack.c.bf16 %v1909, %v1905
        %v2053 = vpack.c.bf16 %v1911, %v1907
        %v2054 = vpack.c.bf16 %v1917, %v1913
        %v2055 = vpack.c.bf16 %v1919, %v1915
        %v2056 = vpack.c.bf16 %v1925, %v1921
        %v2057 = vpack.c.bf16 %v1927, %v1923
        %v2058 = vpack.c.bf16 %v1933, %v1929
        %v2059 = vpack.c.bf16 %v1935, %v1931
        %v2060 = vpack.c.bf16 %v1941, %v1937
        %v2061 = vpack.c.bf16 %v1943, %v1939
        %v2062 = vpack.c.bf16 %v1949, %v1945
        %v2063 = vpack.c.bf16 %v1951, %v1947
        %v2064 = vpack.c.bf16 %v1957, %v1953
        %v2065 = vpack.c.bf16 %v1959, %v1955
        %v2068 = vrot.slane %v705, 4
        %v2069 = vrot.slane %v706, 4
        %2072 = vmatprep.subr.bf16.mxu0 %v2035
        %2073 = vmatpush1.bf16.msra.mxu0 %v2034
        %2074 = vmatprep.subr.bf16.mxu0 %v2037
        %2075 = vmatpush1.bf16.msra.mxu0 %v2036
        %2076 = vmatprep.subr.bf16.mxu0 %v2039
        %2077 = vmatpush1.bf16.msra.mxu0 %v2038
        %2078 = vmatprep.subr.bf16.mxu0 %v2041
        %2079 = vmatpush1.bf16.msra.mxu0 %v2040
        %2080 = vmatprep.subr.bf16.mxu0 %v2043
        %2081 = vmatpush1.bf16.msra.mxu0 %v2042
        %2082 = vmatprep.subr.bf16.mxu0 %v2045
        %2083 = vmatpush1.bf16.msra.mxu0 %v2044
        %2084 = vmatprep.subr.bf16.mxu0 %v2047
        %2085 = vmatpush1.bf16.msra.mxu0 %v2046
        %2086 = vmatprep.subr.bf16.mxu0 %v2049
        %2087 = vmatpush1.bf16.msra.mxu0 %v2048
        %2088 = vmatprep.subr.bf16.mxu0 %v2051
        %2089 = vmatpush1.bf16.msra.mxu0 %v2050
        %2090 = vmatprep.subr.bf16.mxu0 %v2053
        %2091 = vmatpush1.bf16.msra.mxu0 %v2052
        %2092 = vmatprep.subr.bf16.mxu0 %v2055
        %2093 = vmatpush1.bf16.msra.mxu0 %v2054
        %2094 = vmatprep.subr.bf16.mxu0 %v2057
        %2095 = vmatpush1.bf16.msra.mxu0 %v2056
        %2096 = vmatprep.subr.bf16.mxu0 %v2059
        %2097 = vmatpush1.bf16.msra.mxu0 %v2058
        %2098 = vmatprep.subr.bf16.mxu0 %v2061
        %2099 = vmatpush1.bf16.msra.mxu0 %v2060
        %2100 = vmatprep.subr.bf16.mxu0 %v2063
        %2101 = vmatpush1.bf16.msra.mxu0 %v2062
        %2102 = vmatprep.subr.bf16.mxu0 %v2065
        %2103 = vmatpush1.bf16.msra.mxu0 %v2064
        %2104 = vmatprep.mubr.bf16.mxu0 %v2069
        %2105 = vmatmul.mubr.bf16.gmra.mrb[0].mxu0 %v2068
        %v2106 = vpop.f32.mrb[0].mxu0
        %v2107 = vadd.f32 0.0, %v2106
        %v2108 = vpop.f32.mrb[0].mxu0
        %v2109 = vadd.f32 0.0, %v2108
        %v2110 = vpop.f32.mrb[0].mxu0
        %v2111 = vpop.f32.mrb[0].mxu0
        %2112 = vdwg.mxu0
        %v2113 = vrcp.pop %v1996
        %v2114 = vrcp.pop %v2033
        %v2115 = vmul.f32 %v2107, %v2113
        %v2116 = vmul.f32 %v2109, %v2114
        %v2117 = vpack.c.bf16 %v551, %v551
        %v2118 = vpack.c.bf16 %v553, %v553
        %v2119 = vpack.c.bf16 %v624, %v624
        %v2120 = vpack.c.bf16 %v626, %v626
        %2121 = vxpose.xlu0.c.b16.start [1/8] %v2119, 128
        %2122 = vxpose.xlu0.c.b16.cont [2/8] 0, 128
        %2123 = vxpose.xlu0.c.b16.cont [3/8] 0, 128
        %2124 = vxpose.xlu0.c.b16.cont [4/8] 0, 128
        %2125 = vxpose.xlu0.c.b16.cont [5/8] 0, 128
        %2126 = vxpose.xlu0.c.b16.cont [6/8] 0, 128
        %2127 = vxpose.xlu0.c.b16.cont [7/8] 0, 128
        %2128 = vxpose.xlu0.c.b16.end [8/8] 0, 128
        %v2129 = vpop.trf.xlu0
        %v2130 = vpop.trf.xlu0
        %v2131 = vpop.trf.xlu0
        %v2132 = vpop.trf.xlu0
        %v2133 = vpop.trf.xlu0
        %v2134 = vpop.trf.xlu0
        %v2135 = vpop.trf.xlu0
        %v2136 = vpop.trf.xlu0
        %2137 = vxpose.xlu0.c.b16.start [1/8] %v2120, 128
        %2138 = vxpose.xlu0.c.b16.cont [2/8] 0, 128
        %2139 = vxpose.xlu0.c.b16.cont [3/8] 0, 128
        %2140 = vxpose.xlu0.c.b16.cont [4/8] 0, 128
        %2141 = vxpose.xlu0.c.b16.cont [5/8] 0, 128
        %2142 = vxpose.xlu0.c.b16.cont [6/8] 0, 128
        %2143 = vxpose.xlu0.c.b16.cont [7/8] 0, 128
        %2144 = vxpose.xlu0.c.b16.end [8/8] 0, 128
        %v2145 = vpop.trf.xlu0
        %v2146 = vpop.trf.xlu0
        %v2147 = vpop.trf.xlu0
        %v2148 = vpop.trf.xlu0
        %v2149 = vpop.trf.xlu0
        %v2150 = vpop.trf.xlu0
        %v2151 = vpop.trf.xlu0
        %v2152 = vpop.trf.xlu0
        %v2154 = vsel %vm745, %v2129, 0
        %v2157 = vsel %vm745, %v2130, 0
        %v2160 = vsel %vm745, %v2131, 0
        %v2163 = vsel %vm745, %v2132, 0
        %v2166 = vsel %vm745, %v2133, 0
        %v2169 = vsel %vm745, %v2134, 0
        %v2172 = vsel %vm745, %v2135, 0
        %v2175 = vsel %vm745, %v2136, 0
        %v2178 = vsel %vm745, %v2145, 0
        %v2181 = vsel %vm745, %v2146, 0
        %v2184 = vsel %vm745, %v2147, 0
        %v2187 = vsel %vm745, %v2148, 0
        %v2190 = vsel %vm745, %v2149, 0
        %v2193 = vsel %vm745, %v2150, 0
        %v2196 = vsel %vm745, %v2151, 0
        %v2199 = vsel %vm745, %v2152, 0
        %v2202 = vsel %vm794, %v2117, 0
        %v2205 = vsel %vm794, %v2118, 0
        %2207 = vmatprep.subr.bf16.mxu0 %v2205
        %2208 = vmatpush1.bf16.msra.mxu0 %v2202
        %2209 = vmatprep.subr.bf16.mxu0 0
        %2210 = vmatpush1.bf16.msra.mxu0 0
        %2211 = vmatprep.subr.bf16.mxu0 0
        %2212 = vmatpush1.bf16.msra.mxu0 0
        %2213 = vmatprep.subr.bf16.mxu0 0
        %2214 = vmatpush1.bf16.msra.mxu0 0
        %2215 = vmatprep.subr.bf16.mxu0 0
        %2216 = vmatpush1.bf16.msra.mxu0 0
        %2217 = vmatprep.subr.bf16.mxu0 0
        %2218 = vmatpush1.bf16.msra.mxu0 0
        %2219 = vmatprep.subr.bf16.mxu0 0
        %2220 = vmatpush1.bf16.msra.mxu0 0
        %2221 = vmatprep.subr.bf16.mxu0 0
        %2222 = vmatpush1.bf16.msra.mxu0 0
        %2223 = vmatprep.subr.bf16.mxu0 0
        %2224 = vmatpush1.bf16.msra.mxu0 0
        %2225 = vmatprep.subr.bf16.mxu0 0
        %2226 = vmatpush1.bf16.msra.mxu0 0
        %2227 = vmatprep.subr.bf16.mxu0 0
        %2228 = vmatpush1.bf16.msra.mxu0 0
        %2229 = vmatprep.subr.bf16.mxu0 0
        %2230 = vmatpush1.bf16.msra.mxu0 0
        %2231 = vmatprep.subr.bf16.mxu0 0
        %2232 = vmatpush1.bf16.msra.mxu0 0
        %2233 = vmatprep.subr.bf16.mxu0 0
        %2234 = vmatpush1.bf16.msra.mxu0 0
        %2235 = vmatprep.subr.bf16.mxu0 0
        %2236 = vmatpush1.bf16.msra.mxu0 0
        %2237 = vmatprep.subr.bf16.mxu0 0
        %2238 = vmatpush1.bf16.msra.mxu0 0
        %2239 = vmatprep.mubr.bf16.mxu0 0
        %2240 = vmatmul.mubr.bf16.gmra.mrb[0].mxu0 %v2154
        %v2241 = vpop.f32.mrb[0].mxu0
        %v2242 = vadd.f32 0.0, %v2241
        %v2243 = vpop.f32.mrb[0].mxu0
        %v2244 = vadd.f32 0.0, %v2243
        %v2245 = vpop.f32.mrb[0].mxu0
        %v2246 = vadd.f32 0.0, %v2245
        %v2247 = vpop.f32.mrb[0].mxu0
        %v2248 = vadd.f32 0.0, %v2247
        %2249 = vmatprep.mubr.bf16.mxu0 0
        %2250 = vmatmul.mubr.bf16.gmra.mrb[0].mxu0 %v2157
        %v2251 = vpop.f32.mrb[0].mxu0
        %v2252 = vadd.f32 0.0, %v2251
        %v2253 = vpop.f32.mrb[0].mxu0
        %v2254 = vadd.f32 0.0, %v2253
        %v2255 = vpop.f32.mrb[0].mxu0
        %v2256 = vadd.f32 0.0, %v2255
        %v2257 = vpop.f32.mrb[0].mxu0
        %v2258 = vadd.f32 0.0, %v2257
        %2259 = vmatprep.mubr.bf16.mxu0 0
        %2260 = vmatmul.mubr.bf16.gmra.mrb[0].mxu0 %v2160
        %v2261 = vpop.f32.mrb[0].mxu0
        %v2262 = vadd.f32 0.0, %v2261
        %v2263 = vpop.f32.mrb[0].mxu0
        %v2264 = vadd.f32 0.0, %v2263
        %v2265 = vpop.f32.mrb[0].mxu0
        %v2266 = vadd.f32 0.0, %v2265
        %v2267 = vpop.f32.mrb[0].mxu0
        %v2268 = vadd.f32 0.0, %v2267
        %2269 = vmatprep.mubr.bf16.mxu0 0
        %2270 = vmatmul.mubr.bf16.gmra.mrb[0].mxu0 %v2163
        %v2271 = vpop.f32.mrb[0].mxu0
        %v2272 = vadd.f32 0.0, %v2271
        %v2273 = vpop.f32.mrb[0].mxu0
        %v2274 = vadd.f32 0.0, %v2273
        %v2275 = vpop.f32.mrb[0].mxu0
        %v2276 = vadd.f32 0.0, %v2275
        %v2277 = vpop.f32.mrb[0].mxu0
        %v2278 = vadd.f32 0.0, %v2277
        %2279 = vmatprep.mubr.bf16.mxu0 0
        %2280 = vmatmul.mubr.bf16.gmra.mrb[0].mxu0 %v2166
        %v2281 = vpop.f32.mrb[0].mxu0
        %v2282 = vadd.f32 0.0, %v2281
        %v2283 = vpop.f32.mrb[0].mxu0
        %v2284 = vadd.f32 0.0, %v2283
        %v2285 = vpop.f32.mrb[0].mxu0
        %v2286 = vadd.f32 0.0, %v2285
        %v2287 = vpop.f32.mrb[0].mxu0
        %v2288 = vadd.f32 0.0, %v2287
        %2289 = vmatprep.mubr.bf16.mxu0 0
        %2290 = vmatmul.mubr.bf16.gmra.mrb[0].mxu0 %v2169
        %v2291 = vpop.f32.mrb[0].mxu0
        %v2292 = vadd.f32 0.0, %v2291
        %v2293 = vpop.f32.mrb[0].mxu0
        %v2294 = vadd.f32 0.0, %v2293
        %v2295 = vpop.f32.mrb[0].mxu0
        %v2296 = vadd.f32 0.0, %v2295
        %v2297 = vpop.f32.mrb[0].mxu0
        %v2298 = vadd.f32 0.0, %v2297
        %2299 = vmatprep.mubr.bf16.mxu0 0
        %2300 = vmatmul.mubr.bf16.gmra.mrb[0].mxu0 %v2172
        %v2301 = vpop.f32.mrb[0].mxu0
        %v2302 = vadd.f32 0.0, %v2301
        %v2303 = vpop.f32.mrb[0].mxu0
        %v2304 = vadd.f32 0.0, %v2303
        %v2305 = vpop.f32.mrb[0].mxu0
        %v2306 = vadd.f32 0.0, %v2305
        %v2307 = vpop.f32.mrb[0].mxu0
        %v2308 = vadd.f32 0.0, %v2307
        %2309 = vmatprep.mubr.bf16.mxu0 0
        %2310 = vmatmul.mubr.bf16.gmra.mrb[0].mxu0 %v2175
        %v2311 = vpop.f32.mrb[0].mxu0
        %v2312 = vadd.f32 0.0, %v2311
        %v2313 = vpop.f32.mrb[0].mxu0
        %v2314 = vadd.f32 0.0, %v2313
        %v2315 = vpop.f32.mrb[0].mxu0
        %v2316 = vadd.f32 0.0, %v2315
        %v2317 = vpop.f32.mrb[0].mxu0
        %v2318 = vadd.f32 0.0, %v2317
        %2319 = vmatprep.mubr.bf16.mxu0 0
        %2320 = vmatmul.mubr.bf16.gmra.mrb[0].mxu0 %v2178
        %v2321 = vpop.f32.mrb[0].mxu0
        %v2322 = vadd.f32 0.0, %v2321
        %v2323 = vpop.f32.mrb[0].mxu0
        %v2324 = vadd.f32 0.0, %v2323
        %v2325 = vpop.f32.mrb[0].mxu0
        %v2326 = vadd.f32 0.0, %v2325
        %v2327 = vpop.f32.mrb[0].mxu0
        %v2328 = vadd.f32 0.0, %v2327
        %2329 = vmatprep.mubr.bf16.mxu0 0
        %2330 = vmatmul.mubr.bf16.gmra.mrb[0].mxu0 %v2181
        %v2331 = vpop.f32.mrb[0].mxu0
        %v2332 = vadd.f32 0.0, %v2331
        %v2333 = vpop.f32.mrb[0].mxu0
        %v2334 = vadd.f32 0.0, %v2333
        %v2335 = vpop.f32.mrb[0].mxu0
        %v2336 = vadd.f32 0.0, %v2335
        %v2337 = vpop.f32.mrb[0].mxu0
        %v2338 = vadd.f32 0.0, %v2337
        %2339 = vmatprep.mubr.bf16.mxu0 0
        %2340 = vmatmul.mubr.bf16.gmra.mrb[0].mxu0 %v2184
        %v2341 = vpop.f32.mrb[0].mxu0
        %v2342 = vadd.f32 0.0, %v2341
        %v2343 = vpop.f32.mrb[0].mxu0
        %v2344 = vadd.f32 0.0, %v2343
        %v2345 = vpop.f32.mrb[0].mxu0
        %v2346 = vadd.f32 0.0, %v2345
        %v2347 = vpop.f32.mrb[0].mxu0
        %v2348 = vadd.f32 0.0, %v2347
        %2349 = vmatprep.mubr.bf16.mxu0 0
        %2350 = vmatmul.mubr.bf16.gmra.mrb[0].mxu0 %v2187
        %v2351 = vpop.f32.mrb[0].mxu0
        %v2352 = vadd.f32 0.0, %v2351
        %v2353 = vpop.f32.mrb[0].mxu0
        %v2354 = vadd.f32 0.0, %v2353
        %v2355 = vpop.f32.mrb[0].mxu0
        %v2356 = vadd.f32 0.0, %v2355
        %v2357 = vpop.f32.mrb[0].mxu0
        %v2358 = vadd.f32 0.0, %v2357
        %2359 = vmatprep.mubr.bf16.mxu0 0
        %2360 = vmatmul.mubr.bf16.gmra.mrb[0].mxu0 %v2190
        %v2361 = vpop.f32.mrb[0].mxu0
        %v2362 = vadd.f32 0.0, %v2361
        %v2363 = vpop.f32.mrb[0].mxu0
        %v2364 = vadd.f32 0.0, %v2363
        %v2365 = vpop.f32.mrb[0].mxu0
        %v2366 = vadd.f32 0.0, %v2365
        %v2367 = vpop.f32.mrb[0].mxu0
        %v2368 = vadd.f32 0.0, %v2367
        %2369 = vmatprep.mubr.bf16.mxu0 0
        %2370 = vmatmul.mubr.bf16.gmra.mrb[0].mxu0 %v2193
        %v2371 = vpop.f32.mrb[0].mxu0
        %v2372 = vadd.f32 0.0, %v2371
        %v2373 = vpop.f32.mrb[0].mxu0
        %v2374 = vadd.f32 0.0, %v2373
        %v2375 = vpop.f32.mrb[0].mxu0
        %v2376 = vadd.f32 0.0, %v2375
        %v2377 = vpop.f32.mrb[0].mxu0
        %v2378 = vadd.f32 0.0, %v2377
        %2379 = vmatprep.mubr.bf16.mxu0 0
        %2380 = vmatmul.mubr.bf16.gmra.mrb[0].mxu0 %v2196
        %v2381 = vpop.f32.mrb[0].mxu0
        %v2382 = vadd.f32 0.0, %v2381
        %v2383 = vpop.f32.mrb[0].mxu0
        %v2384 = vadd.f32 0.0, %v2383
        %v2385 = vpop.f32.mrb[0].mxu0
        %v2386 = vadd.f32 0.0, %v2385
        %v2387 = vpop.f32.mrb[0].mxu0
        %v2388 = vadd.f32 0.0, %v2387
        %2389 = vmatprep.mubr.bf16.mxu0 0
        %2390 = vmatmul.mubr.bf16.gmra.mrb[0].mxu0 %v2199
        %v2391 = vpop.f32.mrb[0].mxu0
        %v2392 = vadd.f32 0.0, %v2391
        %v2393 = vpop.f32.mrb[0].mxu0
        %v2394 = vadd.f32 0.0, %v2393
        %v2395 = vpop.f32.mrb[0].mxu0
        %v2396 = vadd.f32 0.0, %v2395
        %v2397 = vpop.f32.mrb[0].mxu0
        %v2398 = vadd.f32 0.0, %v2397
        %2399 = vdwg.mxu0
        %v2400 = vmax.f32 %v2242, %v2252
        %v2401 = vmax.f32 %v2246, %v2256
        %v2402 = vmax.f32 %v2400, %v2262
        %v2403 = vmax.f32 %v2401, %v2266
        %v2404 = vmax.f32 %v2402, %v2272
        %v2405 = vmax.f32 %v2403, %v2276
        %v2406 = vmax.f32 %v2404, %v2282
        %v2407 = vmax.f32 %v2405, %v2286
        %v2408 = vmax.f32 %v2406, %v2292
        %v2409 = vmax.f32 %v2407, %v2296
        %v2410 = vmax.f32 %v2408, %v2302
        %v2411 = vmax.f32 %v2409, %v2306
        %v2412 = vmax.f32 %v2410, %v2312
        %v2413 = vmax.f32 %v2411, %v2316
        %v2414 = vmax.f32 %v2412, %v2322
        %v2415 = vmax.f32 %v2413, %v2326
        %v2416 = vmax.f32 %v2414, %v2332
        %v2417 = vmax.f32 %v2415, %v2336
        %v2418 = vmax.f32 %v2416, %v2342
        %v2419 = vmax.f32 %v2417, %v2346
        %v2420 = vmax.f32 %v2418, %v2352
        %v2421 = vmax.f32 %v2419, %v2356
        %v2422 = vmax.f32 %v2420, %v2362
        %v2423 = vmax.f32 %v2421, %v2366
        %v2424 = vmax.f32 %v2422, %v2372
        %v2425 = vmax.f32 %v2423, %v2376
        %v2426 = vmax.f32 %v2424, %v2382
        %v2427 = vmax.f32 %v2425, %v2386
        %v2428 = vmax.f32 %v2426, %v2392
        %v2429 = vmax.f32 %v2427, %v2396
        %v2430 = vmax.f32 %v2428, %v2429
        %v2431 = vrot.slane %v2430, 4
        %v2432 = vmax.f32 %v2430, %v2431
        %v2433 = vrot.slane %v2432, 2
        %v2434 = vmax.f32 %v2432, %v2433
        %v2435 = vrot.slane %v2434, 1
        %v2436 = vmax.f32 %v2434, %v2435
        %v2437 = vmax.f32 %v2244, %v2254
        %v2438 = vmax.f32 %v2248, %v2258
        %v2439 = vmax.f32 %v2437, %v2264
        %v2440 = vmax.f32 %v2438, %v2268
        %v2441 = vmax.f32 %v2439, %v2274
        %v2442 = vmax.f32 %v2440, %v2278
        %v2443 = vmax.f32 %v2441, %v2284
        %v2444 = vmax.f32 %v2442, %v2288
        %v2445 = vmax.f32 %v2443, %v2294
        %v2446 = vmax.f32 %v2444, %v2298
        %v2447 = vmax.f32 %v2445, %v2304
        %v2448 = vmax.f32 %v2446, %v2308
        %v2449 = vmax.f32 %v2447, %v2314
        %v2450 = vmax.f32 %v2448, %v2318
        %v2451 = vmax.f32 %v2449, %v2324
        %v2452 = vmax.f32 %v2450, %v2328
        %v2453 = vmax.f32 %v2451, %v2334
        %v2454 = vmax.f32 %v2452, %v2338
        %v2455 = vmax.f32 %v2453, %v2344
        %v2456 = vmax.f32 %v2454, %v2348
        %v2457 = vmax.f32 %v2455, %v2354
        %v2458 = vmax.f32 %v2456, %v2358
        %v2459 = vmax.f32 %v2457, %v2364
        %v2460 = vmax.f32 %v2458, %v2368
        %v2461 = vmax.f32 %v2459, %v2374
        %v2462 = vmax.f32 %v2460, %v2378
        %v2463 = vmax.f32 %v2461, %v2384
        %v2464 = vmax.f32 %v2462, %v2388
        %v2465 = vmax.f32 %v2463, %v2394
        %v2466 = vmax.f32 %v2464, %v2398
        %v2467 = vmax.f32 %v2465, %v2466
        %v2468 = vrot.slane %v2467, 4
        %v2469 = vmax.f32 %v2467, %v2468
        %v2470 = vrot.slane %v2469, 2
        %v2471 = vmax.f32 %v2469, %v2470
        %v2472 = vrot.slane %v2471, 1
        %v2473 = vmax.f32 %v2471, %v2472
        %v2474 = vsub.f32 %v2242, %v2436
        %v2475 = vsub.f32 %v2244, %v2473
        %v2476 = vsub.f32 %v2246, %v2436
        %v2477 = vsub.f32 %v2248, %v2473
        %v2478 = vsub.f32 %v2252, %v2436
        %v2479 = vsub.f32 %v2254, %v2473
        %v2480 = vsub.f32 %v2256, %v2436
        %v2481 = vsub.f32 %v2258, %v2473
        %v2482 = vsub.f32 %v2262, %v2436
        %v2483 = vsub.f32 %v2264, %v2473
        %v2484 = vsub.f32 %v2266, %v2436
        %v2485 = vsub.f32 %v2268, %v2473
        %v2486 = vsub.f32 %v2272, %v2436
        %v2487 = vsub.f32 %v2274, %v2473
        %v2488 = vsub.f32 %v2276, %v2436
        %v2489 = vsub.f32 %v2278, %v2473
        %v2490 = vsub.f32 %v2282, %v2436
        %v2491 = vsub.f32 %v2284, %v2473
        %v2492 = vsub.f32 %v2286, %v2436
        %v2493 = vsub.f32 %v2288, %v2473
        %v2494 = vsub.f32 %v2292, %v2436
        %v2495 = vsub.f32 %v2294, %v2473
        %v2496 = vsub.f32 %v2296, %v2436
        %v2497 = vsub.f32 %v2298, %v2473
        %v2498 = vsub.f32 %v2302, %v2436
        %v2499 = vsub.f32 %v2304, %v2473
        %v2500 = vsub.f32 %v2306, %v2436
        %v2501 = vsub.f32 %v2308, %v2473
        %v2502 = vsub.f32 %v2312, %v2436
        %v2503 = vsub.f32 %v2314, %v2473
        %v2504 = vsub.f32 %v2316, %v2436
        %v2505 = vsub.f32 %v2318, %v2473
        %v2506 = vsub.f32 %v2322, %v2436
        %v2507 = vsub.f32 %v2324, %v2473
        %v2508 = vsub.f32 %v2326, %v2436
        %v2509 = vsub.f32 %v2328, %v2473
        %v2510 = vsub.f32 %v2332, %v2436
        %v2511 = vsub.f32 %v2334, %v2473
        %v2512 = vsub.f32 %v2336, %v2436
        %v2513 = vsub.f32 %v2338, %v2473
        %v2514 = vsub.f32 %v2342, %v2436
        %v2515 = vsub.f32 %v2344, %v2473
        %v2516 = vsub.f32 %v2346, %v2436
        %v2517 = vsub.f32 %v2348, %v2473
        %v2518 = vsub.f32 %v2352, %v2436
        %v2519 = vsub.f32 %v2354, %v2473
        %v2520 = vsub.f32 %v2356, %v2436
        %v2521 = vsub.f32 %v2358, %v2473
        %v2522 = vsub.f32 %v2362, %v2436
        %v2523 = vsub.f32 %v2364, %v2473
        %v2524 = vsub.f32 %v2366, %v2436
        %v2525 = vsub.f32 %v2368, %v2473
        %v2526 = vsub.f32 %v2372, %v2436
        %v2527 = vsub.f32 %v2374, %v2473
        %v2528 = vsub.f32 %v2376, %v2436
        %v2529 = vsub.f32 %v2378, %v2473
        %v2530 = vsub.f32 %v2382, %v2436
        %v2531 = vsub.f32 %v2384, %v2473
        %v2532 = vsub.f32 %v2386, %v2436
        %v2533 = vsub.f32 %v2388, %v2473
        %v2534 = vsub.f32 %v2392, %v2436
        %v2535 = vsub.f32 %v2394, %v2473
        %v2536 = vsub.f32 %v2396, %v2436
        %v2537 = vsub.f32 %v2398, %v2473
        %v2538 = vmul.f32 %v2474, 1.442695
        %v2539 = vpow.pop %v2538
        %v2540 = vmul.f32 %v2475, 1.442695
        %v2541 = vpow.pop %v2540
        %v2542 = vmul.f32 %v2476, 1.442695
        %v2543 = vpow.pop %v2542
        %v2544 = vmul.f32 %v2477, 1.442695
        %v2545 = vpow.pop %v2544
        %v2546 = vmul.f32 %v2478, 1.442695
        %v2547 = vpow.pop %v2546
        %v2548 = vmul.f32 %v2479, 1.442695
        %v2549 = vpow.pop %v2548
        %v2550 = vmul.f32 %v2480, 1.442695
        %v2551 = vpow.pop %v2550
        %v2552 = vmul.f32 %v2481, 1.442695
        %v2553 = vpow.pop %v2552
        %v2554 = vmul.f32 %v2482, 1.442695
        %v2555 = vpow.pop %v2554
        %v2556 = vmul.f32 %v2483, 1.442695
        %v2557 = vpow.pop %v2556
        %v2558 = vmul.f32 %v2484, 1.442695
        %v2559 = vpow.pop %v2558
        %v2560 = vmul.f32 %v2485, 1.442695
        %v2561 = vpow.pop %v2560
        %v2562 = vmul.f32 %v2486, 1.442695
        %v2563 = vpow.pop %v2562
        %v2564 = vmul.f32 %v2487, 1.442695
        %v2565 = vpow.pop %v2564
        %v2566 = vmul.f32 %v2488, 1.442695
        %v2567 = vpow.pop %v2566
        %v2568 = vmul.f32 %v2489, 1.442695
        %v2569 = vpow.pop %v2568
        %v2570 = vmul.f32 %v2490, 1.442695
        %v2571 = vpow.pop %v2570
        %v2572 = vmul.f32 %v2491, 1.442695
        %v2573 = vpow.pop %v2572
        %v2574 = vmul.f32 %v2492, 1.442695
        %v2575 = vpow.pop %v2574
        %v2576 = vmul.f32 %v2493, 1.442695
        %v2577 = vpow.pop %v2576
        %v2578 = vmul.f32 %v2494, 1.442695
        %v2579 = vpow.pop %v2578
        %v2580 = vmul.f32 %v2495, 1.442695
        %v2581 = vpow.pop %v2580
        %v2582 = vmul.f32 %v2496, 1.442695
        %v2583 = vpow.pop %v2582
        %v2584 = vmul.f32 %v2497, 1.442695
        %v2585 = vpow.pop %v2584
        %v2586 = vmul.f32 %v2498, 1.442695
        %v2587 = vpow.pop %v2586
        %v2588 = vmul.f32 %v2499, 1.442695
        %v2589 = vpow.pop %v2588
        %v2590 = vmul.f32 %v2500, 1.442695
        %v2591 = vpow.pop %v2590
        %v2592 = vmul.f32 %v2501, 1.442695
        %v2593 = vpow.pop %v2592
        %v2594 = vmul.f32 %v2502, 1.442695
        %v2595 = vpow.pop %v2594
        %v2596 = vmul.f32 %v2503, 1.442695
        %v2597 = vpow.pop %v2596
        %v2598 = vmul.f32 %v2504, 1.442695
        %v2599 = vpow.pop %v2598
        %v2600 = vmul.f32 %v2505, 1.442695
        %v2601 = vpow.pop %v2600
        %v2602 = vmul.f32 %v2506, 1.442695
        %v2603 = vpow.pop %v2602
        %v2604 = vmul.f32 %v2507, 1.442695
        %v2605 = vpow.pop %v2604
        %v2606 = vmul.f32 %v2508, 1.442695
        %v2607 = vpow.pop %v2606
        %v2608 = vmul.f32 %v2509, 1.442695
        %v2609 = vpow.pop %v2608
        %v2610 = vmul.f32 %v2510, 1.442695
        %v2611 = vpow.pop %v2610
        %v2612 = vmul.f32 %v2511, 1.442695
        %v2613 = vpow.pop %v2612
        %v2614 = vmul.f32 %v2512, 1.442695
        %v2615 = vpow.pop %v2614
        %v2616 = vmul.f32 %v2513, 1.442695
        %v2617 = vpow.pop %v2616
        %v2618 = vmul.f32 %v2514, 1.442695
        %v2619 = vpow.pop %v2618
        %v2620 = vmul.f32 %v2515, 1.442695
        %v2621 = vpow.pop %v2620
        %v2622 = vmul.f32 %v2516, 1.442695
        %v2623 = vpow.pop %v2622
        %v2624 = vmul.f32 %v2517, 1.442695
        %v2625 = vpow.pop %v2624
        %v2626 = vmul.f32 %v2518, 1.442695
        %v2627 = vpow.pop %v2626
        %v2628 = vmul.f32 %v2519, 1.442695
        %v2629 = vpow.pop %v2628
        %v2630 = vmul.f32 %v2520, 1.442695
        %v2631 = vpow.pop %v2630
        %v2632 = vmul.f32 %v2521, 1.442695
        %v2633 = vpow.pop %v2632
        %v2634 = vmul.f32 %v2522, 1.442695
        %v2635 = vpow.pop %v2634
        %v2636 = vmul.f32 %v2523, 1.442695
        %v2637 = vpow.pop %v2636
        %v2638 = vmul.f32 %v2524, 1.442695
        %v2639 = vpow.pop %v2638
        %v2640 = vmul.f32 %v2525, 1.442695
        %v2641 = vpow.pop %v2640
        %v2642 = vmul.f32 %v2526, 1.442695
        %v2643 = vpow.pop %v2642
        %v2644 = vmul.f32 %v2527, 1.442695
        %v2645 = vpow.pop %v2644
        %v2646 = vmul.f32 %v2528, 1.442695
        %v2647 = vpow.pop %v2646
        %v2648 = vmul.f32 %v2529, 1.442695
        %v2649 = vpow.pop %v2648
        %v2650 = vmul.f32 %v2530, 1.442695
        %v2651 = vpow.pop %v2650
        %v2652 = vmul.f32 %v2531, 1.442695
        %v2653 = vpow.pop %v2652
        %v2654 = vmul.f32 %v2532, 1.442695
        %v2655 = vpow.pop %v2654
        %v2656 = vmul.f32 %v2533, 1.442695
        %v2657 = vpow.pop %v2656
        %v2658 = vmul.f32 %v2534, 1.442695
        %v2659 = vpow.pop %v2658
        %v2660 = vmul.f32 %v2535, 1.442695
        %v2661 = vpow.pop %v2660
        %v2662 = vmul.f32 %v2536, 1.442695
        %v2663 = vpow.pop %v2662
        %v2664 = vmul.f32 %v2537, 1.442695
        %v2665 = vpow.pop %v2664
        %v2666 = vadd.f32 %v2539, %v2543
        %v2667 = vadd.f32 %v2666, %v2547
        %v2668 = vadd.f32 %v2667, %v2551
        %v2669 = vadd.f32 %v2668, %v2555
        %v2670 = vadd.f32 %v2669, %v2559
        %v2671 = vadd.f32 %v2670, %v2563
        %v2672 = vadd.f32 %v2671, %v2567
        %v2673 = vadd.f32 %v2672, %v2571
        %v2674 = vadd.f32 %v2673, %v2575
        %v2675 = vadd.f32 %v2674, %v2579
        %v2676 = vadd.f32 %v2675, %v2583
        %v2677 = vadd.f32 %v2676, %v2587
        %v2678 = vadd.f32 %v2677, %v2591
        %v2679 = vadd.f32 %v2678, %v2595
        %v2680 = vadd.f32 %v2679, %v2599
        %v2681 = vadd.f32 %v2680, %v2603
        %v2682 = vadd.f32 %v2681, %v2607
        %v2683 = vadd.f32 %v2682, %v2611
        %v2684 = vadd.f32 %v2683, %v2615
        %v2685 = vadd.f32 %v2684, %v2619
        %v2686 = vadd.f32 %v2685, %v2623
        %v2687 = vadd.f32 %v2686, %v2627
        %v2688 = vadd.f32 %v2687, %v2631
        %v2689 = vadd.f32 %v2688, %v2635
        %v2690 = vadd.f32 %v2689, %v2639
        %v2691 = vadd.f32 %v2690, %v2643
        %v2692 = vadd.f32 %v2691, %v2647
        %v2693 = vadd.f32 %v2692, %v2651
        %v2694 = vadd.f32 %v2693, %v2655
        %v2695 = vadd.f32 %v2694, %v2659
        %v2696 = vadd.f32 %v2695, %v2663
        %v2697 = vrot.slane %v2696, 4
        %v2698 = vadd.f32 %v2696, %v2697
        %v2699 = vrot.slane %v2698, 2
        %v2700 = vadd.f32 %v2698, %v2699
        %v2701 = vrot.slane %v2700, 1
        %v2702 = vadd.f32 %v2700, %v2701
        %v2703 = vadd.f32 %v2541, %v2545
        %v2704 = vadd.f32 %v2703, %v2549
        %v2705 = vadd.f32 %v2704, %v2553
        %v2706 = vadd.f32 %v2705, %v2557
        %v2707 = vadd.f32 %v2706, %v2561
        %v2708 = vadd.f32 %v2707, %v2565
        %v2709 = vadd.f32 %v2708, %v2569
        %v2710 = vadd.f32 %v2709, %v2573
        %v2711 = vadd.f32 %v2710, %v2577
        %v2712 = vadd.f32 %v2711, %v2581
        %v2713 = vadd.f32 %v2712, %v2585
        %v2714 = vadd.f32 %v2713, %v2589
        %v2715 = vadd.f32 %v2714, %v2593
        %v2716 = vadd.f32 %v2715, %v2597
        %v2717 = vadd.f32 %v2716, %v2601
        %v2718 = vadd.f32 %v2717, %v2605
        %v2719 = vadd.f32 %v2718, %v2609
        %v2720 = vadd.f32 %v2719, %v2613
        %v2721 = vadd.f32 %v2720, %v2617
        %v2722 = vadd.f32 %v2721, %v2621
        %v2723 = vadd.f32 %v2722, %v2625
        %v2724 = vadd.f32 %v2723, %v2629
        %v2725 = vadd.f32 %v2724, %v2633
        %v2726 = vadd.f32 %v2725, %v2637
        %v2727 = vadd.f32 %v2726, %v2641
        %v2728 = vadd.f32 %v2727, %v2645
        %v2729 = vadd.f32 %v2728, %v2649
        %v2730 = vadd.f32 %v2729, %v2653
        %v2731 = vadd.f32 %v2730, %v2657
        %v2732 = vadd.f32 %v2731, %v2661
        %v2733 = vadd.f32 %v2732, %v2665
        %v2734 = vrot.slane %v2733, 4
        %v2735 = vadd.f32 %v2733, %v2734
        %v2736 = vrot.slane %v2735, 2
        %v2737 = vadd.f32 %v2735, %v2736
        %v2738 = vrot.slane %v2737, 1
        %v2739 = vadd.f32 %v2737, %v2738
        %v2740 = vpack.c.bf16 %v2543, %v2539
        %v2741 = vpack.c.bf16 %v2545, %v2541
        %v2742 = vpack.c.bf16 %v2551, %v2547
        %v2743 = vpack.c.bf16 %v2553, %v2549
        %v2744 = vpack.c.bf16 %v2559, %v2555
        %v2745 = vpack.c.bf16 %v2561, %v2557
        %v2746 = vpack.c.bf16 %v2567, %v2563
        %v2747 = vpack.c.bf16 %v2569, %v2565
        %v2748 = vpack.c.bf16 %v2575, %v2571
        %v2749 = vpack.c.bf16 %v2577, %v2573
        %v2750 = vpack.c.bf16 %v2583, %v2579
        %v2751 = vpack.c.bf16 %v2585, %v2581
        %v2752 = vpack.c.bf16 %v2591, %v2587
        %v2753 = vpack.c.bf16 %v2593, %v2589
        %v2754 = vpack.c.bf16 %v2599, %v2595
        %v2755 = vpack.c.bf16 %v2601, %v2597
        %v2756 = vpack.c.bf16 %v2607, %v2603
        %v2757 = vpack.c.bf16 %v2609, %v2605
        %v2758 = vpack.c.bf16 %v2615, %v2611
        %v2759 = vpack.c.bf16 %v2617, %v2613
        %v2760 = vpack.c.bf16 %v2623, %v2619
        %v2761 = vpack.c.bf16 %v2625, %v2621
        %v2762 = vpack.c.bf16 %v2631, %v2627
        %v2763 = vpack.c.bf16 %v2633, %v2629
        %v2764 = vpack.c.bf16 %v2639, %v2635
        %v2765 = vpack.c.bf16 %v2641, %v2637
        %v2766 = vpack.c.bf16 %v2647, %v2643
        %v2767 = vpack.c.bf16 %v2649, %v2645
        %v2768 = vpack.c.bf16 %v2655, %v2651
        %v2769 = vpack.c.bf16 %v2657, %v2653
        %v2770 = vpack.c.bf16 %v2663, %v2659
        %v2771 = vpack.c.bf16 %v2665, %v2661
        %2772 = vmatprep.subr.bf16.mxu0 %v2741
        %2773 = vmatpush1.bf16.msra.mxu0 %v2740
        %2774 = vmatprep.subr.bf16.mxu0 %v2743
        %2775 = vmatpush1.bf16.msra.mxu0 %v2742
        %2776 = vmatprep.subr.bf16.mxu0 %v2745
        %2777 = vmatpush1.bf16.msra.mxu0 %v2744
        %2778 = vmatprep.subr.bf16.mxu0 %v2747
        %2779 = vmatpush1.bf16.msra.mxu0 %v2746
        %2780 = vmatprep.subr.bf16.mxu0 %v2749
        %2781 = vmatpush1.bf16.msra.mxu0 %v2748
        %2782 = vmatprep.subr.bf16.mxu0 %v2751
        %2783 = vmatpush1.bf16.msra.mxu0 %v2750
        %2784 = vmatprep.subr.bf16.mxu0 %v2753
        %2785 = vmatpush1.bf16.msra.mxu0 %v2752
        %2786 = vmatprep.subr.bf16.mxu0 %v2755
        %2787 = vmatpush1.bf16.msra.mxu0 %v2754
        %2788 = vmatprep.subr.bf16.mxu0 %v2757
        %2789 = vmatpush1.bf16.msra.mxu0 %v2756
        %2790 = vmatprep.subr.bf16.mxu0 %v2759
        %2791 = vmatpush1.bf16.msra.mxu0 %v2758
        %2792 = vmatprep.subr.bf16.mxu0 %v2761
        %2793 = vmatpush1.bf16.msra.mxu0 %v2760
        %2794 = vmatprep.subr.bf16.mxu0 %v2763
        %2795 = vmatpush1.bf16.msra.mxu0 %v2762
        %2796 = vmatprep.subr.bf16.mxu0 %v2765
        %2797 = vmatpush1.bf16.msra.mxu0 %v2764
        %2798 = vmatprep.subr.bf16.mxu0 %v2767
        %2799 = vmatpush1.bf16.msra.mxu0 %v2766
        %2800 = vmatprep.subr.bf16.mxu0 %v2769
        %2801 = vmatpush1.bf16.msra.mxu0 %v2768
        %2802 = vmatprep.subr.bf16.mxu0 %v2771
        %2803 = vmatpush1.bf16.msra.mxu0 %v2770
        %2804 = vmatprep.mubr.bf16.mxu0 %v708
        %2805 = vmatmul.mubr.bf16.gmra.mrb[0].mxu0 %v707
        %v2806 = vpop.f32.mrb[0].mxu0
        %v2807 = vadd.f32 0.0, %v2806
        %v2808 = vpop.f32.mrb[0].mxu0
        %v2809 = vadd.f32 0.0, %v2808
        %v2810 = vpop.f32.mrb[0].mxu0
        %v2811 = vpop.f32.mrb[0].mxu0
        %2812 = vdwg.mxu0
        %v2813 = vrcp.pop %v2702
        %v2814 = vrcp.pop %v2739
        %v2815 = vmul.f32 %v2807, %v2813
        %v2816 = vmul.f32 %v2809, %v2814
        %v2817 = vpack.c.bf16 %v555, %v555
        %v2818 = vpack.c.bf16 %v557, %v557
        %v2819 = vpack.c.bf16 %v628, %v628
        %v2820 = vpack.c.bf16 %v630, %v630
        %2821 = vxpose.xlu0.c.b16.start [1/8] %v2819, 128
        %2822 = vxpose.xlu0.c.b16.cont [2/8] 0, 128
        %2823 = vxpose.xlu0.c.b16.cont [3/8] 0, 128
        %2824 = vxpose.xlu0.c.b16.cont [4/8] 0, 128
        %2825 = vxpose.xlu0.c.b16.cont [5/8] 0, 128
        %2826 = vxpose.xlu0.c.b16.cont [6/8] 0, 128
        %2827 = vxpose.xlu0.c.b16.cont [7/8] 0, 128
        %2828 = vxpose.xlu0.c.b16.end [8/8] 0, 128
        %v2829 = vpop.trf.xlu0
        %v2830 = vpop.trf.xlu0
        %v2831 = vpop.trf.xlu0
        %v2832 = vpop.trf.xlu0
        %v2833 = vpop.trf.xlu0
        %v2834 = vpop.trf.xlu0
        %v2835 = vpop.trf.xlu0
        %v2836 = vpop.trf.xlu0
        %2837 = vxpose.xlu0.c.b16.start [1/8] %v2820, 128
        %2838 = vxpose.xlu0.c.b16.cont [2/8] 0, 128
        %2839 = vxpose.xlu0.c.b16.cont [3/8] 0, 128
        %2840 = vxpose.xlu0.c.b16.cont [4/8] 0, 128
        %2841 = vxpose.xlu0.c.b16.cont [5/8] 0, 128
        %2842 = vxpose.xlu0.c.b16.cont [6/8] 0, 128
        %2843 = vxpose.xlu0.c.b16.cont [7/8] 0, 128
        %2844 = vxpose.xlu0.c.b16.end [8/8] 0, 128
        %v2845 = vpop.trf.xlu0
        %v2846 = vpop.trf.xlu0
        %v2847 = vpop.trf.xlu0
        %v2848 = vpop.trf.xlu0
        %v2849 = vpop.trf.xlu0
        %v2850 = vpop.trf.xlu0
        %v2851 = vpop.trf.xlu0
        %v2852 = vpop.trf.xlu0
        %v2854 = vsel %vm745, %v2829, 0
        %v2857 = vsel %vm745, %v2830, 0
        %v2860 = vsel %vm745, %v2831, 0
        %v2863 = vsel %vm745, %v2832, 0
        %v2866 = vsel %vm745, %v2833, 0
        %v2869 = vsel %vm745, %v2834, 0
        %v2872 = vsel %vm745, %v2835, 0
        %v2875 = vsel %vm745, %v2836, 0
        %v2878 = vsel %vm745, %v2845, 0
        %v2881 = vsel %vm745, %v2846, 0
        %v2884 = vsel %vm745, %v2847, 0
        %v2887 = vsel %vm745, %v2848, 0
        %v2890 = vsel %vm745, %v2849, 0
        %v2893 = vsel %vm745, %v2850, 0
        %v2896 = vsel %vm745, %v2851, 0
        %v2899 = vsel %vm745, %v2852, 0
        %v2902 = vsel %vm794, %v2817, 0
        %v2905 = vsel %vm794, %v2818, 0
        %2907 = vmatprep.subr.bf16.mxu0 %v2905
        %2908 = vmatpush1.bf16.msra.mxu0 %v2902
        %2909 = vmatprep.subr.bf16.mxu0 0
        %2910 = vmatpush1.bf16.msra.mxu0 0
        %2911 = vmatprep.subr.bf16.mxu0 0
        %2912 = vmatpush1.bf16.msra.mxu0 0
        %2913 = vmatprep.subr.bf16.mxu0 0
        %2914 = vmatpush1.bf16.msra.mxu0 0
        %2915 = vmatprep.subr.bf16.mxu0 0
        %2916 = vmatpush1.bf16.msra.mxu0 0
        %2917 = vmatprep.subr.bf16.mxu0 0
        %2918 = vmatpush1.bf16.msra.mxu0 0
        %2919 = vmatprep.subr.bf16.mxu0 0
        %2920 = vmatpush1.bf16.msra.mxu0 0
        %2921 = vmatprep.subr.bf16.mxu0 0
        %2922 = vmatpush1.bf16.msra.mxu0 0
        %2923 = vmatprep.subr.bf16.mxu0 0
        %2924 = vmatpush1.bf16.msra.mxu0 0
        %2925 = vmatprep.subr.bf16.mxu0 0
        %2926 = vmatpush1.bf16.msra.mxu0 0
        %2927 = vmatprep.subr.bf16.mxu0 0
        %2928 = vmatpush1.bf16.msra.mxu0 0
        %2929 = vmatprep.subr.bf16.mxu0 0
        %2930 = vmatpush1.bf16.msra.mxu0 0
        %2931 = vmatprep.subr.bf16.mxu0 0
        %2932 = vmatpush1.bf16.msra.mxu0 0
        %2933 = vmatprep.subr.bf16.mxu0 0
        %2934 = vmatpush1.bf16.msra.mxu0 0
        %2935 = vmatprep.subr.bf16.mxu0 0
        %2936 = vmatpush1.bf16.msra.mxu0 0
        %2937 = vmatprep.subr.bf16.mxu0 0
        %2938 = vmatpush1.bf16.msra.mxu0 0
        %2939 = vmatprep.mubr.bf16.mxu0 0
        %2940 = vmatmul.mubr.bf16.gmra.mrb[0].mxu0 %v2854
        %v2941 = vpop.f32.mrb[0].mxu0
        %v2942 = vadd.f32 0.0, %v2941
        %v2943 = vpop.f32.mrb[0].mxu0
        %v2944 = vadd.f32 0.0, %v2943
        %v2945 = vpop.f32.mrb[0].mxu0
        %v2946 = vadd.f32 0.0, %v2945
        %v2947 = vpop.f32.mrb[0].mxu0
        %v2948 = vadd.f32 0.0, %v2947
        %2949 = vmatprep.mubr.bf16.mxu0 0
        %2950 = vmatmul.mubr.bf16.gmra.mrb[0].mxu0 %v2857
        %v2951 = vpop.f32.mrb[0].mxu0
        %v2952 = vadd.f32 0.0, %v2951
        %v2953 = vpop.f32.mrb[0].mxu0
        %v2954 = vadd.f32 0.0, %v2953
        %v2955 = vpop.f32.mrb[0].mxu0
        %v2956 = vadd.f32 0.0, %v2955
        %v2957 = vpop.f32.mrb[0].mxu0
        %v2958 = vadd.f32 0.0, %v2957
        %2959 = vmatprep.mubr.bf16.mxu0 0
        %2960 = vmatmul.mubr.bf16.gmra.mrb[0].mxu0 %v2860
        %v2961 = vpop.f32.mrb[0].mxu0
        %v2962 = vadd.f32 0.0, %v2961
        %v2963 = vpop.f32.mrb[0].mxu0
        %v2964 = vadd.f32 0.0, %v2963
        %v2965 = vpop.f32.mrb[0].mxu0
        %v2966 = vadd.f32 0.0, %v2965
        %v2967 = vpop.f32.mrb[0].mxu0
        %v2968 = vadd.f32 0.0, %v2967
        %2969 = vmatprep.mubr.bf16.mxu0 0
        %2970 = vmatmul.mubr.bf16.gmra.mrb[0].mxu0 %v2863
        %v2971 = vpop.f32.mrb[0].mxu0
        %v2972 = vadd.f32 0.0, %v2971
        %v2973 = vpop.f32.mrb[0].mxu0
        %v2974 = vadd.f32 0.0, %v2973
        %v2975 = vpop.f32.mrb[0].mxu0
        %v2976 = vadd.f32 0.0, %v2975
        %v2977 = vpop.f32.mrb[0].mxu0
        %v2978 = vadd.f32 0.0, %v2977
        %2979 = vmatprep.mubr.bf16.mxu0 0
        %2980 = vmatmul.mubr.bf16.gmra.mrb[0].mxu0 %v2866
        %v2981 = vpop.f32.mrb[0].mxu0
        %v2982 = vadd.f32 0.0, %v2981
        %v2983 = vpop.f32.mrb[0].mxu0
        %v2984 = vadd.f32 0.0, %v2983
        %v2985 = vpop.f32.mrb[0].mxu0
        %v2986 = vadd.f32 0.0, %v2985
        %v2987 = vpop.f32.mrb[0].mxu0
        %v2988 = vadd.f32 0.0, %v2987
        %2989 = vmatprep.mubr.bf16.mxu0 0
        %2990 = vmatmul.mubr.bf16.gmra.mrb[0].mxu0 %v2869
        %v2991 = vpop.f32.mrb[0].mxu0
        %v2992 = vadd.f32 0.0, %v2991
        %v2993 = vpop.f32.mrb[0].mxu0
        %v2994 = vadd.f32 0.0, %v2993
        %v2995 = vpop.f32.mrb[0].mxu0
        %v2996 = vadd.f32 0.0, %v2995
        %v2997 = vpop.f32.mrb[0].mxu0
        %v2998 = vadd.f32 0.0, %v2997
        %2999 = vmatprep.mubr.bf16.mxu0 0
        %3000 = vmatmul.mubr.bf16.gmra.mrb[0].mxu0 %v2872
        %v3001 = vpop.f32.mrb[0].mxu0
        %v3002 = vadd.f32 0.0, %v3001
        %v3003 = vpop.f32.mrb[0].mxu0
        %v3004 = vadd.f32 0.0, %v3003
        %v3005 = vpop.f32.mrb[0].mxu0
        %v3006 = vadd.f32 0.0, %v3005
        %v3007 = vpop.f32.mrb[0].mxu0
        %v3008 = vadd.f32 0.0, %v3007
        %3009 = vmatprep.mubr.bf16.mxu0 0
        %3010 = vmatmul.mubr.bf16.gmra.mrb[0].mxu0 %v2875
        %v3011 = vpop.f32.mrb[0].mxu0
        %v3012 = vadd.f32 0.0, %v3011
        %v3013 = vpop.f32.mrb[0].mxu0
        %v3014 = vadd.f32 0.0, %v3013
        %v3015 = vpop.f32.mrb[0].mxu0
        %v3016 = vadd.f32 0.0, %v3015
        %v3017 = vpop.f32.mrb[0].mxu0
        %v3018 = vadd.f32 0.0, %v3017
        %3019 = vmatprep.mubr.bf16.mxu0 0
        %3020 = vmatmul.mubr.bf16.gmra.mrb[0].mxu0 %v2878
        %v3021 = vpop.f32.mrb[0].mxu0
        %v3022 = vadd.f32 0.0, %v3021
        %v3023 = vpop.f32.mrb[0].mxu0
        %v3024 = vadd.f32 0.0, %v3023
        %v3025 = vpop.f32.mrb[0].mxu0
        %v3026 = vadd.f32 0.0, %v3025
        %v3027 = vpop.f32.mrb[0].mxu0
        %v3028 = vadd.f32 0.0, %v3027
        %3029 = vmatprep.mubr.bf16.mxu0 0
        %3030 = vmatmul.mubr.bf16.gmra.mrb[0].mxu0 %v2881
        %v3031 = vpop.f32.mrb[0].mxu0
        %v3032 = vadd.f32 0.0, %v3031
        %v3033 = vpop.f32.mrb[0].mxu0
        %v3034 = vadd.f32 0.0, %v3033
        %v3035 = vpop.f32.mrb[0].mxu0
        %v3036 = vadd.f32 0.0, %v3035
        %v3037 = vpop.f32.mrb[0].mxu0
        %v3038 = vadd.f32 0.0, %v3037
        %3039 = vmatprep.mubr.bf16.mxu0 0
        %3040 = vmatmul.mubr.bf16.gmra.mrb[0].mxu0 %v2884
        %v3041 = vpop.f32.mrb[0].mxu0
        %v3042 = vadd.f32 0.0, %v3041
        %v3043 = vpop.f32.mrb[0].mxu0
        %v3044 = vadd.f32 0.0, %v3043
        %v3045 = vpop.f32.mrb[0].mxu0
        %v3046 = vadd.f32 0.0, %v3045
        %v3047 = vpop.f32.mrb[0].mxu0
        %v3048 = vadd.f32 0.0, %v3047
        %3049 = vmatprep.mubr.bf16.mxu0 0
        %3050 = vmatmul.mubr.bf16.gmra.mrb[0].mxu0 %v2887
        %v3051 = vpop.f32.mrb[0].mxu0
        %v3052 = vadd.f32 0.0, %v3051
        %v3053 = vpop.f32.mrb[0].mxu0
        %v3054 = vadd.f32 0.0, %v3053
        %v3055 = vpop.f32.mrb[0].mxu0
        %v3056 = vadd.f32 0.0, %v3055
        %v3057 = vpop.f32.mrb[0].mxu0
        %v3058 = vadd.f32 0.0, %v3057
        %3059 = vmatprep.mubr.bf16.mxu0 0
        %3060 = vmatmul.mubr.bf16.gmra.mrb[0].mxu0 %v2890
        %v3061 = vpop.f32.mrb[0].mxu0
        %v3062 = vadd.f32 0.0, %v3061
        %v3063 = vpop.f32.mrb[0].mxu0
        %v3064 = vadd.f32 0.0, %v3063
        %v3065 = vpop.f32.mrb[0].mxu0
        %v3066 = vadd.f32 0.0, %v3065
        %v3067 = vpop.f32.mrb[0].mxu0
        %v3068 = vadd.f32 0.0, %v3067
        %3069 = vmatprep.mubr.bf16.mxu0 0
        %3070 = vmatmul.mubr.bf16.gmra.mrb[0].mxu0 %v2893
        %v3071 = vpop.f32.mrb[0].mxu0
        %v3072 = vadd.f32 0.0, %v3071
        %v3073 = vpop.f32.mrb[0].mxu0
        %v3074 = vadd.f32 0.0, %v3073
        %v3075 = vpop.f32.mrb[0].mxu0
        %v3076 = vadd.f32 0.0, %v3075
        %v3077 = vpop.f32.mrb[0].mxu0
        %v3078 = vadd.f32 0.0, %v3077
        %3079 = vmatprep.mubr.bf16.mxu0 0
        %3080 = vmatmul.mubr.bf16.gmra.mrb[0].mxu0 %v2896
        %v3081 = vpop.f32.mrb[0].mxu0
        %v3082 = vadd.f32 0.0, %v3081
        %v3083 = vpop.f32.mrb[0].mxu0
        %v3084 = vadd.f32 0.0, %v3083
        %v3085 = vpop.f32.mrb[0].mxu0
        %v3086 = vadd.f32 0.0, %v3085
        %v3087 = vpop.f32.mrb[0].mxu0
        %v3088 = vadd.f32 0.0, %v3087
        %3089 = vmatprep.mubr.bf16.mxu0 0
        %3090 = vmatmul.mubr.bf16.gmra.mrb[0].mxu0 %v2899
        %v3091 = vpop.f32.mrb[0].mxu0
        %v3092 = vadd.f32 0.0, %v3091
        %v3093 = vpop.f32.mrb[0].mxu0
        %v3094 = vadd.f32 0.0, %v3093
        %v3095 = vpop.f32.mrb[0].mxu0
        %v3096 = vadd.f32 0.0, %v3095
        %v3097 = vpop.f32.mrb[0].mxu0
        %v3098 = vadd.f32 0.0, %v3097
        %3099 = vdwg.mxu0
        %v3100 = vmax.f32 %v2942, %v2952
        %v3101 = vmax.f32 %v2946, %v2956
        %v3102 = vmax.f32 %v3100, %v2962
        %v3103 = vmax.f32 %v3101, %v2966
        %v3104 = vmax.f32 %v3102, %v2972
        %v3105 = vmax.f32 %v3103, %v2976
        %v3106 = vmax.f32 %v3104, %v2982
        %v3107 = vmax.f32 %v3105, %v2986
        %v3108 = vmax.f32 %v3106, %v2992
        %v3109 = vmax.f32 %v3107, %v2996
        %v3110 = vmax.f32 %v3108, %v3002
        %v3111 = vmax.f32 %v3109, %v3006
        %v3112 = vmax.f32 %v3110, %v3012
        %v3113 = vmax.f32 %v3111, %v3016
        %v3114 = vmax.f32 %v3112, %v3022
        %v3115 = vmax.f32 %v3113, %v3026
        %v3116 = vmax.f32 %v3114, %v3032
        %v3117 = vmax.f32 %v3115, %v3036
        %v3118 = vmax.f32 %v3116, %v3042
        %v3119 = vmax.f32 %v3117, %v3046
        %v3120 = vmax.f32 %v3118, %v3052
        %v3121 = vmax.f32 %v3119, %v3056
        %v3122 = vmax.f32 %v3120, %v3062
        %v3123 = vmax.f32 %v3121, %v3066
        %v3124 = vmax.f32 %v3122, %v3072
        %v3125 = vmax.f32 %v3123, %v3076
        %v3126 = vmax.f32 %v3124, %v3082
        %v3127 = vmax.f32 %v3125, %v3086
        %v3128 = vmax.f32 %v3126, %v3092
        %v3129 = vmax.f32 %v3127, %v3096
        %v3130 = vmax.f32 %v3128, %v3129
        %v3131 = vrot.slane %v3130, 4
        %v3132 = vmax.f32 %v3130, %v3131
        %v3133 = vrot.slane %v3132, 2
        %v3134 = vmax.f32 %v3132, %v3133
        %v3135 = vrot.slane %v3134, 1
        %v3136 = vmax.f32 %v3134, %v3135
        %v3137 = vmax.f32 %v2944, %v2954
        %v3138 = vmax.f32 %v2948, %v2958
        %v3139 = vmax.f32 %v3137, %v2964
        %v3140 = vmax.f32 %v3138, %v2968
        %v3141 = vmax.f32 %v3139, %v2974
        %v3142 = vmax.f32 %v3140, %v2978
        %v3143 = vmax.f32 %v3141, %v2984
        %v3144 = vmax.f32 %v3142, %v2988
        %v3145 = vmax.f32 %v3143, %v2994
        %v3146 = vmax.f32 %v3144, %v2998
        %v3147 = vmax.f32 %v3145, %v3004
        %v3148 = vmax.f32 %v3146, %v3008
        %v3149 = vmax.f32 %v3147, %v3014
        %v3150 = vmax.f32 %v3148, %v3018
        %v3151 = vmax.f32 %v3149, %v3024
        %v3152 = vmax.f32 %v3150, %v3028
        %v3153 = vmax.f32 %v3151, %v3034
        %v3154 = vmax.f32 %v3152, %v3038
        %v3155 = vmax.f32 %v3153, %v3044
        %v3156 = vmax.f32 %v3154, %v3048
        %v3157 = vmax.f32 %v3155, %v3054
        %v3158 = vmax.f32 %v3156, %v3058
        %v3159 = vmax.f32 %v3157, %v3064
        %v3160 = vmax.f32 %v3158, %v3068
        %v3161 = vmax.f32 %v3159, %v3074
        %v3162 = vmax.f32 %v3160, %v3078
        %v3163 = vmax.f32 %v3161, %v3084
        %v3164 = vmax.f32 %v3162, %v3088
        %v3165 = vmax.f32 %v3163, %v3094
        %v3166 = vmax.f32 %v3164, %v3098
        %v3167 = vmax.f32 %v3165, %v3166
        %v3168 = vrot.slane %v3167, 4
        %v3169 = vmax.f32 %v3167, %v3168
        %v3170 = vrot.slane %v3169, 2
        %v3171 = vmax.f32 %v3169, %v3170
        %v3172 = vrot.slane %v3171, 1
        %v3173 = vmax.f32 %v3171, %v3172
        %v3174 = vsub.f32 %v2942, %v3136
        %v3175 = vsub.f32 %v2944, %v3173
        %v3176 = vsub.f32 %v2946, %v3136
        %v3177 = vsub.f32 %v2948, %v3173
        %v3178 = vsub.f32 %v2952, %v3136
        %v3179 = vsub.f32 %v2954, %v3173
        %v3180 = vsub.f32 %v2956, %v3136
        %v3181 = vsub.f32 %v2958, %v3173
        %v3182 = vsub.f32 %v2962, %v3136
        %v3183 = vsub.f32 %v2964, %v3173
        %v3184 = vsub.f32 %v2966, %v3136
        %v3185 = vsub.f32 %v2968, %v3173
        %v3186 = vsub.f32 %v2972, %v3136
        %v3187 = vsub.f32 %v2974, %v3173
        %v3188 = vsub.f32 %v2976, %v3136
        %v3189 = vsub.f32 %v2978, %v3173
        %v3190 = vsub.f32 %v2982, %v3136
        %v3191 = vsub.f32 %v2984, %v3173
        %v3192 = vsub.f32 %v2986, %v3136
        %v3193 = vsub.f32 %v2988, %v3173
        %v3194 = vsub.f32 %v2992, %v3136
        %v3195 = vsub.f32 %v2994, %v3173
        %v3196 = vsub.f32 %v2996, %v3136
        %v3197 = vsub.f32 %v2998, %v3173
        %v3198 = vsub.f32 %v3002, %v3136
        %v3199 = vsub.f32 %v3004, %v3173
        %v3200 = vsub.f32 %v3006, %v3136
        %v3201 = vsub.f32 %v3008, %v3173
        %v3202 = vsub.f32 %v3012, %v3136
        %v3203 = vsub.f32 %v3014, %v3173
        %v3204 = vsub.f32 %v3016, %v3136
        %v3205 = vsub.f32 %v3018, %v3173
        %v3206 = vsub.f32 %v3022, %v3136
        %v3207 = vsub.f32 %v3024, %v3173
        %v3208 = vsub.f32 %v3026, %v3136
        %v3209 = vsub.f32 %v3028, %v3173
        %v3210 = vsub.f32 %v3032, %v3136
        %v3211 = vsub.f32 %v3034, %v3173
        %v3212 = vsub.f32 %v3036, %v3136
        %v3213 = vsub.f32 %v3038, %v3173
        %v3214 = vsub.f32 %v3042, %v3136
        %v3215 = vsub.f32 %v3044, %v3173
        %v3216 = vsub.f32 %v3046, %v3136
        %v3217 = vsub.f32 %v3048, %v3173
        %v3218 = vsub.f32 %v3052, %v3136
        %v3219 = vsub.f32 %v3054, %v3173
        %v3220 = vsub.f32 %v3056, %v3136
        %v3221 = vsub.f32 %v3058, %v3173
        %v3222 = vsub.f32 %v3062, %v3136
        %v3223 = vsub.f32 %v3064, %v3173
        %v3224 = vsub.f32 %v3066, %v3136
        %v3225 = vsub.f32 %v3068, %v3173
        %v3226 = vsub.f32 %v3072, %v3136
        %v3227 = vsub.f32 %v3074, %v3173
        %v3228 = vsub.f32 %v3076, %v3136
        %v3229 = vsub.f32 %v3078, %v3173
        %v3230 = vsub.f32 %v3082, %v3136
        %v3231 = vsub.f32 %v3084, %v3173
        %v3232 = vsub.f32 %v3086, %v3136
        %v3233 = vsub.f32 %v3088, %v3173
        %v3234 = vsub.f32 %v3092, %v3136
        %v3235 = vsub.f32 %v3094, %v3173
        %v3236 = vsub.f32 %v3096, %v3136
        %v3237 = vsub.f32 %v3098, %v3173
        %v3238 = vmul.f32 %v3174, 1.442695
        %v3239 = vpow.pop %v3238
        %v3240 = vmul.f32 %v3175, 1.442695
        %v3241 = vpow.pop %v3240
        %v3242 = vmul.f32 %v3176, 1.442695
        %v3243 = vpow.pop %v3242
        %v3244 = vmul.f32 %v3177, 1.442695
        %v3245 = vpow.pop %v3244
        %v3246 = vmul.f32 %v3178, 1.442695
        %v3247 = vpow.pop %v3246
        %v3248 = vmul.f32 %v3179, 1.442695
        %v3249 = vpow.pop %v3248
        %v3250 = vmul.f32 %v3180, 1.442695
        %v3251 = vpow.pop %v3250
        %v3252 = vmul.f32 %v3181, 1.442695
        %v3253 = vpow.pop %v3252
        %v3254 = vmul.f32 %v3182, 1.442695
        %v3255 = vpow.pop %v3254
        %v3256 = vmul.f32 %v3183, 1.442695
        %v3257 = vpow.pop %v3256
        %v3258 = vmul.f32 %v3184, 1.442695
        %v3259 = vpow.pop %v3258
        %v3260 = vmul.f32 %v3185, 1.442695
        %v3261 = vpow.pop %v3260
        %v3262 = vmul.f32 %v3186, 1.442695
        %v3263 = vpow.pop %v3262
        %v3264 = vmul.f32 %v3187, 1.442695
        %v3265 = vpow.pop %v3264
        %v3266 = vmul.f32 %v3188, 1.442695
        %v3267 = vpow.pop %v3266
        %v3268 = vmul.f32 %v3189, 1.442695
        %v3269 = vpow.pop %v3268
        %v3270 = vmul.f32 %v3190, 1.442695
        %v3271 = vpow.pop %v3270
        %v3272 = vmul.f32 %v3191, 1.442695
        %v3273 = vpow.pop %v3272
        %v3274 = vmul.f32 %v3192, 1.442695
        %v3275 = vpow.pop %v3274
        %v3276 = vmul.f32 %v3193, 1.442695
        %v3277 = vpow.pop %v3276
        %v3278 = vmul.f32 %v3194, 1.442695
        %v3279 = vpow.pop %v3278
        %v3280 = vmul.f32 %v3195, 1.442695
        %v3281 = vpow.pop %v3280
        %v3282 = vmul.f32 %v3196, 1.442695
        %v3283 = vpow.pop %v3282
        %v3284 = vmul.f32 %v3197, 1.442695
        %v3285 = vpow.pop %v3284
        %v3286 = vmul.f32 %v3198, 1.442695
        %v3287 = vpow.pop %v3286
        %v3288 = vmul.f32 %v3199, 1.442695
        %v3289 = vpow.pop %v3288
        %v3290 = vmul.f32 %v3200, 1.442695
        %v3291 = vpow.pop %v3290
        %v3292 = vmul.f32 %v3201, 1.442695
        %v3293 = vpow.pop %v3292
        %v3294 = vmul.f32 %v3202, 1.442695
        %v3295 = vpow.pop %v3294
        %v3296 = vmul.f32 %v3203, 1.442695
        %v3297 = vpow.pop %v3296
        %v3298 = vmul.f32 %v3204, 1.442695
        %v3299 = vpow.pop %v3298
        %v3300 = vmul.f32 %v3205, 1.442695
        %v3301 = vpow.pop %v3300
        %v3302 = vmul.f32 %v3206, 1.442695
        %v3303 = vpow.pop %v3302
        %v3304 = vmul.f32 %v3207, 1.442695
        %v3305 = vpow.pop %v3304
        %v3306 = vmul.f32 %v3208, 1.442695
        %v3307 = vpow.pop %v3306
        %v3308 = vmul.f32 %v3209, 1.442695
        %v3309 = vpow.pop %v3308
        %v3310 = vmul.f32 %v3210, 1.442695
        %v3311 = vpow.pop %v3310
        %v3312 = vmul.f32 %v3211, 1.442695
        %v3313 = vpow.pop %v3312
        %v3314 = vmul.f32 %v3212, 1.442695
        %v3315 = vpow.pop %v3314
        %v3316 = vmul.f32 %v3213, 1.442695
        %v3317 = vpow.pop %v3316
        %v3318 = vmul.f32 %v3214, 1.442695
        %v3319 = vpow.pop %v3318
        %v3320 = vmul.f32 %v3215, 1.442695
        %v3321 = vpow.pop %v3320
        %v3322 = vmul.f32 %v3216, 1.442695
        %v3323 = vpow.pop %v3322
        %v3324 = vmul.f32 %v3217, 1.442695
        %v3325 = vpow.pop %v3324
        %v3326 = vmul.f32 %v3218, 1.442695
        %v3327 = vpow.pop %v3326
        %v3328 = vmul.f32 %v3219, 1.442695
        %v3329 = vpow.pop %v3328
        %v3330 = vmul.f32 %v3220, 1.442695
        %v3331 = vpow.pop %v3330
        %v3332 = vmul.f32 %v3221, 1.442695
        %v3333 = vpow.pop %v3332
        %v3334 = vmul.f32 %v3222, 1.442695
        %v3335 = vpow.pop %v3334
        %v3336 = vmul.f32 %v3223, 1.442695
        %v3337 = vpow.pop %v3336
        %v3338 = vmul.f32 %v3224, 1.442695
        %v3339 = vpow.pop %v3338
        %v3340 = vmul.f32 %v3225, 1.442695
        %v3341 = vpow.pop %v3340
        %v3342 = vmul.f32 %v3226, 1.442695
        %v3343 = vpow.pop %v3342
        %v3344 = vmul.f32 %v3227, 1.442695
        %v3345 = vpow.pop %v3344
        %v3346 = vmul.f32 %v3228, 1.442695
        %v3347 = vpow.pop %v3346
        %v3348 = vmul.f32 %v3229, 1.442695
        %v3349 = vpow.pop %v3348
        %v3350 = vmul.f32 %v3230, 1.442695
        %v3351 = vpow.pop %v3350
        %v3352 = vmul.f32 %v3231, 1.442695
        %v3353 = vpow.pop %v3352
        %v3354 = vmul.f32 %v3232, 1.442695
        %v3355 = vpow.pop %v3354
        %v3356 = vmul.f32 %v3233, 1.442695
        %v3357 = vpow.pop %v3356
        %v3358 = vmul.f32 %v3234, 1.442695
        %v3359 = vpow.pop %v3358
        %v3360 = vmul.f32 %v3235, 1.442695
        %v3361 = vpow.pop %v3360
        %v3362 = vmul.f32 %v3236, 1.442695
        %v3363 = vpow.pop %v3362
        %v3364 = vmul.f32 %v3237, 1.442695
        %v3365 = vpow.pop %v3364
        %v3366 = vadd.f32 %v3239, %v3243
        %v3367 = vadd.f32 %v3366, %v3247
        %v3368 = vadd.f32 %v3367, %v3251
        %v3369 = vadd.f32 %v3368, %v3255
        %v3370 = vadd.f32 %v3369, %v3259
        %v3371 = vadd.f32 %v3370, %v3263
        %v3372 = vadd.f32 %v3371, %v3267
        %v3373 = vadd.f32 %v3372, %v3271
        %v3374 = vadd.f32 %v3373, %v3275
        %v3375 = vadd.f32 %v3374, %v3279
        %v3376 = vadd.f32 %v3375, %v3283
        %v3377 = vadd.f32 %v3376, %v3287
        %v3378 = vadd.f32 %v3377, %v3291
        %v3379 = vadd.f32 %v3378, %v3295
        %v3380 = vadd.f32 %v3379, %v3299
        %v3381 = vadd.f32 %v3380, %v3303
        %v3382 = vadd.f32 %v3381, %v3307
        %v3383 = vadd.f32 %v3382, %v3311
        %v3384 = vadd.f32 %v3383, %v3315
        %v3385 = vadd.f32 %v3384, %v3319
        %v3386 = vadd.f32 %v3385, %v3323
        %v3387 = vadd.f32 %v3386, %v3327
        %v3388 = vadd.f32 %v3387, %v3331
        %v3389 = vadd.f32 %v3388, %v3335
        %v3390 = vadd.f32 %v3389, %v3339
        %v3391 = vadd.f32 %v3390, %v3343
        %v3392 = vadd.f32 %v3391, %v3347
        %v3393 = vadd.f32 %v3392, %v3351
        %v3394 = vadd.f32 %v3393, %v3355
        %v3395 = vadd.f32 %v3394, %v3359
        %v3396 = vadd.f32 %v3395, %v3363
        %v3397 = vrot.slane %v3396, 4
        %v3398 = vadd.f32 %v3396, %v3397
        %v3399 = vrot.slane %v3398, 2
        %v3400 = vadd.f32 %v3398, %v3399
        %v3401 = vrot.slane %v3400, 1
        %v3402 = vadd.f32 %v3400, %v3401
        %v3403 = vadd.f32 %v3241, %v3245
        %v3404 = vadd.f32 %v3403, %v3249
        %v3405 = vadd.f32 %v3404, %v3253
        %v3406 = vadd.f32 %v3405, %v3257
        %v3407 = vadd.f32 %v3406, %v3261
        %v3408 = vadd.f32 %v3407, %v3265
        %v3409 = vadd.f32 %v3408, %v3269
        %v3410 = vadd.f32 %v3409, %v3273
        %v3411 = vadd.f32 %v3410, %v3277
        %v3412 = vadd.f32 %v3411, %v3281
        %v3413 = vadd.f32 %v3412, %v3285
        %v3414 = vadd.f32 %v3413, %v3289
        %v3415 = vadd.f32 %v3414, %v3293
        %v3416 = vadd.f32 %v3415, %v3297
        %v3417 = vadd.f32 %v3416, %v3301
        %v3418 = vadd.f32 %v3417, %v3305
        %v3419 = vadd.f32 %v3418, %v3309
        %v3420 = vadd.f32 %v3419, %v3313
        %v3421 = vadd.f32 %v3420, %v3317
        %v3422 = vadd.f32 %v3421, %v3321
        %v3423 = vadd.f32 %v3422, %v3325
        %v3424 = vadd.f32 %v3423, %v3329
        %v3425 = vadd.f32 %v3424, %v3333
        %v3426 = vadd.f32 %v3425, %v3337
        %v3427 = vadd.f32 %v3426, %v3341
        %v3428 = vadd.f32 %v3427, %v3345
        %v3429 = vadd.f32 %v3428, %v3349
        %v3430 = vadd.f32 %v3429, %v3353
        %v3431 = vadd.f32 %v3430, %v3357
        %v3432 = vadd.f32 %v3431, %v3361
        %v3433 = vadd.f32 %v3432, %v3365
        %v3434 = vrot.slane %v3433, 4
        %v3435 = vadd.f32 %v3433, %v3434
        %v3436 = vrot.slane %v3435, 2
        %v3437 = vadd.f32 %v3435, %v3436
        %v3438 = vrot.slane %v3437, 1
        %v3439 = vadd.f32 %v3437, %v3438
        %v3440 = vpack.c.bf16 %v3243, %v3239
        %v3441 = vpack.c.bf16 %v3245, %v3241
        %v3442 = vpack.c.bf16 %v3251, %v3247
        %v3443 = vpack.c.bf16 %v3253, %v3249
        %v3444 = vpack.c.bf16 %v3259, %v3255
        %v3445 = vpack.c.bf16 %v3261, %v3257
        %v3446 = vpack.c.bf16 %v3267, %v3263
        %v3447 = vpack.c.bf16 %v3269, %v3265
        %v3448 = vpack.c.bf16 %v3275, %v3271
        %v3449 = vpack.c.bf16 %v3277, %v3273
        %v3450 = vpack.c.bf16 %v3283, %v3279
        %v3451 = vpack.c.bf16 %v3285, %v3281
        %v3452 = vpack.c.bf16 %v3291, %v3287
        %v3453 = vpack.c.bf16 %v3293, %v3289
        %v3454 = vpack.c.bf16 %v3299, %v3295
        %v3455 = vpack.c.bf16 %v3301, %v3297
        %v3456 = vpack.c.bf16 %v3307, %v3303
        %v3457 = vpack.c.bf16 %v3309, %v3305
        %v3458 = vpack.c.bf16 %v3315, %v3311
        %v3459 = vpack.c.bf16 %v3317, %v3313
        %v3460 = vpack.c.bf16 %v3323, %v3319
        %v3461 = vpack.c.bf16 %v3325, %v3321
        %v3462 = vpack.c.bf16 %v3331, %v3327
        %v3463 = vpack.c.bf16 %v3333, %v3329
        %v3464 = vpack.c.bf16 %v3339, %v3335
        %v3465 = vpack.c.bf16 %v3341, %v3337
        %v3466 = vpack.c.bf16 %v3347, %v3343
        %v3467 = vpack.c.bf16 %v3349, %v3345
        %v3468 = vpack.c.bf16 %v3355, %v3351
        %v3469 = vpack.c.bf16 %v3357, %v3353
        %v3470 = vpack.c.bf16 %v3363, %v3359
        %v3471 = vpack.c.bf16 %v3365, %v3361
        %v3474 = vrot.slane %v707, 4
        %v3475 = vrot.slane %v708, 4
        %3478 = vmatprep.subr.bf16.mxu0 %v3441
        %3479 = vmatpush1.bf16.msra.mxu0 %v3440
        %3480 = vmatprep.subr.bf16.mxu0 %v3443
        %3481 = vmatpush1.bf16.msra.mxu0 %v3442
        %3482 = vmatprep.subr.bf16.mxu0 %v3445
        %3483 = vmatpush1.bf16.msra.mxu0 %v3444
        %3484 = vmatprep.subr.bf16.mxu0 %v3447
        %3485 = vmatpush1.bf16.msra.mxu0 %v3446
        %3486 = vmatprep.subr.bf16.mxu0 %v3449
        %3487 = vmatpush1.bf16.msra.mxu0 %v3448
        %3488 = vmatprep.subr.bf16.mxu0 %v3451
        %3489 = vmatpush1.bf16.msra.mxu0 %v3450
        %3490 = vmatprep.subr.bf16.mxu0 %v3453
        %3491 = vmatpush1.bf16.msra.mxu0 %v3452
        %3492 = vmatprep.subr.bf16.mxu0 %v3455
        %3493 = vmatpush1.bf16.msra.mxu0 %v3454
        %3494 = vmatprep.subr.bf16.mxu0 %v3457
        %3495 = vmatpush1.bf16.msra.mxu0 %v3456
        %3496 = vmatprep.subr.bf16.mxu0 %v3459
        %3497 = vmatpush1.bf16.msra.mxu0 %v3458
        %3498 = vmatprep.subr.bf16.mxu0 %v3461
        %3499 = vmatpush1.bf16.msra.mxu0 %v3460
        %3500 = vmatprep.subr.bf16.mxu0 %v3463
        %3501 = vmatpush1.bf16.msra.mxu0 %v3462
        %3502 = vmatprep.subr.bf16.mxu0 %v3465
        %3503 = vmatpush1.bf16.msra.mxu0 %v3464
        %3504 = vmatprep.subr.bf16.mxu0 %v3467
        %3505 = vmatpush1.bf16.msra.mxu0 %v3466
        %3506 = vmatprep.subr.bf16.mxu0 %v3469
        %3507 = vmatpush1.bf16.msra.mxu0 %v3468
        %3508 = vmatprep.subr.bf16.mxu0 %v3471
        %3509 = vmatpush1.bf16.msra.mxu0 %v3470
        %3510 = vmatprep.mubr.bf16.mxu0 %v3475
        %3511 = vmatmul.mubr.bf16.gmra.mrb[0].mxu0 %v3474
        %v3512 = vpop.f32.mrb[0].mxu0
        %v3513 = vadd.f32 0.0, %v3512
        %v3514 = vpop.f32.mrb[0].mxu0
        %v3515 = vadd.f32 0.0, %v3514
        %v3516 = vpop.f32.mrb[0].mxu0
        %v3517 = vpop.f32.mrb[0].mxu0
        %3518 = vdwg.mxu0
        %v3519 = vrcp.pop %v3402
        %v3520 = vrcp.pop %v3439
        %v3521 = vmul.f32 %v3513, %v3519
        %v3522 = vmul.f32 %v3515, %v3520
        %v3523 = vpack.c.bf16 %v2115, %v1409
        %v3524 = vpack.c.bf16 %v2116, %v1410
        %v3525 = vpack.c.bf16 %v3521, %v2815
        %v3526 = vpack.c.bf16 %v3522, %v2816
        %v3527 = vld [vmem:[%s6] sm:$0xf]
        %v3528 = vld [vmem:[%s6 + $0x4] sm:$0xf]
        %v3529 = vld [vmem:[%s6 + $0x8] sm:$0xf]
        %v3530 = vld [vmem:[%s6 + $0xc] sm:$0xf]
        %v3535 = vunpack.c.l.b16 %v3527
        %v3536 = vunpack.c.l.b16 %v3528
        %v3537 = vunpack.c.l.b16 %v3529
        %v3538 = vunpack.c.l.b16 %v3530
        %v3539 = vpack.c.b16 %v3536, %v3535
        %v3540 = vpack.c.b16 %v3538, %v3537
        %v3542 = vsel %vm499, %v3539, 0
        %v3545 = vsel %vm499, %v3540, 0
        %3547 = vmatprep.subr.bf16.mxu0 %v3524
        %3548 = vmatpush1.bf16.msra.mxu0 %v3523
        %3549 = vmatprep.subr.bf16.mxu0 %v3526
        %3550 = vmatpush1.bf16.msra.mxu0 %v3525
        %3551 = vmatprep.subr.bf16.mxu0 0
        %3552 = vmatpush1.bf16.msra.mxu0 0
        %3553 = vmatprep.subr.bf16.mxu0 0
        %3554 = vmatpush1.bf16.msra.mxu0 0
        %3555 = vmatprep.subr.bf16.mxu0 0
        %3556 = vmatpush1.bf16.msra.mxu0 0
        %3557 = vmatprep.subr.bf16.mxu0 0
        %3558 = vmatpush1.bf16.msra.mxu0 0
        %3559 = vmatprep.subr.bf16.mxu0 0
        %3560 = vmatpush1.bf16.msra.mxu0 0
        %3561 = vmatprep.subr.bf16.mxu0 0
        %3562 = vmatpush1.bf16.msra.mxu0 0
        %3563 = vmatprep.subr.bf16.mxu0 0
        %3564 = vmatpush1.bf16.msra.mxu0 0
        %3565 = vmatprep.subr.bf16.mxu0 0
        %3566 = vmatpush1.bf16.msra.mxu0 0
        %3567 = vmatprep.subr.bf16.mxu0 0
        %3568 = vmatpush1.bf16.msra.mxu0 0
        %3569 = vmatprep.subr.bf16.mxu0 0
        %3570 = vmatpush1.bf16.msra.mxu0 0
        %3571 = vmatprep.subr.bf16.mxu0 0
        %3572 = vmatpush1.bf16.msra.mxu0 0
        %3573 = vmatprep.subr.bf16.mxu0 0
        %3574 = vmatpush1.bf16.msra.mxu0 0
        %3575 = vmatprep.subr.bf16.mxu0 0
        %3576 = vmatpush1.bf16.msra.mxu0 0
        %3577 = vmatprep.subr.bf16.mxu0 0
        %3578 = vmatpush1.bf16.msra.mxu0 0
        %3579 = vmatprep.mubr.bf16.mxu0 0
        %3580 = vmatmul.mubr.bf16.gmra.mrb[0].mxu0 %v3542
        %v3581 = vpop.f32.mrb[0].mxu0
        %v3582 = vadd.f32 %v449, %v3581
        %v3583 = vpop.f32.mrb[0].mxu0
        %v3584 = vadd.f32 %v450, %v3583
        %v3585 = vpop.f32.mrb[0].mxu0
        %v3586 = vadd.f32 %v451, %v3585
        %v3587 = vpop.f32.mrb[0].mxu0
        %v3588 = vadd.f32 %v452, %v3587
        %3589 = vmatprep.mubr.bf16.mxu0 0
        %3590 = vmatmul.mubr.bf16.gmra.mrb[0].mxu0 %v3545
        %v3591 = vpop.f32.mrb[0].mxu0
        %v3592 = vadd.f32 %v453, %v3591
        %v3593 = vpop.f32.mrb[0].mxu0
        %v3594 = vadd.f32 %v454, %v3593
        %v3595 = vpop.f32.mrb[0].mxu0
        %v3596 = vadd.f32 %v455, %v3595
        %v3597 = vpop.f32.mrb[0].mxu0
        %v3598 = vadd.f32 %v456, %v3597
        %3599 = vdwg.mxu0
        %3600 = vst [vmem:[%s445] sm:$0xff] %v3582
        %3601 = vst [vmem:[%s445 + $0x8] sm:$0xff] %v3584
        %3602 = vst [vmem:[%s445 + $0x10] sm:$0xff] %v3586
        %3603 = vst [vmem:[%s445 + $0x18] sm:$0xff] %v3588
        %3604 = vst [vmem:[%s445 + $0x20] sm:$0xff] %v3592
        %3605 = vst [vmem:[%s445 + $0x28] sm:$0xff] %v3594
        %3606 = vst [vmem:[%s445 + $0x30] sm:$0xff] %v3596
        %3607 = vst [vmem:[%s445 + $0x38] sm:$0xff] %v3598
        %s3608 = sand.u32 %s257, 1
        %s3609 = scalar_lea.sflag [#allocation4], %s3608
        %s3610 = sand.u32 %s257, 1
        %s3611 = smul.addr %s3610, 64
        %s3612 = scalar_lea.vmem [#allocation8], %s3611
        // Predicated region
        $region69: #{tpu_custom_call.1} parent=55 // pred_check
          %p3613 = pneg %p267
        $region70: #{tpu_custom_call.1} parent=55 // pred_check_branch
          %3615 = sbr.rel (%p3613) target = $region72
        $region71: #{tpu_custom_call.1} parent=55 // pred_region
          %s3616 = smul.u32 2, %s34
          %s3618 = ssub.s32 1024, 1024
          %3619 = vsyncadd %s3609, %s3618
          %s3620 = smul.addr %s33, 8
          %s3621 = sadd.s32 %s3616, %s3620
          %s3622 = smul.addr %s3621, 128
          %s3623 = scalar_lea.hbm %s9, %s3622
          %s3624 = sshll.u32 %s3612, 4
          %s3625 = int_to_ptr.vmem [resolvable:$true] %s3624
          %3630 = dma.vmem_to_hbm [thread:$0]  %s3625, 1024, %s3623, %s3609, 256, 256, 16
        $region72: #{tpu_custom_call.1} parent=55 // pred_fallthru
          _
      $region56: #{tpu_custom_call.1} parent=5 // pred_fallthru
        _
      %p3631 = scmp.le.s32.totalorder 2, %s24
      // Predicated region
      $region73: #{tpu_custom_call.1} parent=5 // pred_check
        %p3632 = pneg %p3631
      $region74: #{tpu_custom_call.1} parent=5 // pred_check_branch
        %3634 = sbr.rel (%p3632) target = $region76
      $region75: #{tpu_custom_call.1} parent=5 // pred_region
        %s3635 = ssub.s32 %s24, 2
        // Predicated region
        $region77: #{tpu_custom_call.1} parent=75 // pred_check
          %p3636 = pneg %p273
        $region78: #{tpu_custom_call.1} parent=75 // pred_check_branch
          %3638 = sbr.rel (%p3636) target = $region80
        $region79: #{tpu_custom_call.1} parent=75 // pred_region
          %s3639 = sand.u32 %s258, 1
          %s3640 = scalar_lea.sflag [#allocation4], %s3639
          %s3641 = sand.u32 %s258, 1
          %s3642 = smul.addr %s3641, 64
          %s3643 = scalar_lea.vmem [#allocation8], %s3642
          %3644 = dma.done %s3640, 1024
        $region80: #{tpu_custom_call.1} parent=75 // pred_fallthru
          _
      $region76: #{tpu_custom_call.1} parent=5 // pred_fallthru
        _
    $region6: #{tpu_custom_call.1} parent=1 // loop_footer
      %s28 = sadd.s32 1, %s24
    $region7: #{tpu_custom_call.1} parent=1 // loop_footer_branch
      %23 = sbr.rel target = $region3
    $region8: #{tpu_custom_call.1} parent=1 // loop_exit
      _
    %3645 = vsyncpa [#allocation3], 1
    %s3646 = scalar_lea.sflag [#allocation3], 1
    %3647 = vsyncpa %s3646, 1
    %3648 = vsyncpa [#allocation6], 1
    %s3649 = scalar_lea.sflag [#allocation6], 1
    %3650 = vsyncpa %s3649, 1
    %3651 = vsyncpa [#allocation4], 1
    %s3652 = scalar_lea.sflag [#allocation4], 1
    %3653 = vsyncpa %s3652, 1

</llo_original>
